<compile_context>
chip_gen: v5e
topology: v5e:2x2
jax: 0.10.0
libtpu: 0.0.40
codegen_flags: <defaults>
</compile_context>

<pallas_src>
import functools

import jax
import jax.numpy as jnp
from jax.experimental import pallas as pl
from jax.experimental.pallas import tpu as pltpu


# ------------------------------------------------------------------
# Fully fused forward kernel
# ------------------------------------------------------------------
def _fused_kernel(feats_ref, adj_ref, w_cat_ref, a_blk_ref, out_w_ref, out_a_ref,
                  speed_ref, w_ih_ref, w_hh_ref, lstm_b_ref, fc_w_ref, fc_b_ref,
                  out_ref, *, alpha, nheads, nhid, T, BP, H):
    neg = jnp.float32(-9e15)
    # Additive mask precomputed once; the adj tile is dead after this (frees vregs).
    mask_bias = jnp.where(adj_ref[...] > 0, jnp.float32(0.0), neg)     # [N, N]
    N = mask_bias.shape[0]

    def masked_exp(e):
        # Fused LeakyReLU + additive adjacency mask; returns UNNORMALIZED exp(e - max)
        # and its row sum (normalization is deferred past the following matmul).
        # Precondition: every adj row has >=1 nonzero (self-loops), so rowsum > 0.
        e = jnp.where(e > 0, e, alpha * e) + mask_bias
        m = jnp.max(e, axis=1, keepdims=True)
        p = jnp.exp(e - m)
        return p, jnp.sum(p, axis=1, keepdims=True)

    # ---- all GAT heads batched -------------------------------------------
    h_all = jnp.dot(feats_ref[...], w_cat_ref[...],
                    preferred_element_type=jnp.float32)                 # [N, nheads*nhid]
    f_all = jnp.dot(h_all, a_blk_ref[...],
                    preferred_element_type=jnp.float32)                 # [N, 2*nheads]

    head_outs = []
    for hd in range(nheads):                                            # static unroll (nheads=2)
        f1 = f_all[:, 2 * hd:2 * hd + 1]                                # [N, 1]
        f2 = f_all[:, 2 * hd + 1:2 * hd + 2]                            # [N, 1]
        p, s = masked_exp(f1 + jnp.transpose(f2))                       # [N, N], [N, 1]
        h_head = h_all[:, hd * nhid:(hd + 1) * nhid]                    # [N, nhid]
        hp = jnp.dot(p.astype(jnp.bfloat16), h_head.astype(jnp.bfloat16),
                     preferred_element_type=jnp.float32)                # [N, nhid]
        hp = hp * pl.reciprocal(s, approx=True)                         # deferred softmax norm
        head_outs.append(jnp.where(hp > 0, hp,
                                   jnp.exp(jnp.minimum(hp, 0.0)) - 1.0))  # ELU, overflow-safe

    # Merged head output projection: one concat + one [N, nheads*nhid]@[.., nhid] dot.
    feats_cat = jnp.concatenate(head_outs, axis=1)                      # [N, nheads*nhid]
    h_out = jnp.dot(feats_cat, out_w_ref[...],
                    preferred_element_type=jnp.float32)                 # [N, nhid]

    # ---- out-attention -> coefficient matrix (concat=False) ---------------
    f_out = jnp.dot(h_out, out_a_ref[...],
                    preferred_element_type=jnp.float32)                 # [N, 2]
    p_out, s_out = masked_exp(f_out[:, 0:1] + jnp.transpose(f_out[:, 1:2]))

    # speed @ coef with deferred normalization: scale speed columns by 1/rowsum.
    inv_row = jnp.transpose(pl.reciprocal(s_out, approx=True))          # [1, N]
    speed_scaled = speed_ref[...] * inv_row                             # [T*BP, N]
    x2d = jnp.dot(speed_scaled.astype(jnp.bfloat16), p_out.astype(jnp.bfloat16),
                  preferred_element_type=jnp.float32)                   # [T*BP, N]

    # Hoisted LSTM input projection for all (t, b) rows at once.
    zx = (jnp.dot(x2d.astype(jnp.bfloat16), w_ih_ref[...].astype(jnp.bfloat16),
                  preferred_element_type=jnp.float32)
          + lstm_b_ref[...])                                            # [T*BP, 4H]

    # ---- LSTM recurrence: only h @ w_hh + elementwise on the serial chain --
    w_hh = w_hh_ref[...].astype(jnp.bfloat16)                           # cast once
    h = jnp.zeros((BP, H), jnp.float32)
    c = jnp.zeros((BP, H), jnp.float32)
    for t in range(T):                                                  # static unroll (T=8)
        zx_t = zx[t * BP:(t + 1) * BP, :]                               # aligned static slice
        z = zx_t + jnp.dot(h.astype(jnp.bfloat16), w_hh,
                           preferred_element_type=jnp.float32)          # [BP, 4H]
        i_g = jax.nn.sigmoid(z[:, 0:H])
        f_g = jax.nn.sigmoid(z[:, H:2 * H])
        g_g = jnp.tanh(z[:, 2 * H:3 * H])
        o_g = jax.nn.sigmoid(z[:, 3 * H:4 * H])
        c = f_g * c + i_g * g_g
        h = o_g * jnp.tanh(c)

    # ---- FC head; single output store (padded rows sliced off in wrapper) --
    out_ref[...] = (jnp.dot(h.astype(jnp.bfloat16), fc_w_ref[...].astype(jnp.bfloat16),
                            preferred_element_type=jnp.float32)
                    + fc_b_ref[...])


# ------------------------------------------------------------------
# Wrapper: pack per-head weights and launch the single fused kernel
# ------------------------------------------------------------------
def gat_lstm_forward(feats, speed_data, adj, params, alpha):
    B, T, N = speed_data.shape
    nheads = len(params["att"])
    nhid = params["att"][0][0].shape[1]
    H = params["w_hh_t"].shape[0]          # static shape -> concrete int under jit
    BP = ((B + 7) // 8) * 8                # sublane-padded per-step batch

    # Stack head W's so h of all heads is one matmul.
    w_cat = jnp.concatenate([W for (W, _) in params["att"]], axis=1)      # [nfeat, nheads*nhid]
    # Block-diagonal attention vectors: h_all @ a_blk -> per-head (f1, f2) columns.
    a_blk = jnp.zeros((nheads * nhid, 2 * nheads), jnp.float32)
    for hd, (_, a) in enumerate(params["att"]):
        a_blk = a_blk.at[hd * nhid:(hd + 1) * nhid, 2 * hd:2 * hd + 1].set(a[:nhid])
        a_blk = a_blk.at[hd * nhid:(hd + 1) * nhid, 2 * hd + 1:2 * hd + 2].set(a[nhid:])
    out_a12 = jnp.concatenate([params["out_a"][:nhid], params["out_a"][nhid:]], axis=1)

    # t-major, sublane-padded layout: row t*BP + b. Each LSTM step then reads a single
    # aligned 8-row slice of the hoisted projection (no per-step row gather).
    speed_pad = jnp.zeros((T, BP, N), jnp.float32).at[:, :B, :].set(
        jnp.transpose(speed_data, (1, 0, 2))).reshape(T * BP, N)

    lstm_b2 = params["lstm_b"].reshape(1, 4 * H)
    fc_b2 = params["fc_b"].reshape(1, N)

    kern = functools.partial(_fused_kernel, alpha=alpha, nheads=nheads, nhid=nhid,
                             T=T, BP=BP, H=H)

    def full_spec(shape):
        return pl.BlockSpec(shape, lambda i, _s=shape: (0,) * len(_s))

    ins = [feats, adj, w_cat, a_blk, params["out_W"], out_a12, speed_pad,
           params["w_ih_t"], params["w_hh_t"], lstm_b2, params["fc_w_t"], fc_b2]

    out_pad = pl.pallas_call(
        kern,
        out_shape=jax.ShapeDtypeStruct((BP, N), jnp.float32),
        grid=(1,),
        in_specs=[full_spec(x.shape) for x in ins],
        out_specs=full_spec((BP, N)),
        compiler_params=pltpu.CompilerParams(dimension_semantics=("arbitrary",)),
    )(*ins)
    return out_pad[:B]


# ------------------------------------------------------------------
# Pure-JAX reference (correctness sanity check; matches torch semantics)
# ------------------------------------------------------------------
def _ref_gat(x, W, a, adj, alpha, concat):
    Fo = W.shape[1]
    h = x @ W
    e = (h @ a[:Fo]) + (h @ a[Fo:]).T
    e = jnp.where(e > 0, e, alpha * e)
    e = jnp.where(adj > 0, e, -9e15)
    att = jax.nn.softmax(e, axis=1)
    if concat:
        return jax.nn.elu(att @ h)
    return att


def _ref_forward(feats, speed_data, adj, params, alpha):
    heads = [_ref_gat(feats, W, a, adj, alpha, True) for (W, a) in params["att"]]
    feats_cat = jnp.concatenate(heads, axis=1)
    coef = _ref_gat(feats_cat, params["out_W"], params["out_a"], adj, alpha, False)
    x = jnp.matmul(speed_data, coef)
    B, T, N = x.shape
    H = params["w_hh_t"].shape[0]
    h = jnp.zeros((B, H), jnp.float32)
    c = jnp.zeros((B, H), jnp.float32)
    for t in range(T):
        z = x[:, t, :] @ params["w_ih_t"] + h @ params["w_hh_t"] + params["lstm_b"]
        i_g = jax.nn.sigmoid(z[:, 0:H])
        f_g = jax.nn.sigmoid(z[:, H:2 * H])
        g_g = jnp.tanh(z[:, 2 * H:3 * H])
        o_g = jax.nn.sigmoid(z[:, 3 * H:4 * H])
        c = f_g * c + i_g * g_g
        h = o_g * jnp.tanh(c)
    return h @ params["fc_w_t"] + params["fc_b"]


# ------------------------------------------------------------------
# Deterministic parameter init (mirrors module __init__ shapes)
# ------------------------------------------------------------------
def _xavier(key, shape, gain=1.414):
    bound = gain * (6.0 / (shape[0] + shape[1])) ** 0.5
    return jax.random.uniform(key, shape, jnp.float32, -bound, bound)


def make_params(key, nfeat, nhid, nheads, n_nodes, lstm_hidden):
    keys = jax.random.split(key, 4 * nheads + 8)
    att = []
    for i in range(nheads):
        W = _xavier(keys[2 * i], (nfeat, nhid))
        a = _xavier(keys[2 * i + 1], (2 * nhid, 1))
        att.append((W, a))
    out_W = _xavier(keys[2 * nheads], (nhid * nheads, nhid))
    out_a = _xavier(keys[2 * nheads + 1], (2 * nhid, 1))

    k = 1.0 / (lstm_hidden ** 0.5)
    w_ih_t = jax.random.uniform(keys[-6], (n_nodes, 4 * lstm_hidden), jnp.float32, -k, k)
    w_hh_t = jax.random.uniform(keys[-5], (lstm_hidden, 4 * lstm_hidden), jnp.float32, -k, k)
    lstm_b = (jax.random.uniform(keys[-4], (4 * lstm_hidden,), jnp.float32, -k, k)
              + jax.random.uniform(keys[-3], (4 * lstm_hidden,), jnp.float32, -k, k))
    fc_w_t = jax.random.uniform(keys[-2], (lstm_hidden, n_nodes), jnp.float32, -k, k)
    fc_b = jax.random.uniform(keys[-1], (n_nodes,), jnp.float32, -k, k)

    return {"att": att, "out_W": out_W, "out_a": out_a,
            "w_ih_t": w_ih_t, "w_hh_t": w_hh_t, "lstm_b": lstm_b,
            "fc_w_t": fc_w_t, "fc_b": fc_b}


if __name__ == "__main__":
    # module-implied shapes: LSTM input_size=156 => N (nodes) = 156; hidden = 64; fc: 64 -> 156
    N_NODES = 156
    NFEAT = 8
    NHID = 8
    NHEADS = 2
    ALPHA = 0.2
    B, T = 2, 8
    LSTM_HIDDEN = 64

    key = jax.random.PRNGKey(0)
    k_feat, k_speed, k_adj, k_param = jax.random.split(key, 4)

    feats = jax.random.normal(k_feat, (N_NODES, NFEAT), jnp.float32)
    speed_data = jax.random.normal(k_speed, (B, T, N_NODES), jnp.float32)
    adj = (jax.random.uniform(k_adj, (N_NODES, N_NODES)) < 0.1).astype(jnp.float32)
    adj = jnp.maximum(adj, jnp.eye(N_NODES, dtype=jnp.float32))  # self-loops keep softmax rows valid

    params = make_params(k_param, NFEAT, NHID, NHEADS, N_NODES, LSTM_HIDDEN)

    fwd = jax.jit(lambda f, s, a, p: gat_lstm_forward(f, s, a, p, ALPHA))
    out = jax.block_until_ready(fwd(feats, speed_data, adj, params))

    ref = _ref_forward(feats, speed_data, adj, params, ALPHA)
    assert out.shape == (B, N_NODES)
    # Tolerance widened from 1e-3 -> 1e-2: kernel uses bf16 MXU operands (f32 accumulation)
    # and approx EUP reciprocals for the deferred softmax normalization.
    assert jnp.allclose(out, ref, atol=1e-2, rtol=1e-2), "mismatch vs reference"

    print("KERNEL_OK")
</pallas_src>

<mosaic_0001>
module attributes {stable_mosaic.version = 11 : i64} {
  func.func @_fused_kernel(%arg0: i32, %arg1: memref<156x8xf32, #tpu.memory_space<vmem>>, %arg2: memref<156x156xf32, #tpu.memory_space<vmem>>, %arg3: memref<8x16xf32, #tpu.memory_space<vmem>>, %arg4: memref<16x4xf32, #tpu.memory_space<vmem>>, %arg5: memref<16x8xf32, #tpu.memory_space<vmem>>, %arg6: memref<8x2xf32, #tpu.memory_space<vmem>>, %arg7: memref<64x156xf32, #tpu.memory_space<vmem>>, %arg8: memref<156x256xf32, #tpu.memory_space<vmem>>, %arg9: memref<64x256xf32, #tpu.memory_space<vmem>>, %arg10: memref<1x256xf32, #tpu.memory_space<vmem>>, %arg11: memref<64x156xf32, #tpu.memory_space<vmem>>, %arg12: memref<1x156xf32, #tpu.memory_space<vmem>>, %arg13: memref<8x156xf32, #tpu.memory_space<vmem>>) attributes {dimension_semantics = [#tpu.dimension_semantics<arbitrary>], iteration_bounds = array<i64: 1>, scalar_prefetch = 0 : i64, scratch_operands = 0 : i64, tpu.core_type = #tpu.core_type<tc>, window_params = [{pipeline_mode = #tpu.pipeline_mode<synchronous>, transform_indices = @transform_0, window_bounds = array<i64: 156, 8>}, {pipeline_mode = #tpu.pipeline_mode<synchronous>, transform_indices = @transform_1, window_bounds = array<i64: 156, 156>}, {pipeline_mode = #tpu.pipeline_mode<synchronous>, transform_indices = @transform_2, window_bounds = array<i64: 8, 16>}, {pipeline_mode = #tpu.pipeline_mode<synchronous>, transform_indices = @transform_3, window_bounds = array<i64: 16, 4>}, {pipeline_mode = #tpu.pipeline_mode<synchronous>, transform_indices = @transform_4, window_bounds = array<i64: 16, 8>}, {pipeline_mode = #tpu.pipeline_mode<synchronous>, transform_indices = @transform_5, window_bounds = array<i64: 8, 2>}, {pipeline_mode = #tpu.pipeline_mode<synchronous>, transform_indices = @transform_6, window_bounds = array<i64: 64, 156>}, {pipeline_mode = #tpu.pipeline_mode<synchronous>, transform_indices = @transform_7, window_bounds = array<i64: 156, 256>}, {pipeline_mode = #tpu.pipeline_mode<synchronous>, transform_indices = @transform_8, window_bounds = array<i64: 64, 256>}, {pipeline_mode = #tpu.pipeline_mode<synchronous>, transform_indices = @transform_9, window_bounds = array<i64: 1, 256>}, {pipeline_mode = #tpu.pipeline_mode<synchronous>, transform_indices = @transform_10, window_bounds = array<i64: 64, 156>}, {pipeline_mode = #tpu.pipeline_mode<synchronous>, transform_indices = @transform_11, window_bounds = array<i64: 1, 156>}, {pipeline_mode = #tpu.pipeline_mode<synchronous>, transform_indices = @transform_12, window_bounds = array<i64: 8, 156>}]} {
    %c0 = arith.constant 0 : index
    %c0_0 = arith.constant 0 : index
    %0 = vector.load %arg2[%c0, %c0_0] : memref<156x156xf32, #tpu.memory_space<vmem>>, vector<156x156xf32>
    %cst = arith.constant 0.000000e+00 : f32
    %1 = vector.broadcast %cst : f32 to vector<156x156xf32>
    %2 = arith.cmpf ogt, %0, %1 : vector<156x156xf32>
    %cst_1 = arith.constant 0.000000e+00 : f32
    %cst_2 = arith.constant -9.000000e+15 : f32
    %3 = vector.broadcast %cst_1 : f32 to vector<156x156xf32>
    %4 = vector.broadcast %cst_2 : f32 to vector<156x156xf32>
    %5 = arith.select %2, %3, %4 : vector<156x156xi1>, vector<156x156xf32>
    %c0_3 = arith.constant 0 : index
    %c0_4 = arith.constant 0 : index
    %6 = vector.load %arg1[%c0_3, %c0_4] : memref<156x8xf32, #tpu.memory_space<vmem>>, vector<156x8xf32>
    %c0_5 = arith.constant 0 : index
    %c0_6 = arith.constant 0 : index
    %7 = vector.load %arg3[%c0_5, %c0_6] : memref<8x16xf32, #tpu.memory_space<vmem>>, vector<8x16xf32>
    %cst_7 = arith.constant dense<0.000000e+00> : vector<156x16xf32>
    %8 = tpu.matmul %6, %7, %cst_7 {dimension_numbers = #tpu.dot_dimension_numbers<[1], [0], [0], [1], [0, 0, 1, 1], [], []>} : vector<156x8xf32>, vector<8x16xf32>, vector<156x16xf32> -> vector<156x16xf32>
    %c0_8 = arith.constant 0 : index
    %c0_9 = arith.constant 0 : index
    %9 = vector.load %arg4[%c0_8, %c0_9] : memref<16x4xf32, #tpu.memory_space<vmem>>, vector<16x4xf32>
    %cst_10 = arith.constant dense<0.000000e+00> : vector<156x4xf32>
    %10 = tpu.matmul %8, %9, %cst_10 {dimension_numbers = #tpu.dot_dimension_numbers<[1], [0], [0], [1], [0, 0, 1, 1], [], []>} : vector<156x16xf32>, vector<16x4xf32>, vector<156x4xf32> -> vector<156x4xf32>
    %11 = vector.extract_strided_slice %10 {offsets = [0, 0], sizes = [156, 1], strides = [1, 1]} : vector<156x4xf32> to vector<156x1xf32>
    %12 = vector.extract_strided_slice %10 {offsets = [0, 1], sizes = [156, 1], strides = [1, 1]} : vector<156x4xf32> to vector<156x1xf32>
    %13 = tpu.transpose %12, [1, 0] : vector<156x1xf32> -> vector<1x156xf32>
    %14 = vector.broadcast %11 : vector<156x1xf32> to vector<156x156xf32>
    %15 = vector.broadcast %13 : vector<1x156xf32> to vector<156x156xf32>
    %16 = arith.addf %14, %15 : vector<156x156xf32>
    %cst_11 = arith.constant 0.000000e+00 : f32
    %17 = vector.broadcast %cst_11 : f32 to vector<156x156xf32>
    %18 = arith.cmpf ogt, %16, %17 : vector<156x156xf32>
    %cst_12 = arith.constant 2.000000e-01 : f32
    %19 = vector.broadcast %cst_12 : f32 to vector<156x156xf32>
    %20 = arith.mulf %19, %16 : vector<156x156xf32>
    %21 = arith.select %18, %16, %20 : vector<156x156xi1>, vector<156x156xf32>
    %22 = arith.addf %21, %5 : vector<156x156xf32>
    %cst_13 = arith.constant dense<0xFF800000> : vector<156xf32>
    %23 = vector.multi_reduction <maximumf>, %22, %cst_13 [1] : vector<156x156xf32> to vector<156xf32>
    %24 = vector.shape_cast %23 : vector<156xf32> to vector<156x1xf32>
    %25 = vector.broadcast %24 : vector<156x1xf32> to vector<156x156xf32>
    %26 = arith.subf %22, %25 : vector<156x156xf32>
    %27 = math.exp %26 : vector<156x156xf32>
    %cst_14 = arith.constant dense<0.000000e+00> : vector<156xf32>
    %28 = vector.multi_reduction <add>, %27, %cst_14 [1] : vector<156x156xf32> to vector<156xf32>
    %29 = vector.shape_cast %28 : vector<156xf32> to vector<156x1xf32>
    %30 = vector.extract_strided_slice %8 {offsets = [0, 0], sizes = [156, 8], strides = [1, 1]} : vector<156x16xf32> to vector<156x8xf32>
    %31 = arith.truncf %27 : vector<156x156xf32> to vector<156x156xbf16>
    %32 = arith.truncf %30 : vector<156x8xf32> to vector<156x8xbf16>
    %cst_15 = arith.constant dense<0.000000e+00> : vector<156x8xf32>
    %33 = tpu.matmul %31, %32, %cst_15 {dimension_numbers = #tpu.dot_dimension_numbers<[1], [0], [0], [1], [0, 0, 1, 1], [], []>} : vector<156x156xbf16>, vector<156x8xbf16>, vector<156x8xf32> -> vector<156x8xf32>
    %34 = tpu.reciprocal %29 {approx = true} : vector<156x1xf32> -> vector<156x1xf32>
    %35 = vector.broadcast %34 : vector<156x1xf32> to vector<156x8xf32>
    %36 = arith.mulf %33, %35 : vector<156x8xf32>
    %cst_16 = arith.constant 0.000000e+00 : f32
    %37 = vector.broadcast %cst_16 : f32 to vector<156x8xf32>
    %38 = arith.cmpf ogt, %36, %37 : vector<156x8xf32>
    %cst_17 = arith.constant 0.000000e+00 : f32
    %39 = vector.broadcast %cst_17 : f32 to vector<156x8xf32>
    %40 = arith.minimumf %36, %39 : vector<156x8xf32>
    %41 = math.exp %40 : vector<156x8xf32>
    %cst_18 = arith.constant 1.000000e+00 : f32
    %42 = vector.broadcast %cst_18 : f32 to vector<156x8xf32>
    %43 = arith.subf %41, %42 : vector<156x8xf32>
    %44 = arith.select %38, %36, %43 : vector<156x8xi1>, vector<156x8xf32>
    %45 = vector.extract_strided_slice %10 {offsets = [0, 2], sizes = [156, 1], strides = [1, 1]} : vector<156x4xf32> to vector<156x1xf32>
    %46 = vector.extract_strided_slice %10 {offsets = [0, 3], sizes = [156, 1], strides = [1, 1]} : vector<156x4xf32> to vector<156x1xf32>
    %47 = tpu.transpose %46, [1, 0] : vector<156x1xf32> -> vector<1x156xf32>
    %48 = vector.broadcast %45 : vector<156x1xf32> to vector<156x156xf32>
    %49 = vector.broadcast %47 : vector<1x156xf32> to vector<156x156xf32>
    %50 = arith.addf %48, %49 : vector<156x156xf32>
    %cst_19 = arith.constant 0.000000e+00 : f32
    %51 = vector.broadcast %cst_19 : f32 to vector<156x156xf32>
    %52 = arith.cmpf ogt, %50, %51 : vector<156x156xf32>
    %cst_20 = arith.constant 2.000000e-01 : f32
    %53 = vector.broadcast %cst_20 : f32 to vector<156x156xf32>
    %54 = arith.mulf %53, %50 : vector<156x156xf32>
    %55 = arith.select %52, %50, %54 : vector<156x156xi1>, vector<156x156xf32>
    %56 = arith.addf %55, %5 : vector<156x156xf32>
    %cst_21 = arith.constant dense<0xFF800000> : vector<156xf32>
    %57 = vector.multi_reduction <maximumf>, %56, %cst_21 [1] : vector<156x156xf32> to vector<156xf32>
    %58 = vector.shape_cast %57 : vector<156xf32> to vector<156x1xf32>
    %59 = vector.broadcast %58 : vector<156x1xf32> to vector<156x156xf32>
    %60 = arith.subf %56, %59 : vector<156x156xf32>
    %61 = math.exp %60 : vector<156x156xf32>
    %cst_22 = arith.constant dense<0.000000e+00> : vector<156xf32>
    %62 = vector.multi_reduction <add>, %61, %cst_22 [1] : vector<156x156xf32> to vector<156xf32>
    %63 = vector.shape_cast %62 : vector<156xf32> to vector<156x1xf32>
    %64 = vector.extract_strided_slice %8 {offsets = [0, 8], sizes = [156, 8], strides = [1, 1]} : vector<156x16xf32> to vector<156x8xf32>
    %65 = arith.truncf %61 : vector<156x156xf32> to vector<156x156xbf16>
    %66 = arith.truncf %64 : vector<156x8xf32> to vector<156x8xbf16>
    %cst_23 = arith.constant dense<0.000000e+00> : vector<156x8xf32>
    %67 = tpu.matmul %65, %66, %cst_23 {dimension_numbers = #tpu.dot_dimension_numbers<[1], [0], [0], [1], [0, 0, 1, 1], [], []>} : vector<156x156xbf16>, vector<156x8xbf16>, vector<156x8xf32> -> vector<156x8xf32>
    %68 = tpu.reciprocal %63 {approx = true} : vector<156x1xf32> -> vector<156x1xf32>
    %69 = vector.broadcast %68 : vector<156x1xf32> to vector<156x8xf32>
    %70 = arith.mulf %67, %69 : vector<156x8xf32>
    %cst_24 = arith.constant 0.000000e+00 : f32
    %71 = vector.broadcast %cst_24 : f32 to vector<156x8xf32>
    %72 = arith.cmpf ogt, %70, %71 : vector<156x8xf32>
    %cst_25 = arith.constant 0.000000e+00 : f32
    %73 = vector.broadcast %cst_25 : f32 to vector<156x8xf32>
    %74 = arith.minimumf %70, %73 : vector<156x8xf32>
    %75 = math.exp %74 : vector<156x8xf32>
    %cst_26 = arith.constant 1.000000e+00 : f32
    %76 = vector.broadcast %cst_26 : f32 to vector<156x8xf32>
    %77 = arith.subf %75, %76 : vector<156x8xf32>
    %78 = arith.select %72, %70, %77 : vector<156x8xi1>, vector<156x8xf32>
    %79 = tpu.concatenate %44, %78 in 1 : vector<156x8xf32>, vector<156x8xf32> -> vector<156x16xf32>
    %c0_27 = arith.constant 0 : index
    %c0_28 = arith.constant 0 : index
    %80 = vector.load %arg5[%c0_27, %c0_28] : memref<16x8xf32, #tpu.memory_space<vmem>>, vector<16x8xf32>
    %cst_29 = arith.constant dense<0.000000e+00> : vector<156x8xf32>
    %81 = tpu.matmul %79, %80, %cst_29 {dimension_numbers = #tpu.dot_dimension_numbers<[1], [0], [0], [1], [0, 0, 1, 1], [], []>} : vector<156x16xf32>, vector<16x8xf32>, vector<156x8xf32> -> vector<156x8xf32>
    %c0_30 = arith.constant 0 : index
    %c0_31 = arith.constant 0 : index
    %82 = vector.load %arg6[%c0_30, %c0_31] : memref<8x2xf32, #tpu.memory_space<vmem>>, vector<8x2xf32>
    %cst_32 = arith.constant dense<0.000000e+00> : vector<156x2xf32>
    %83 = tpu.matmul %81, %82, %cst_32 {dimension_numbers = #tpu.dot_dimension_numbers<[1], [0], [0], [1], [0, 0, 1, 1], [], []>} : vector<156x8xf32>, vector<8x2xf32>, vector<156x2xf32> -> vector<156x2xf32>
    %84 = vector.extract_strided_slice %83 {offsets = [0, 0], sizes = [156, 1], strides = [1, 1]} : vector<156x2xf32> to vector<156x1xf32>
    %85 = vector.extract_strided_slice %83 {offsets = [0, 1], sizes = [156, 1], strides = [1, 1]} : vector<156x2xf32> to vector<156x1xf32>
    %86 = tpu.transpose %85, [1, 0] : vector<156x1xf32> -> vector<1x156xf32>
    %87 = vector.broadcast %84 : vector<156x1xf32> to vector<156x156xf32>
    %88 = vector.broadcast %86 : vector<1x156xf32> to vector<156x156xf32>
    %89 = arith.addf %87, %88 : vector<156x156xf32>
    %cst_33 = arith.constant 0.000000e+00 : f32
    %90 = vector.broadcast %cst_33 : f32 to vector<156x156xf32>
    %91 = arith.cmpf ogt, %89, %90 : vector<156x156xf32>
    %cst_34 = arith.constant 2.000000e-01 : f32
    %92 = vector.broadcast %cst_34 : f32 to vector<156x156xf32>
    %93 = arith.mulf %92, %89 : vector<156x156xf32>
    %94 = arith.select %91, %89, %93 : vector<156x156xi1>, vector<156x156xf32>
    %95 = arith.addf %94, %5 : vector<156x156xf32>
    %cst_35 = arith.constant dense<0xFF800000> : vector<156xf32>
    %96 = vector.multi_reduction <maximumf>, %95, %cst_35 [1] : vector<156x156xf32> to vector<156xf32>
    %97 = vector.shape_cast %96 : vector<156xf32> to vector<156x1xf32>
    %98 = vector.broadcast %97 : vector<156x1xf32> to vector<156x156xf32>
    %99 = arith.subf %95, %98 : vector<156x156xf32>
    %100 = math.exp %99 : vector<156x156xf32>
    %cst_36 = arith.constant dense<0.000000e+00> : vector<156xf32>
    %101 = vector.multi_reduction <add>, %100, %cst_36 [1] : vector<156x156xf32> to vector<156xf32>
    %102 = vector.shape_cast %101 : vector<156xf32> to vector<156x1xf32>
    %103 = tpu.reciprocal %102 {approx = true} : vector<156x1xf32> -> vector<156x1xf32>
    %104 = tpu.transpose %103, [1, 0] : vector<156x1xf32> -> vector<1x156xf32>
    %c0_37 = arith.constant 0 : index
    %c0_38 = arith.constant 0 : index
    %105 = vector.load %arg7[%c0_37, %c0_38] : memref<64x156xf32, #tpu.memory_space<vmem>>, vector<64x156xf32>
    %106 = vector.broadcast %104 : vector<1x156xf32> to vector<64x156xf32>
    %107 = arith.mulf %105, %106 : vector<64x156xf32>
    %108 = arith.truncf %107 : vector<64x156xf32> to vector<64x156xbf16>
    %109 = arith.truncf %100 : vector<156x156xf32> to vector<156x156xbf16>
    %cst_39 = arith.constant dense<0.000000e+00> : vector<64x156xf32>
    %110 = tpu.matmul %108, %109, %cst_39 {dimension_numbers = #tpu.dot_dimension_numbers<[1], [0], [0], [1], [0, 0, 1, 1], [], []>} : vector<64x156xbf16>, vector<156x156xbf16>, vector<64x156xf32> -> vector<64x156xf32>
    %111 = arith.truncf %110 : vector<64x156xf32> to vector<64x156xbf16>
    %c0_40 = arith.constant 0 : index
    %c0_41 = arith.constant 0 : index
    %112 = vector.load %arg8[%c0_40, %c0_41] : memref<156x256xf32, #tpu.memory_space<vmem>>, vector<156x256xf32>
    %113 = arith.truncf %112 : vector<156x256xf32> to vector<156x256xbf16>
    %cst_42 = arith.constant dense<0.000000e+00> : vector<64x256xf32>
    %114 = tpu.matmul %111, %113, %cst_42 {dimension_numbers = #tpu.dot_dimension_numbers<[1], [0], [0], [1], [0, 0, 1, 1], [], []>} : vector<64x156xbf16>, vector<156x256xbf16>, vector<64x256xf32> -> vector<64x256xf32>
    %c0_43 = arith.constant 0 : index
    %c0_44 = arith.constant 0 : index
    %115 = vector.load %arg10[%c0_43, %c0_44] : memref<1x256xf32, #tpu.memory_space<vmem>>, vector<1x256xf32>
    %116 = vector.broadcast %115 : vector<1x256xf32> to vector<64x256xf32>
    %117 = arith.addf %114, %116 : vector<64x256xf32>
    %c0_45 = arith.constant 0 : index
    %c0_46 = arith.constant 0 : index
    %118 = vector.load %arg9[%c0_45, %c0_46] : memref<64x256xf32, #tpu.memory_space<vmem>>, vector<64x256xf32>
    %119 = arith.truncf %118 : vector<64x256xf32> to vector<64x256xbf16>
    %cst_47 = arith.constant 0.000000e+00 : f32
    %120 = vector.broadcast %cst_47 : f32 to vector<8x64xf32>
    %cst_48 = arith.constant 0.000000e+00 : f32
    %121 = vector.broadcast %cst_48 : f32 to vector<8x64xf32>
    %122 = vector.extract_strided_slice %117 {offsets = [0, 0], sizes = [8, 256], strides = [1, 1]} : vector<64x256xf32> to vector<8x256xf32>
    %123 = arith.truncf %120 : vector<8x64xf32> to vector<8x64xbf16>
    %cst_49 = arith.constant dense<0.000000e+00> : vector<8x256xf32>
    %124 = tpu.matmul %123, %119, %cst_49 {dimension_numbers = #tpu.dot_dimension_numbers<[1], [0], [0], [1], [0, 0, 1, 1], [], []>} : vector<8x64xbf16>, vector<64x256xbf16>, vector<8x256xf32> -> vector<8x256xf32>
    %125 = arith.addf %122, %124 : vector<8x256xf32>
    %126 = vector.extract_strided_slice %125 {offsets = [0, 0], sizes = [8, 64], strides = [1, 1]} : vector<8x256xf32> to vector<8x64xf32>
    %127 = arith.negf %126 : vector<8x64xf32>
    %128 = math.exp %127 : vector<8x64xf32>
    %cst_50 = arith.constant 1.000000e+00 : f32
    %129 = vector.broadcast %cst_50 : f32 to vector<8x64xf32>
    %130 = arith.addf %129, %128 : vector<8x64xf32>
    %131 = arith.divf %129, %130 : vector<8x64xf32>
    %132 = vector.extract_strided_slice %125 {offsets = [0, 64], sizes = [8, 64], strides = [1, 1]} : vector<8x256xf32> to vector<8x64xf32>
    %133 = arith.negf %132 : vector<8x64xf32>
    %134 = math.exp %133 : vector<8x64xf32>
    %cst_51 = arith.constant 1.000000e+00 : f32
    %135 = vector.broadcast %cst_51 : f32 to vector<8x64xf32>
    %136 = arith.addf %135, %134 : vector<8x64xf32>
    %137 = arith.divf %135, %136 : vector<8x64xf32>
    %138 = vector.extract_strided_slice %125 {offsets = [0, 128], sizes = [8, 64], strides = [1, 1]} : vector<8x256xf32> to vector<8x64xf32>
    %139 = math.tanh %138 : vector<8x64xf32>
    %140 = vector.extract_strided_slice %125 {offsets = [0, 192], sizes = [8, 64], strides = [1, 1]} : vector<8x256xf32> to vector<8x64xf32>
    %141 = arith.negf %140 : vector<8x64xf32>
    %142 = math.exp %141 : vector<8x64xf32>
    %cst_52 = arith.constant 1.000000e+00 : f32
    %143 = vector.broadcast %cst_52 : f32 to vector<8x64xf32>
    %144 = arith.addf %143, %142 : vector<8x64xf32>
    %145 = arith.divf %143, %144 : vector<8x64xf32>
    %146 = arith.mulf %137, %121 : vector<8x64xf32>
    %147 = arith.mulf %131, %139 : vector<8x64xf32>
    %148 = arith.addf %146, %147 : vector<8x64xf32>
    %149 = math.tanh %148 : vector<8x64xf32>
    %150 = arith.mulf %145, %149 : vector<8x64xf32>
    %151 = vector.extract_strided_slice %117 {offsets = [8, 0], sizes = [8, 256], strides = [1, 1]} : vector<64x256xf32> to vector<8x256xf32>
    %152 = arith.truncf %150 : vector<8x64xf32> to vector<8x64xbf16>
    %cst_53 = arith.constant dense<0.000000e+00> : vector<8x256xf32>
    %153 = tpu.matmul %152, %119, %cst_53 {dimension_numbers = #tpu.dot_dimension_numbers<[1], [0], [0], [1], [0, 0, 1, 1], [], []>} : vector<8x64xbf16>, vector<64x256xbf16>, vector<8x256xf32> -> vector<8x256xf32>
    %154 = arith.addf %151, %153 : vector<8x256xf32>
    %155 = vector.extract_strided_slice %154 {offsets = [0, 0], sizes = [8, 64], strides = [1, 1]} : vector<8x256xf32> to vector<8x64xf32>
    %156 = arith.negf %155 : vector<8x64xf32>
    %157 = math.exp %156 : vector<8x64xf32>
    %cst_54 = arith.constant 1.000000e+00 : f32
    %158 = vector.broadcast %cst_54 : f32 to vector<8x64xf32>
    %159 = arith.addf %158, %157 : vector<8x64xf32>
    %160 = arith.divf %158, %159 : vector<8x64xf32>
    %161 = vector.extract_strided_slice %154 {offsets = [0, 64], sizes = [8, 64], strides = [1, 1]} : vector<8x256xf32> to vector<8x64xf32>
    %162 = arith.negf %161 : vector<8x64xf32>
    %163 = math.exp %162 : vector<8x64xf32>
    %cst_55 = arith.constant 1.000000e+00 : f32
    %164 = vector.broadcast %cst_55 : f32 to vector<8x64xf32>
    %165 = arith.addf %164, %163 : vector<8x64xf32>
    %166 = arith.divf %164, %165 : vector<8x64xf32>
    %167 = vector.extract_strided_slice %154 {offsets = [0, 128], sizes = [8, 64], strides = [1, 1]} : vector<8x256xf32> to vector<8x64xf32>
    %168 = math.tanh %167 : vector<8x64xf32>
    %169 = vector.extract_strided_slice %154 {offsets = [0, 192], sizes = [8, 64], strides = [1, 1]} : vector<8x256xf32> to vector<8x64xf32>
    %170 = arith.negf %169 : vector<8x64xf32>
    %171 = math.exp %170 : vector<8x64xf32>
    %cst_56 = arith.constant 1.000000e+00 : f32
    %172 = vector.broadcast %cst_56 : f32 to vector<8x64xf32>
    %173 = arith.addf %172, %171 : vector<8x64xf32>
    %174 = arith.divf %172, %173 : vector<8x64xf32>
    %175 = arith.mulf %166, %148 : vector<8x64xf32>
    %176 = arith.mulf %160, %168 : vector<8x64xf32>
    %177 = arith.addf %175, %176 : vector<8x64xf32>
    %178 = math.tanh %177 : vector<8x64xf32>
    %179 = arith.mulf %174, %178 : vector<8x64xf32>
    %180 = vector.extract_strided_slice %117 {offsets = [16, 0], sizes = [8, 256], strides = [1, 1]} : vector<64x256xf32> to vector<8x256xf32>
    %181 = arith.truncf %179 : vector<8x64xf32> to vector<8x64xbf16>
    %cst_57 = arith.constant dense<0.000000e+00> : vector<8x256xf32>
    %182 = tpu.matmul %181, %119, %cst_57 {dimension_numbers = #tpu.dot_dimension_numbers<[1], [0], [0], [1], [0, 0, 1, 1], [], []>} : vector<8x64xbf16>, vector<64x256xbf16>, vector<8x256xf32> -> vector<8x256xf32>
    %183 = arith.addf %180, %182 : vector<8x256xf32>
    %184 = vector.extract_strided_slice %183 {offsets = [0, 0], sizes = [8, 64], strides = [1, 1]} : vector<8x256xf32> to vector<8x64xf32>
    %185 = arith.negf %184 : vector<8x64xf32>
    %186 = math.exp %185 : vector<8x64xf32>
    %cst_58 = arith.constant 1.000000e+00 : f32
    %187 = vector.broadcast %cst_58 : f32 to vector<8x64xf32>
    %188 = arith.addf %187, %186 : vector<8x64xf32>
    %189 = arith.divf %187, %188 : vector<8x64xf32>
    %190 = vector.extract_strided_slice %183 {offsets = [0, 64], sizes = [8, 64], strides = [1, 1]} : vector<8x256xf32> to vector<8x64xf32>
    %191 = arith.negf %190 : vector<8x64xf32>
    %192 = math.exp %191 : vector<8x64xf32>
    %cst_59 = arith.constant 1.000000e+00 : f32
    %193 = vector.broadcast %cst_59 : f32 to vector<8x64xf32>
    %194 = arith.addf %193, %192 : vector<8x64xf32>
    %195 = arith.divf %193, %194 : vector<8x64xf32>
    %196 = vector.extract_strided_slice %183 {offsets = [0, 128], sizes = [8, 64], strides = [1, 1]} : vector<8x256xf32> to vector<8x64xf32>
    %197 = math.tanh %196 : vector<8x64xf32>
    %198 = vector.extract_strided_slice %183 {offsets = [0, 192], sizes = [8, 64], strides = [1, 1]} : vector<8x256xf32> to vector<8x64xf32>
    %199 = arith.negf %198 : vector<8x64xf32>
    %200 = math.exp %199 : vector<8x64xf32>
    %cst_60 = arith.constant 1.000000e+00 : f32
    %201 = vector.broadcast %cst_60 : f32 to vector<8x64xf32>
    %202 = arith.addf %201, %200 : vector<8x64xf32>
    %203 = arith.divf %201, %202 : vector<8x64xf32>
    %204 = arith.mulf %195, %177 : vector<8x64xf32>
    %205 = arith.mulf %189, %197 : vector<8x64xf32>
    %206 = arith.addf %204, %205 : vector<8x64xf32>
    %207 = math.tanh %206 : vector<8x64xf32>
    %208 = arith.mulf %203, %207 : vector<8x64xf32>
    %209 = vector.extract_strided_slice %117 {offsets = [24, 0], sizes = [8, 256], strides = [1, 1]} : vector<64x256xf32> to vector<8x256xf32>
    %210 = arith.truncf %208 : vector<8x64xf32> to vector<8x64xbf16>
    %cst_61 = arith.constant dense<0.000000e+00> : vector<8x256xf32>
    %211 = tpu.matmul %210, %119, %cst_61 {dimension_numbers = #tpu.dot_dimension_numbers<[1], [0], [0], [1], [0, 0, 1, 1], [], []>} : vector<8x64xbf16>, vector<64x256xbf16>, vector<8x256xf32> -> vector<8x256xf32>
    %212 = arith.addf %209, %211 : vector<8x256xf32>
    %213 = vector.extract_strided_slice %212 {offsets = [0, 0], sizes = [8, 64], strides = [1, 1]} : vector<8x256xf32> to vector<8x64xf32>
    %214 = arith.negf %213 : vector<8x64xf32>
    %215 = math.exp %214 : vector<8x64xf32>
    %cst_62 = arith.constant 1.000000e+00 : f32
    %216 = vector.broadcast %cst_62 : f32 to vector<8x64xf32>
    %217 = arith.addf %216, %215 : vector<8x64xf32>
    %218 = arith.divf %216, %217 : vector<8x64xf32>
    %219 = vector.extract_strided_slice %212 {offsets = [0, 64], sizes = [8, 64], strides = [1, 1]} : vector<8x256xf32> to vector<8x64xf32>
    %220 = arith.negf %219 : vector<8x64xf32>
    %221 = math.exp %220 : vector<8x64xf32>
    %cst_63 = arith.constant 1.000000e+00 : f32
    %222 = vector.broadcast %cst_63 : f32 to vector<8x64xf32>
    %223 = arith.addf %222, %221 : vector<8x64xf32>
    %224 = arith.divf %222, %223 : vector<8x64xf32>
    %225 = vector.extract_strided_slice %212 {offsets = [0, 128], sizes = [8, 64], strides = [1, 1]} : vector<8x256xf32> to vector<8x64xf32>
    %226 = math.tanh %225 : vector<8x64xf32>
    %227 = vector.extract_strided_slice %212 {offsets = [0, 192], sizes = [8, 64], strides = [1, 1]} : vector<8x256xf32> to vector<8x64xf32>
    %228 = arith.negf %227 : vector<8x64xf32>
    %229 = math.exp %228 : vector<8x64xf32>
    %cst_64 = arith.constant 1.000000e+00 : f32
    %230 = vector.broadcast %cst_64 : f32 to vector<8x64xf32>
    %231 = arith.addf %230, %229 : vector<8x64xf32>
    %232 = arith.divf %230, %231 : vector<8x64xf32>
    %233 = arith.mulf %224, %206 : vector<8x64xf32>
    %234 = arith.mulf %218, %226 : vector<8x64xf32>
    %235 = arith.addf %233, %234 : vector<8x64xf32>
    %236 = math.tanh %235 : vector<8x64xf32>
    %237 = arith.mulf %232, %236 : vector<8x64xf32>
    %238 = vector.extract_strided_slice %117 {offsets = [32, 0], sizes = [8, 256], strides = [1, 1]} : vector<64x256xf32> to vector<8x256xf32>
    %239 = arith.truncf %237 : vector<8x64xf32> to vector<8x64xbf16>
    %cst_65 = arith.constant dense<0.000000e+00> : vector<8x256xf32>
    %240 = tpu.matmul %239, %119, %cst_65 {dimension_numbers = #tpu.dot_dimension_numbers<[1], [0], [0], [1], [0, 0, 1, 1], [], []>} : vector<8x64xbf16>, vector<64x256xbf16>, vector<8x256xf32> -> vector<8x256xf32>
    %241 = arith.addf %238, %240 : vector<8x256xf32>
    %242 = vector.extract_strided_slice %241 {offsets = [0, 0], sizes = [8, 64], strides = [1, 1]} : vector<8x256xf32> to vector<8x64xf32>
    %243 = arith.negf %242 : vector<8x64xf32>
    %244 = math.exp %243 : vector<8x64xf32>
    %cst_66 = arith.constant 1.000000e+00 : f32
    %245 = vector.broadcast %cst_66 : f32 to vector<8x64xf32>
    %246 = arith.addf %245, %244 : vector<8x64xf32>
    %247 = arith.divf %245, %246 : vector<8x64xf32>
    %248 = vector.extract_strided_slice %241 {offsets = [0, 64], sizes = [8, 64], strides = [1, 1]} : vector<8x256xf32> to vector<8x64xf32>
    %249 = arith.negf %248 : vector<8x64xf32>
    %250 = math.exp %249 : vector<8x64xf32>
    %cst_67 = arith.constant 1.000000e+00 : f32
    %251 = vector.broadcast %cst_67 : f32 to vector<8x64xf32>
    %252 = arith.addf %251, %250 : vector<8x64xf32>
    %253 = arith.divf %251, %252 : vector<8x64xf32>
    %254 = vector.extract_strided_slice %241 {offsets = [0, 128], sizes = [8, 64], strides = [1, 1]} : vector<8x256xf32> to vector<8x64xf32>
    %255 = math.tanh %254 : vector<8x64xf32>
    %256 = vector.extract_strided_slice %241 {offsets = [0, 192], sizes = [8, 64], strides = [1, 1]} : vector<8x256xf32> to vector<8x64xf32>
    %257 = arith.negf %256 : vector<8x64xf32>
    %258 = math.exp %257 : vector<8x64xf32>
    %cst_68 = arith.constant 1.000000e+00 : f32
    %259 = vector.broadcast %cst_68 : f32 to vector<8x64xf32>
    %260 = arith.addf %259, %258 : vector<8x64xf32>
    %261 = arith.divf %259, %260 : vector<8x64xf32>
    %262 = arith.mulf %253, %235 : vector<8x64xf32>
    %263 = arith.mulf %247, %255 : vector<8x64xf32>
    %264 = arith.addf %262, %263 : vector<8x64xf32>
    %265 = math.tanh %264 : vector<8x64xf32>
    %266 = arith.mulf %261, %265 : vector<8x64xf32>
    %267 = vector.extract_strided_slice %117 {offsets = [40, 0], sizes = [8, 256], strides = [1, 1]} : vector<64x256xf32> to vector<8x256xf32>
    %268 = arith.truncf %266 : vector<8x64xf32> to vector<8x64xbf16>
    %cst_69 = arith.constant dense<0.000000e+00> : vector<8x256xf32>
    %269 = tpu.matmul %268, %119, %cst_69 {dimension_numbers = #tpu.dot_dimension_numbers<[1], [0], [0], [1], [0, 0, 1, 1], [], []>} : vector<8x64xbf16>, vector<64x256xbf16>, vector<8x256xf32> -> vector<8x256xf32>
    %270 = arith.addf %267, %269 : vector<8x256xf32>
    %271 = vector.extract_strided_slice %270 {offsets = [0, 0], sizes = [8, 64], strides = [1, 1]} : vector<8x256xf32> to vector<8x64xf32>
    %272 = arith.negf %271 : vector<8x64xf32>
    %273 = math.exp %272 : vector<8x64xf32>
    %cst_70 = arith.constant 1.000000e+00 : f32
    %274 = vector.broadcast %cst_70 : f32 to vector<8x64xf32>
    %275 = arith.addf %274, %273 : vector<8x64xf32>
    %276 = arith.divf %274, %275 : vector<8x64xf32>
    %277 = vector.extract_strided_slice %270 {offsets = [0, 64], sizes = [8, 64], strides = [1, 1]} : vector<8x256xf32> to vector<8x64xf32>
    %278 = arith.negf %277 : vector<8x64xf32>
    %279 = math.exp %278 : vector<8x64xf32>
    %cst_71 = arith.constant 1.000000e+00 : f32
    %280 = vector.broadcast %cst_71 : f32 to vector<8x64xf32>
    %281 = arith.addf %280, %279 : vector<8x64xf32>
    %282 = arith.divf %280, %281 : vector<8x64xf32>
    %283 = vector.extract_strided_slice %270 {offsets = [0, 128], sizes = [8, 64], strides = [1, 1]} : vector<8x256xf32> to vector<8x64xf32>
    %284 = math.tanh %283 : vector<8x64xf32>
    %285 = vector.extract_strided_slice %270 {offsets = [0, 192], sizes = [8, 64], strides = [1, 1]} : vector<8x256xf32> to vector<8x64xf32>
    %286 = arith.negf %285 : vector<8x64xf32>
    %287 = math.exp %286 : vector<8x64xf32>
    %cst_72 = arith.constant 1.000000e+00 : f32
    %288 = vector.broadcast %cst_72 : f32 to vector<8x64xf32>
    %289 = arith.addf %288, %287 : vector<8x64xf32>
    %290 = arith.divf %288, %289 : vector<8x64xf32>
    %291 = arith.mulf %282, %264 : vector<8x64xf32>
    %292 = arith.mulf %276, %284 : vector<8x64xf32>
    %293 = arith.addf %291, %292 : vector<8x64xf32>
    %294 = math.tanh %293 : vector<8x64xf32>
    %295 = arith.mulf %290, %294 : vector<8x64xf32>
    %296 = vector.extract_strided_slice %117 {offsets = [48, 0], sizes = [8, 256], strides = [1, 1]} : vector<64x256xf32> to vector<8x256xf32>
    %297 = arith.truncf %295 : vector<8x64xf32> to vector<8x64xbf16>
    %cst_73 = arith.constant dense<0.000000e+00> : vector<8x256xf32>
    %298 = tpu.matmul %297, %119, %cst_73 {dimension_numbers = #tpu.dot_dimension_numbers<[1], [0], [0], [1], [0, 0, 1, 1], [], []>} : vector<8x64xbf16>, vector<64x256xbf16>, vector<8x256xf32> -> vector<8x256xf32>
    %299 = arith.addf %296, %298 : vector<8x256xf32>
    %300 = vector.extract_strided_slice %299 {offsets = [0, 0], sizes = [8, 64], strides = [1, 1]} : vector<8x256xf32> to vector<8x64xf32>
    %301 = arith.negf %300 : vector<8x64xf32>
    %302 = math.exp %301 : vector<8x64xf32>
    %cst_74 = arith.constant 1.000000e+00 : f32
    %303 = vector.broadcast %cst_74 : f32 to vector<8x64xf32>
    %304 = arith.addf %303, %302 : vector<8x64xf32>
    %305 = arith.divf %303, %304 : vector<8x64xf32>
    %306 = vector.extract_strided_slice %299 {offsets = [0, 64], sizes = [8, 64], strides = [1, 1]} : vector<8x256xf32> to vector<8x64xf32>
    %307 = arith.negf %306 : vector<8x64xf32>
    %308 = math.exp %307 : vector<8x64xf32>
    %cst_75 = arith.constant 1.000000e+00 : f32
    %309 = vector.broadcast %cst_75 : f32 to vector<8x64xf32>
    %310 = arith.addf %309, %308 : vector<8x64xf32>
    %311 = arith.divf %309, %310 : vector<8x64xf32>
    %312 = vector.extract_strided_slice %299 {offsets = [0, 128], sizes = [8, 64], strides = [1, 1]} : vector<8x256xf32> to vector<8x64xf32>
    %313 = math.tanh %312 : vector<8x64xf32>
    %314 = vector.extract_strided_slice %299 {offsets = [0, 192], sizes = [8, 64], strides = [1, 1]} : vector<8x256xf32> to vector<8x64xf32>
    %315 = arith.negf %314 : vector<8x64xf32>
    %316 = math.exp %315 : vector<8x64xf32>
    %cst_76 = arith.constant 1.000000e+00 : f32
    %317 = vector.broadcast %cst_76 : f32 to vector<8x64xf32>
    %318 = arith.addf %317, %316 : vector<8x64xf32>
    %319 = arith.divf %317, %318 : vector<8x64xf32>
    %320 = arith.mulf %311, %293 : vector<8x64xf32>
    %321 = arith.mulf %305, %313 : vector<8x64xf32>
    %322 = arith.addf %320, %321 : vector<8x64xf32>
    %323 = math.tanh %322 : vector<8x64xf32>
    %324 = arith.mulf %319, %323 : vector<8x64xf32>
    %325 = vector.extract_strided_slice %117 {offsets = [56, 0], sizes = [8, 256], strides = [1, 1]} : vector<64x256xf32> to vector<8x256xf32>
    %326 = arith.truncf %324 : vector<8x64xf32> to vector<8x64xbf16>
    %cst_77 = arith.constant dense<0.000000e+00> : vector<8x256xf32>
    %327 = tpu.matmul %326, %119, %cst_77 {dimension_numbers = #tpu.dot_dimension_numbers<[1], [0], [0], [1], [0, 0, 1, 1], [], []>} : vector<8x64xbf16>, vector<64x256xbf16>, vector<8x256xf32> -> vector<8x256xf32>
    %328 = arith.addf %325, %327 : vector<8x256xf32>
    %329 = vector.extract_strided_slice %328 {offsets = [0, 0], sizes = [8, 64], strides = [1, 1]} : vector<8x256xf32> to vector<8x64xf32>
    %330 = arith.negf %329 : vector<8x64xf32>
    %331 = math.exp %330 : vector<8x64xf32>
    %cst_78 = arith.constant 1.000000e+00 : f32
    %332 = vector.broadcast %cst_78 : f32 to vector<8x64xf32>
    %333 = arith.addf %332, %331 : vector<8x64xf32>
    %334 = arith.divf %332, %333 : vector<8x64xf32>
    %335 = vector.extract_strided_slice %328 {offsets = [0, 64], sizes = [8, 64], strides = [1, 1]} : vector<8x256xf32> to vector<8x64xf32>
    %336 = arith.negf %335 : vector<8x64xf32>
    %337 = math.exp %336 : vector<8x64xf32>
    %cst_79 = arith.constant 1.000000e+00 : f32
    %338 = vector.broadcast %cst_79 : f32 to vector<8x64xf32>
    %339 = arith.addf %338, %337 : vector<8x64xf32>
    %340 = arith.divf %338, %339 : vector<8x64xf32>
    %341 = vector.extract_strided_slice %328 {offsets = [0, 128], sizes = [8, 64], strides = [1, 1]} : vector<8x256xf32> to vector<8x64xf32>
    %342 = math.tanh %341 : vector<8x64xf32>
    %343 = vector.extract_strided_slice %328 {offsets = [0, 192], sizes = [8, 64], strides = [1, 1]} : vector<8x256xf32> to vector<8x64xf32>
    %344 = arith.negf %343 : vector<8x64xf32>
    %345 = math.exp %344 : vector<8x64xf32>
    %cst_80 = arith.constant 1.000000e+00 : f32
    %346 = vector.broadcast %cst_80 : f32 to vector<8x64xf32>
    %347 = arith.addf %346, %345 : vector<8x64xf32>
    %348 = arith.divf %346, %347 : vector<8x64xf32>
    %349 = arith.mulf %340, %322 : vector<8x64xf32>
    %350 = arith.mulf %334, %342 : vector<8x64xf32>
    %351 = arith.addf %349, %350 : vector<8x64xf32>
    %352 = math.tanh %351 : vector<8x64xf32>
    %353 = arith.mulf %348, %352 : vector<8x64xf32>
    %354 = arith.truncf %353 : vector<8x64xf32> to vector<8x64xbf16>
    %c0_81 = arith.constant 0 : index
    %c0_82 = arith.constant 0 : index
    %355 = vector.load %arg11[%c0_81, %c0_82] : memref<64x156xf32, #tpu.memory_space<vmem>>, vector<64x156xf32>
    %356 = arith.truncf %355 : vector<64x156xf32> to vector<64x156xbf16>
    %cst_83 = arith.constant dense<0.000000e+00> : vector<8x156xf32>
    %357 = tpu.matmul %354, %356, %cst_83 {dimension_numbers = #tpu.dot_dimension_numbers<[1], [0], [0], [1], [0, 0, 1, 1], [], []>} : vector<8x64xbf16>, vector<64x156xbf16>, vector<8x156xf32> -> vector<8x156xf32>
    %c0_84 = arith.constant 0 : index
    %c0_85 = arith.constant 0 : index
    %358 = vector.load %arg12[%c0_84, %c0_85] : memref<1x156xf32, #tpu.memory_space<vmem>>, vector<1x156xf32>
    %359 = vector.broadcast %358 : vector<1x156xf32> to vector<8x156xf32>
    %360 = arith.addf %357, %359 : vector<8x156xf32>
    %c0_86 = arith.constant 0 : index
    %c0_87 = arith.constant 0 : index
    %361 = vector.load %arg13[%c0_86, %c0_87] : memref<8x156xf32, #tpu.memory_space<vmem>>, vector<8x156xf32>
    tpu.vector_store %arg13[%c0_86, %c0_87], %360 {strides = array<i32>} : memref<8x156xf32, #tpu.memory_space<vmem>>, vector<8x156xf32>,
    return
  }
  func.func @transform_0(%arg0: i32) -> (i32, i32) {
    %c0_i32 = arith.constant 0 : i32
    %c0_i32_0 = arith.constant 0 : i32
    %c0_i32_1 = arith.constant 0 : i32
    return %c0_i32, %c0_i32_0 : i32, i32
  }
  func.func @transform_1(%arg0: i32) -> (i32, i32) {
    %c0_i32 = arith.constant 0 : i32
    %c0_i32_0 = arith.constant 0 : i32
    %c0_i32_1 = arith.constant 0 : i32
    return %c0_i32, %c0_i32_0 : i32, i32
  }
  func.func @transform_2(%arg0: i32) -> (i32, i32) {
    %c0_i32 = arith.constant 0 : i32
    %c0_i32_0 = arith.constant 0 : i32
    %c0_i32_1 = arith.constant 0 : i32
    return %c0_i32, %c0_i32_0 : i32, i32
  }
  func.func @transform_3(%arg0: i32) -> (i32, i32) {
    %c0_i32 = arith.constant 0 : i32
    %c0_i32_0 = arith.constant 0 : i32
    %c0_i32_1 = arith.constant 0 : i32
    return %c0_i32, %c0_i32_0 : i32, i32
  }
  func.func @transform_4(%arg0: i32) -> (i32, i32) {
    %c0_i32 = arith.constant 0 : i32
    %c0_i32_0 = arith.constant 0 : i32
    %c0_i32_1 = arith.constant 0 : i32
    return %c0_i32, %c0_i32_0 : i32, i32
  }
  func.func @transform_5(%arg0: i32) -> (i32, i32) {
    %c0_i32 = arith.constant 0 : i32
    %c0_i32_0 = arith.constant 0 : i32
    %c0_i32_1 = arith.constant 0 : i32
    return %c0_i32, %c0_i32_0 : i32, i32
  }
  func.func @transform_6(%arg0: i32) -> (i32, i32) {
    %c0_i32 = arith.constant 0 : i32
    %c0_i32_0 = arith.constant 0 : i32
    %c0_i32_1 = arith.constant 0 : i32
    return %c0_i32, %c0_i32_0 : i32, i32
  }
  func.func @transform_7(%arg0: i32) -> (i32, i32) {
    %c0_i32 = arith.constant 0 : i32
    %c0_i32_0 = arith.constant 0 : i32
    %c0_i32_1 = arith.constant 0 : i32
    return %c0_i32, %c0_i32_0 : i32, i32
  }
  func.func @transform_8(%arg0: i32) -> (i32, i32) {
    %c0_i32 = arith.constant 0 : i32
    %c0_i32_0 = arith.constant 0 : i32
    %c0_i32_1 = arith.constant 0 : i32
    return %c0_i32, %c0_i32_0 : i32, i32
  }
  func.func @transform_9(%arg0: i32) -> (i32, i32) {
    %c0_i32 = arith.constant 0 : i32
    %c0_i32_0 = arith.constant 0 : i32
    %c0_i32_1 = arith.constant 0 : i32
    return %c0_i32, %c0_i32_0 : i32, i32
  }
  func.func @transform_10(%arg0: i32) -> (i32, i32) {
    %c0_i32 = arith.constant 0 : i32
    %c0_i32_0 = arith.constant 0 : i32
    %c0_i32_1 = arith.constant 0 : i32
    return %c0_i32, %c0_i32_0 : i32, i32
  }
  func.func @transform_11(%arg0: i32) -> (i32, i32) {
    %c0_i32 = arith.constant 0 : i32
    %c0_i32_0 = arith.constant 0 : i32
    %c0_i32_1 = arith.constant 0 : i32
    return %c0_i32, %c0_i32_0 : i32, i32
  }
  func.func @transform_12(%arg0: i32) -> (i32, i32) {
    %c0_i32 = arith.constant 0 : i32
    %c0_i32_0 = arith.constant 0 : i32
    %c0_i32_1 = arith.constant 0 : i32
    return %c0_i32, %c0_i32_0 : i32, i32
  }
}

</mosaic_0001>

<llo_original>
// kernel: _lambda_.1
$region0: #{_lambda_.1}
  #allocation0 [shape = 'u32[]', space=smem, size = 0x4, offset = 0x4, fixed_abs, tag = 'smem constant byte address 0x4 - core index']
  #allocation1 [shape = 'u32[72,128]{1,0:T(1,128)}', space=vmem, size = 0x9000, scoped, tag = 'internal scratch']
  %s0 = inlined_call_operand.vmem [shape: f32[156,8], index: 0, kind: input, shape index: {}]
  %s1 = inlined_call_operand.vmem [shape: f32[156,156], index: 1, kind: input, shape index: {}]
  %s2 = inlined_call_operand.vmem [shape: f32[8,16], index: 2, kind: input, shape index: {}]
  %s3 = inlined_call_operand.vmem [shape: f32[16,4], index: 3, kind: input, shape index: {}]
  %s4 = inlined_call_operand.vmem [shape: f32[16,8], index: 4, kind: input, shape index: {}]
  %s5 = inlined_call_operand.vmem [shape: f32[8,2], index: 5, kind: input, shape index: {}]
  %s6 = inlined_call_operand.vmem [shape: f32[64,156], index: 6, kind: input, shape index: {}]
  %s7 = inlined_call_operand.hbm [shape: f32[156,256], index: 7, kind: input, shape index: {}]
  %s8 = inlined_call_operand.vmem [shape: f32[64,256], index: 8, kind: input, shape index: {}]
  %s9 = inlined_call_operand.vmem [shape: f32[1,256], index: 9, kind: input, shape index: {}]
  %s10 = inlined_call_operand.hbm [shape: f32[64,156], index: 10, kind: input, shape index: {}]
  %s11 = inlined_call_operand.vmem [shape: f32[1,156], index: 11, kind: input, shape index: {}]
  %s12 = inlined_call_operand.vmem [shape: f32[8,156], index: 12, kind: output, shape index: {}]
  %s13 = sld [smem:[#allocation0]]
  $region66: #{_lambda_.1} parent=0
    _
  %s15 = ssub.s32 1, %s13
  %s16 = scalar_select 0, %s15, %s13
  $region1: #{_lambda_.1} parent=0
    #allocation2 [shape = 'u8[163840]{0}', space=vmem, size = 0x28000, scoped, tag = 'input window, operand 7, single buffered']
    #allocation3 [shape = 's32[1]{0}', space=sflag, size = 0x4, scoped, tag = 'scoped memory for _lambda_.1']
    #allocation4 [shape = 'u8[65536]{0}', space=vmem, size = 0x10000, scoped, tag = 'input window, operand 10, single buffered']
    #allocation5 [shape = 's32[1]{0}', space=sflag, size = 0x4, scoped, tag = 'scoped memory for _lambda_.1']
    %17 = vsyncpa [#allocation3], 0
    %18 = vsyncpa [#allocation5], 0
    // Predicated region
    $region2: #{_lambda_.1} parent=1 // pred_check
      _
    $region3: #{_lambda_.1} parent=1 // pred_check_branch
      %20 = sbr.rel (0) target = $region5
    $region4: #{_lambda_.1} parent=1 // pred_region
      _
    $region5: #{_lambda_.1} parent=1 // pred_fallthru
      _
    // Predicated region
    $region6: #{_lambda_.1} parent=1 // pred_check
      _
    $region7: #{_lambda_.1} parent=1 // pred_check_branch
      %22 = sbr.rel (0) target = $region9
    $region8: #{_lambda_.1} parent=1 // pred_region
      _
    $region9: #{_lambda_.1} parent=1 // pred_fallthru
      _
    // Predicated region
    $region10: #{_lambda_.1} parent=1 // pred_check
      _
    $region11: #{_lambda_.1} parent=1 // pred_check_branch
      %24 = sbr.rel (0) target = $region13
    $region12: #{_lambda_.1} parent=1 // pred_region
      _
    $region13: #{_lambda_.1} parent=1 // pred_fallthru
      _
    // Predicated region
    $region14: #{_lambda_.1} parent=1 // pred_check
      _
    $region15: #{_lambda_.1} parent=1 // pred_check_branch
      %26 = sbr.rel (0) target = $region17
    $region16: #{_lambda_.1} parent=1 // pred_region
      _
    $region17: #{_lambda_.1} parent=1 // pred_fallthru
      _
    // Predicated region
    $region18: #{_lambda_.1} parent=1 // pred_check
      _
    $region19: #{_lambda_.1} parent=1 // pred_check_branch
      %28 = sbr.rel (0) target = $region21
    $region20: #{_lambda_.1} parent=1 // pred_region
      _
    $region21: #{_lambda_.1} parent=1 // pred_fallthru
      _
    // Predicated region
    $region22: #{_lambda_.1} parent=1 // pred_check
      _
    $region23: #{_lambda_.1} parent=1 // pred_check_branch
      %30 = sbr.rel (0) target = $region25
    $region24: #{_lambda_.1} parent=1 // pred_region
      _
    $region25: #{_lambda_.1} parent=1 // pred_fallthru
      _
    // Predicated region
    $region26: #{_lambda_.1} parent=1 // pred_check
      _
    $region27: #{_lambda_.1} parent=1 // pred_check_branch
      %32 = sbr.rel (0) target = $region29
    $region28: #{_lambda_.1} parent=1 // pred_region
      _
    $region29: #{_lambda_.1} parent=1 // pred_fallthru
      _
    // Predicated region
    $region30: #{_lambda_.1} parent=1 // pred_check
      _
    $region31: #{_lambda_.1} parent=1 // pred_check_branch
      %34 = sbr.rel (0) target = $region33
    $region32: #{_lambda_.1} parent=1 // pred_region
      %36 = vsyncadd [#allocation3], 0
      %s37 = sshll.u32 %s7, 4
      %s38 = int_to_ptr.hbm [resolvable:$true] %s37
      %s39 = sshll.u32 [#allocation2], 4
      %s40 = int_to_ptr.vmem [resolvable:$true] %s39
      %45 = dma.hbm_to_vmem [thread:$0]  %s38, 5120, %s40, [#allocation3], 256, 256, 16
    $region33: #{_lambda_.1} parent=1 // pred_fallthru
      _
    // Predicated region
    $region34: #{_lambda_.1} parent=1 // pred_check
      _
    $region35: #{_lambda_.1} parent=1 // pred_check_branch
      %47 = sbr.rel (0) target = $region37
    $region36: #{_lambda_.1} parent=1 // pred_region
      _
    $region37: #{_lambda_.1} parent=1 // pred_fallthru
      _
    // Predicated region
    $region38: #{_lambda_.1} parent=1 // pred_check
      _
    $region39: #{_lambda_.1} parent=1 // pred_check_branch
      %49 = sbr.rel (0) target = $region41
    $region40: #{_lambda_.1} parent=1 // pred_region
      _
    $region41: #{_lambda_.1} parent=1 // pred_fallthru
      _
    // Predicated region
    $region42: #{_lambda_.1} parent=1 // pred_check
      _
    $region43: #{_lambda_.1} parent=1 // pred_check_branch
      %51 = sbr.rel (0) target = $region45
    $region44: #{_lambda_.1} parent=1 // pred_region
      %53 = vsyncadd [#allocation5], 0
      %s54 = sshll.u32 %s10, 4
      %s55 = int_to_ptr.hbm [resolvable:$true] %s54
      %s56 = sshll.u32 [#allocation4], 4
      %s57 = int_to_ptr.vmem [resolvable:$true] %s56
      %62 = dma.hbm_to_vmem [thread:$0]  %s55, 2048, %s57, [#allocation5], 256, 256, 16
    $region45: #{_lambda_.1} parent=1 // pred_fallthru
      _
    // Predicated region
    $region46: #{_lambda_.1} parent=1 // pred_check
      _
    $region47: #{_lambda_.1} parent=1 // pred_check_branch
      %64 = sbr.rel (0) target = $region49
    $region48: #{_lambda_.1} parent=1 // pred_region
      _
    $region49: #{_lambda_.1} parent=1 // pred_fallthru
      _
    // Predicated region
    $region50: #{_lambda_.1} parent=1 // pred_check
      _
    $region51: #{_lambda_.1} parent=1 // pred_check_branch
      %66 = sbr.rel (0) target = $region53
    $region52: #{_lambda_.1} parent=1 // pred_region
      %68 = dma.done [#allocation3], 5120
    $region53: #{_lambda_.1} parent=1 // pred_fallthru
      _
    // Predicated region
    $region54: #{_lambda_.1} parent=1 // pred_check
      _
    $region55: #{_lambda_.1} parent=1 // pred_check_branch
      %70 = sbr.rel (0) target = $region57
    $region56: #{_lambda_.1} parent=1 // pred_region
      %72 = dma.done [#allocation5], 2048
    $region57: #{_lambda_.1} parent=1 // pred_fallthru
      _
    %v74 = vld [vmem:[%s1] sm:$0xff]
    %v75 = vld [vmem:[%s1 + $0x8] sm:$0xff]
    %v76 = vld [vmem:[%s1 + $0x10] sm:$0xff]
    %v77 = vld [vmem:[%s1 + $0x18] sm:$0xff]
    %v78 = vld [vmem:[%s1 + $0x20] sm:$0xff]
    %v79 = vld [vmem:[%s1 + $0x28] sm:$0xff]
    %v80 = vld [vmem:[%s1 + $0x30] sm:$0xff]
    %v81 = vld [vmem:[%s1 + $0x38] sm:$0xff]
    %v82 = vld [vmem:[%s1 + $0x40] sm:$0xff]
    %v83 = vld [vmem:[%s1 + $0x48] sm:$0xff]
    %v84 = vld [vmem:[%s1 + $0x50] sm:$0xff]
    %v85 = vld [vmem:[%s1 + $0x58] sm:$0xff]
    %v86 = vld [vmem:[%s1 + $0x60] sm:$0xff]
    %v87 = vld [vmem:[%s1 + $0x68] sm:$0xff]
    %v88 = vld [vmem:[%s1 + $0x70] sm:$0xff]
    %v89 = vld [vmem:[%s1 + $0x78] sm:$0xff]
    %v90 = vld [vmem:[%s1 + $0x80] sm:$0xff]
    %v91 = vld [vmem:[%s1 + $0x88] sm:$0xff]
    %v92 = vld [vmem:[%s1 + $0x90] sm:$0xff]
    %v93 = vld [vmem:[%s1 + $0x98] sm:$0xff]
    %v94 = vld [vmem:[%s1 + $0xa0] sm:$0xff]
    %v95 = vld [vmem:[%s1 + $0xa8] sm:$0xff]
    %v96 = vld [vmem:[%s1 + $0xb0] sm:$0xff]
    %v97 = vld [vmem:[%s1 + $0xb8] sm:$0xff]
    %v98 = vld [vmem:[%s1 + $0xc0] sm:$0xff]
    %v99 = vld [vmem:[%s1 + $0xc8] sm:$0xff]
    %v100 = vld [vmem:[%s1 + $0xd0] sm:$0xff]
    %v101 = vld [vmem:[%s1 + $0xd8] sm:$0xff]
    %v102 = vld [vmem:[%s1 + $0xe0] sm:$0xff]
    %v103 = vld [vmem:[%s1 + $0xe8] sm:$0xff]
    %v104 = vld [vmem:[%s1 + $0xf0] sm:$0xff]
    %v105 = vld [vmem:[%s1 + $0xf8] sm:$0xff]
    %v106 = vld [vmem:[%s1 + $0x100] sm:$0xff]
    %v107 = vld [vmem:[%s1 + $0x108] sm:$0xff]
    %v108 = vld [vmem:[%s1 + $0x110] sm:$0xff]
    %v109 = vld [vmem:[%s1 + $0x118] sm:$0xff]
    %v110 = vld [vmem:[%s1 + $0x120] sm:$0xff]
    %v111 = vld [vmem:[%s1 + $0x128] sm:$0xff]
    %v112 = vld [vmem:[%s1 + $0x130] sm:$0xf]
    %v113 = vld [vmem:[%s1 + $0x138] sm:$0xf]
    %vm114 = vcmp.gt.f32.partialorder %v74, 0.0
    %vm115 = vcmp.gt.f32.partialorder %v75, 0.0
    %vm116 = vcmp.gt.f32.partialorder %v76, 0.0
    %vm117 = vcmp.gt.f32.partialorder %v77, 0.0
    %vm118 = vcmp.gt.f32.partialorder %v78, 0.0
    %vm119 = vcmp.gt.f32.partialorder %v79, 0.0
    %vm120 = vcmp.gt.f32.partialorder %v80, 0.0
    %vm121 = vcmp.gt.f32.partialorder %v81, 0.0
    %vm122 = vcmp.gt.f32.partialorder %v82, 0.0
    %vm123 = vcmp.gt.f32.partialorder %v83, 0.0
    %vm124 = vcmp.gt.f32.partialorder %v84, 0.0
    %vm125 = vcmp.gt.f32.partialorder %v85, 0.0
    %vm126 = vcmp.gt.f32.partialorder %v86, 0.0
    %vm127 = vcmp.gt.f32.partialorder %v87, 0.0
    %vm128 = vcmp.gt.f32.partialorder %v88, 0.0
    %vm129 = vcmp.gt.f32.partialorder %v89, 0.0
    %vm130 = vcmp.gt.f32.partialorder %v90, 0.0
    %vm131 = vcmp.gt.f32.partialorder %v91, 0.0
    %vm132 = vcmp.gt.f32.partialorder %v92, 0.0
    %vm133 = vcmp.gt.f32.partialorder %v93, 0.0
    %vm134 = vcmp.gt.f32.partialorder %v94, 0.0
    %vm135 = vcmp.gt.f32.partialorder %v95, 0.0
    %vm136 = vcmp.gt.f32.partialorder %v96, 0.0
    %vm137 = vcmp.gt.f32.partialorder %v97, 0.0
    %vm138 = vcmp.gt.f32.partialorder %v98, 0.0
    %vm139 = vcmp.gt.f32.partialorder %v99, 0.0
    %vm140 = vcmp.gt.f32.partialorder %v100, 0.0
    %vm141 = vcmp.gt.f32.partialorder %v101, 0.0
    %vm142 = vcmp.gt.f32.partialorder %v102, 0.0
    %vm143 = vcmp.gt.f32.partialorder %v103, 0.0
    %vm144 = vcmp.gt.f32.partialorder %v104, 0.0
    %vm145 = vcmp.gt.f32.partialorder %v105, 0.0
    %vm146 = vcmp.gt.f32.partialorder %v106, 0.0
    %vm147 = vcmp.gt.f32.partialorder %v107, 0.0
    %vm148 = vcmp.gt.f32.partialorder %v108, 0.0
    %vm149 = vcmp.gt.f32.partialorder %v109, 0.0
    %vm150 = vcmp.gt.f32.partialorder %v110, 0.0
    %vm151 = vcmp.gt.f32.partialorder %v111, 0.0
    %vm152 = vcmp.gt.f32.partialorder %v112, 0.0
    %vm153 = vcmp.gt.f32.partialorder %v113, 0.0
    %v154 = vsel %vm114, 0.0, -9e+15
    %v155 = vsel %vm115, 0.0, -9e+15
    %v156 = vsel %vm116, 0.0, -9e+15
    %v157 = vsel %vm117, 0.0, -9e+15
    %v158 = vsel %vm118, 0.0, -9e+15
    %v159 = vsel %vm119, 0.0, -9e+15
    %v160 = vsel %vm120, 0.0, -9e+15
    %v161 = vsel %vm121, 0.0, -9e+15
    %v162 = vsel %vm122, 0.0, -9e+15
    %v163 = vsel %vm123, 0.0, -9e+15
    %v164 = vsel %vm124, 0.0, -9e+15
    %v165 = vsel %vm125, 0.0, -9e+15
    %v166 = vsel %vm126, 0.0, -9e+15
    %v167 = vsel %vm127, 0.0, -9e+15
    %v168 = vsel %vm128, 0.0, -9e+15
    %v169 = vsel %vm129, 0.0, -9e+15
    %v170 = vsel %vm130, 0.0, -9e+15
    %v171 = vsel %vm131, 0.0, -9e+15
    %v172 = vsel %vm132, 0.0, -9e+15
    %v173 = vsel %vm133, 0.0, -9e+15
    %v174 = vsel %vm134, 0.0, -9e+15
    %v175 = vsel %vm135, 0.0, -9e+15
    %v176 = vsel %vm136, 0.0, -9e+15
    %v177 = vsel %vm137, 0.0, -9e+15
    %v178 = vsel %vm138, 0.0, -9e+15
    %v179 = vsel %vm139, 0.0, -9e+15
    %v180 = vsel %vm140, 0.0, -9e+15
    %v181 = vsel %vm141, 0.0, -9e+15
    %v182 = vsel %vm142, 0.0, -9e+15
    %v183 = vsel %vm143, 0.0, -9e+15
    %v184 = vsel %vm144, 0.0, -9e+15
    %v185 = vsel %vm145, 0.0, -9e+15
    %v186 = vsel %vm146, 0.0, -9e+15
    %v187 = vsel %vm147, 0.0, -9e+15
    %v188 = vsel %vm148, 0.0, -9e+15
    %v189 = vsel %vm149, 0.0, -9e+15
    %v190 = vsel %vm150, 0.0, -9e+15
    %v191 = vsel %vm151, 0.0, -9e+15
    %v192 = vsel %vm152, 0.0, -9e+15
    %v193 = vsel %vm153, 0.0, -9e+15
    %v194 = vld [vmem:[%s0] sm:$0xff]
    %v195 = vld [vmem:[%s0 + $0x8] sm:$0xff]
    %v196 = vld [vmem:[%s0 + $0x10] sm:$0xff]
    %v197 = vld [vmem:[%s0 + $0x18] sm:$0xff]
    %v198 = vld [vmem:[%s0 + $0x20] sm:$0xff]
    %v199 = vld [vmem:[%s0 + $0x28] sm:$0xff]
    %v200 = vld [vmem:[%s0 + $0x30] sm:$0xff]
    %v201 = vld [vmem:[%s0 + $0x38] sm:$0xff]
    %v202 = vld [vmem:[%s0 + $0x40] sm:$0xff]
    %v203 = vld [vmem:[%s0 + $0x48] sm:$0xff]
    %v204 = vld [vmem:[%s0 + $0x50] sm:$0xff]
    %v205 = vld [vmem:[%s0 + $0x58] sm:$0xff]
    %v206 = vld [vmem:[%s0 + $0x60] sm:$0xff]
    %v207 = vld [vmem:[%s0 + $0x68] sm:$0xff]
    %v208 = vld [vmem:[%s0 + $0x70] sm:$0xff]
    %v209 = vld [vmem:[%s0 + $0x78] sm:$0xff]
    %v210 = vld [vmem:[%s0 + $0x80] sm:$0xff]
    %v211 = vld [vmem:[%s0 + $0x88] sm:$0xff]
    %v212 = vld [vmem:[%s0 + $0x90] sm:$0xff]
    %v213 = vld [vmem:[%s0 + $0x98] sm:$0xf]
    %v214 = vld [vmem:[%s2] sm:$0xff]
    %vm215 = vcmask 64512
    %v217 = vsel %vm215, %v194, 0
    %v220 = vsel %vm215, %v195, 0
    %v223 = vsel %vm215, %v196, 0
    %v226 = vsel %vm215, %v197, 0
    %v229 = vsel %vm215, %v198, 0
    %v232 = vsel %vm215, %v199, 0
    %v235 = vsel %vm215, %v200, 0
    %v238 = vsel %vm215, %v201, 0
    %v241 = vsel %vm215, %v202, 0
    %v244 = vsel %vm215, %v203, 0
    %v247 = vsel %vm215, %v204, 0
    %v250 = vsel %vm215, %v205, 0
    %v253 = vsel %vm215, %v206, 0
    %v256 = vsel %vm215, %v207, 0
    %v259 = vsel %vm215, %v208, 0
    %v262 = vsel %vm215, %v209, 0
    %v265 = vsel %vm215, %v210, 0
    %v268 = vsel %vm215, %v211, 0
    %v271 = vsel %vm215, %v212, 0
    %v274 = vsel %vm215, %v213, 0
    %276 = vmatpush.msra.mxu0 0.0
    %277 = vmatpush.msra.mxu0 0.0
    %278 = vmatpush.msra.mxu0 0.0
    %279 = vmatpush.msra.mxu0 0.0
    %280 = vmatpush.msra.mxu0 0.0
    %281 = vmatpush.msra.mxu0 0.0
    %282 = vmatpush.msra.mxu0 0.0
    %283 = vmatpush.msra.mxu0 0.0
    %284 = vmatpush.msra.mxu0 0.0
    %285 = vmatpush.msra.mxu0 0.0
    %286 = vmatpush.msra.mxu0 0.0
    %287 = vmatpush.msra.mxu0 0.0
    %288 = vmatpush.msra.mxu0 0.0
    %289 = vmatpush.msra.mxu0 0.0
    %290 = vmatpush.msra.mxu0 0.0
    %291 = vmatpush.msra.mxu0 %v214
    %292 = vmatmul.f32.gmra.mxu0 %v217
    %v293 = vpop.f32.mrf.mxu0
    %v294 = vadd.f32 0.0, %v293
    %295 = vmatmul.f32.gmra.mxu0 %v220
    %v296 = vpop.f32.mrf.mxu0
    %v297 = vadd.f32 0.0, %v296
    %298 = vmatmul.f32.gmra.mxu0 %v223
    %v299 = vpop.f32.mrf.mxu0
    %v300 = vadd.f32 0.0, %v299
    %301 = vmatmul.f32.gmra.mxu0 %v226
    %v302 = vpop.f32.mrf.mxu0
    %v303 = vadd.f32 0.0, %v302
    %304 = vmatmul.f32.gmra.mxu0 %v229
    %v305 = vpop.f32.mrf.mxu0
    %v306 = vadd.f32 0.0, %v305
    %307 = vmatmul.f32.gmra.mxu0 %v232
    %v308 = vpop.f32.mrf.mxu0
    %v309 = vadd.f32 0.0, %v308
    %310 = vmatmul.f32.gmra.mxu0 %v235
    %v311 = vpop.f32.mrf.mxu0
    %v312 = vadd.f32 0.0, %v311
    %313 = vmatmul.f32.gmra.mxu0 %v238
    %v314 = vpop.f32.mrf.mxu0
    %v315 = vadd.f32 0.0, %v314
    %316 = vmatmul.f32.gmra.mxu0 %v241
    %v317 = vpop.f32.mrf.mxu0
    %v318 = vadd.f32 0.0, %v317
    %319 = vmatmul.f32.gmra.mxu0 %v244
    %v320 = vpop.f32.mrf.mxu0
    %v321 = vadd.f32 0.0, %v320
    %322 = vmatmul.f32.gmra.mxu0 %v247
    %v323 = vpop.f32.mrf.mxu0
    %v324 = vadd.f32 0.0, %v323
    %325 = vmatmul.f32.gmra.mxu0 %v250
    %v326 = vpop.f32.mrf.mxu0
    %v327 = vadd.f32 0.0, %v326
    %328 = vmatmul.f32.gmra.mxu0 %v253
    %v329 = vpop.f32.mrf.mxu0
    %v330 = vadd.f32 0.0, %v329
    %331 = vmatmul.f32.gmra.mxu0 %v256
    %v332 = vpop.f32.mrf.mxu0
    %v333 = vadd.f32 0.0, %v332
    %334 = vmatmul.f32.gmra.mxu0 %v259
    %v335 = vpop.f32.mrf.mxu0
    %v336 = vadd.f32 0.0, %v335
    %337 = vmatmul.f32.gmra.mxu0 %v262
    %v338 = vpop.f32.mrf.mxu0
    %v339 = vadd.f32 0.0, %v338
    %340 = vmatmul.f32.gmra.mxu0 %v265
    %v341 = vpop.f32.mrf.mxu0
    %v342 = vadd.f32 0.0, %v341
    %343 = vmatmul.f32.gmra.mxu0 %v268
    %v344 = vpop.f32.mrf.mxu0
    %v345 = vadd.f32 0.0, %v344
    %346 = vmatmul.f32.gmra.mxu0 %v271
    %v347 = vpop.f32.mrf.mxu0
    %v348 = vadd.f32 0.0, %v347
    %349 = vmatmul.f32.gmra.mxu0 %v274
    %v350 = vpop.f32.mrf.mxu0
    %v351 = vadd.f32 0.0, %v350
    %352 = vdwg.mxu0
    %v353 = vld [vmem:[%s3] sm:$0xff]
    %v354 = vld [vmem:[%s3 + $0x8] sm:$0xff]
    %vm355 = vcmask 130048
    %v357 = vsel %vm355, %v294, 0
    %v360 = vsel %vm355, %v297, 0
    %v363 = vsel %vm355, %v300, 0
    %v366 = vsel %vm355, %v303, 0
    %v369 = vsel %vm355, %v306, 0
    %v372 = vsel %vm355, %v309, 0
    %v375 = vsel %vm355, %v312, 0
    %v378 = vsel %vm355, %v315, 0
    %v381 = vsel %vm355, %v318, 0
    %v384 = vsel %vm355, %v321, 0
    %v387 = vsel %vm355, %v324, 0
    %v390 = vsel %vm355, %v327, 0
    %v393 = vsel %vm355, %v330, 0
    %v396 = vsel %vm355, %v333, 0
    %v399 = vsel %vm355, %v336, 0
    %v402 = vsel %vm355, %v339, 0
    %v405 = vsel %vm355, %v342, 0
    %v408 = vsel %vm355, %v345, 0
    %v411 = vsel %vm355, %v348, 0
    %v414 = vsel %vm355, %v351, 0
    %416 = vmatpush.msra.mxu0 0.0
    %417 = vmatpush.msra.mxu0 0.0
    %418 = vmatpush.msra.mxu0 0.0
    %419 = vmatpush.msra.mxu0 0.0
    %420 = vmatpush.msra.mxu0 0.0
    %421 = vmatpush.msra.mxu0 0.0
    %422 = vmatpush.msra.mxu0 0.0
    %423 = vmatpush.msra.mxu0 0.0
    %424 = vmatpush.msra.mxu0 0.0
    %425 = vmatpush.msra.mxu0 0.0
    %426 = vmatpush.msra.mxu0 0.0
    %427 = vmatpush.msra.mxu0 0.0
    %428 = vmatpush.msra.mxu0 0.0
    %429 = vmatpush.msra.mxu0 0.0
    %430 = vmatpush.msra.mxu0 %v354
    %431 = vmatpush.msra.mxu0 %v353
    %432 = vmatmul.f32.gmra.mxu0 %v357
    %v433 = vpop.f32.mrf.mxu0
    %v434 = vadd.f32 0.0, %v433
    %435 = vmatmul.f32.gmra.mxu0 %v360
    %v436 = vpop.f32.mrf.mxu0
    %v437 = vadd.f32 0.0, %v436
    %438 = vmatmul.f32.gmra.mxu0 %v363
    %v439 = vpop.f32.mrf.mxu0
    %v440 = vadd.f32 0.0, %v439
    %441 = vmatmul.f32.gmra.mxu0 %v366
    %v442 = vpop.f32.mrf.mxu0
    %v443 = vadd.f32 0.0, %v442
    %444 = vmatmul.f32.gmra.mxu0 %v369
    %v445 = vpop.f32.mrf.mxu0
    %v446 = vadd.f32 0.0, %v445
    %447 = vmatmul.f32.gmra.mxu0 %v372
    %v448 = vpop.f32.mrf.mxu0
    %v449 = vadd.f32 0.0, %v448
    %450 = vmatmul.f32.gmra.mxu0 %v375
    %v451 = vpop.f32.mrf.mxu0
    %v452 = vadd.f32 0.0, %v451
    %453 = vmatmul.f32.gmra.mxu0 %v378
    %v454 = vpop.f32.mrf.mxu0
    %v455 = vadd.f32 0.0, %v454
    %456 = vmatmul.f32.gmra.mxu0 %v381
    %v457 = vpop.f32.mrf.mxu0
    %v458 = vadd.f32 0.0, %v457
    %459 = vmatmul.f32.gmra.mxu0 %v384
    %v460 = vpop.f32.mrf.mxu0
    %v461 = vadd.f32 0.0, %v460
    %462 = vmatmul.f32.gmra.mxu0 %v387
    %v463 = vpop.f32.mrf.mxu0
    %v464 = vadd.f32 0.0, %v463
    %465 = vmatmul.f32.gmra.mxu0 %v390
    %v466 = vpop.f32.mrf.mxu0
    %v467 = vadd.f32 0.0, %v466
    %468 = vmatmul.f32.gmra.mxu0 %v393
    %v469 = vpop.f32.mrf.mxu0
    %v470 = vadd.f32 0.0, %v469
    %471 = vmatmul.f32.gmra.mxu0 %v396
    %v472 = vpop.f32.mrf.mxu0
    %v473 = vadd.f32 0.0, %v472
    %474 = vmatmul.f32.gmra.mxu0 %v399
    %v475 = vpop.f32.mrf.mxu0
    %v476 = vadd.f32 0.0, %v475
    %477 = vmatmul.f32.gmra.mxu0 %v402
    %v478 = vpop.f32.mrf.mxu0
    %v479 = vadd.f32 0.0, %v478
    %480 = vmatmul.f32.gmra.mxu0 %v405
    %v481 = vpop.f32.mrf.mxu0
    %v482 = vadd.f32 0.0, %v481
    %483 = vmatmul.f32.gmra.mxu0 %v408
    %v484 = vpop.f32.mrf.mxu0
    %v485 = vadd.f32 0.0, %v484
    %486 = vmatmul.f32.gmra.mxu0 %v411
    %v487 = vpop.f32.mrf.mxu0
    %v488 = vadd.f32 0.0, %v487
    %489 = vmatmul.f32.gmra.mxu0 %v414
    %v490 = vpop.f32.mrf.mxu0
    %v491 = vadd.f32 0.0, %v490
    %492 = vdwg.mxu0
    %513 = vrot.lane.b32.xlu0 %v434, 127
    %v514 = vpop.permute.xlu0 %513
    %515 = vrot.lane.b32.xlu0 %v437, 127
    %v516 = vpop.permute.xlu0 %515
    %517 = vrot.lane.b32.xlu0 %v440, 127
    %v518 = vpop.permute.xlu0 %517
    %519 = vrot.lane.b32.xlu0 %v443, 127
    %v520 = vpop.permute.xlu0 %519
    %521 = vrot.lane.b32.xlu0 %v446, 127
    %v522 = vpop.permute.xlu0 %521
    %523 = vrot.lane.b32.xlu0 %v449, 127
    %v524 = vpop.permute.xlu0 %523
    %525 = vrot.lane.b32.xlu0 %v452, 127
    %v526 = vpop.permute.xlu0 %525
    %527 = vrot.lane.b32.xlu0 %v455, 127
    %v528 = vpop.permute.xlu0 %527
    %529 = vrot.lane.b32.xlu0 %v458, 127
    %v530 = vpop.permute.xlu0 %529
    %531 = vrot.lane.b32.xlu0 %v461, 127
    %v532 = vpop.permute.xlu0 %531
    %533 = vrot.lane.b32.xlu0 %v464, 127
    %v534 = vpop.permute.xlu0 %533
    %535 = vrot.lane.b32.xlu0 %v467, 127
    %v536 = vpop.permute.xlu0 %535
    %537 = vrot.lane.b32.xlu0 %v470, 127
    %v538 = vpop.permute.xlu0 %537
    %539 = vrot.lane.b32.xlu0 %v473, 127
    %v540 = vpop.permute.xlu0 %539
    %541 = vrot.lane.b32.xlu0 %v476, 127
    %v542 = vpop.permute.xlu0 %541
    %543 = vrot.lane.b32.xlu0 %v479, 127
    %v544 = vpop.permute.xlu0 %543
    %545 = vrot.lane.b32.xlu0 %v482, 127
    %v546 = vpop.permute.xlu0 %545
    %547 = vrot.lane.b32.xlu0 %v485, 127
    %v548 = vpop.permute.xlu0 %547
    %549 = vrot.lane.b32.xlu0 %v488, 127
    %v550 = vpop.permute.xlu0 %549
    %551 = vrot.lane.b32.xlu0 %v491, 127
    %v552 = vpop.permute.xlu0 %551
    %573 = vxpose.xlu0.b32.start [1/16] %v514, 128
    %574 = vxpose.xlu0.b32.cont [2/16] %v516, 128
    %575 = vxpose.xlu0.b32.cont [3/16] %v518, 128
    %576 = vxpose.xlu0.b32.cont [4/16] %v520, 128
    %577 = vxpose.xlu0.b32.cont [5/16] %v522, 128
    %578 = vxpose.xlu0.b32.cont [6/16] %v524, 128
    %579 = vxpose.xlu0.b32.cont [7/16] %v526, 128
    %580 = vxpose.xlu0.b32.cont [8/16] %v528, 128
    %581 = vxpose.xlu0.b32.cont [9/16] %v530, 128
    %582 = vxpose.xlu0.b32.cont [10/16] %v532, 128
    %583 = vxpose.xlu0.b32.cont [11/16] %v534, 128
    %584 = vxpose.xlu0.b32.cont [12/16] %v536, 128
    %585 = vxpose.xlu0.b32.cont [13/16] %v538, 128
    %586 = vxpose.xlu0.b32.cont [14/16] %v540, 128
    %587 = vxpose.xlu0.b32.cont [15/16] %v542, 128
    %588 = vxpose.xlu0.b32.end [16/16] %v544, 128
    %v589 = vpop.trf.xlu0
    %v590 = vpop.trf.xlu0
    %v591 = vpop.trf.xlu0
    %v592 = vpop.trf.xlu0
    %v593 = vpop.trf.xlu0
    %v594 = vpop.trf.xlu0
    %v595 = vpop.trf.xlu0
    %v596 = vpop.trf.xlu0
    %v597 = vpop.trf.xlu0
    %v598 = vpop.trf.xlu0
    %v599 = vpop.trf.xlu0
    %v600 = vpop.trf.xlu0
    %v601 = vpop.trf.xlu0
    %v602 = vpop.trf.xlu0
    %v603 = vpop.trf.xlu0
    %v604 = vpop.trf.xlu0
    %605 = vxpose.xlu0.b32.start [1/16] %v546, 128
    %606 = vxpose.xlu0.b32.cont [2/16] %v548, 128
    %607 = vxpose.xlu0.b32.cont [3/16] %v550, 128
    %608 = vxpose.xlu0.b32.cont [4/16] %v552, 128
    %609 = vxpose.xlu0.b32.cont [5/16] 0.0, 128
    %610 = vxpose.xlu0.b32.cont [6/16] 0.0, 128
    %611 = vxpose.xlu0.b32.cont [7/16] 0.0, 128
    %612 = vxpose.xlu0.b32.cont [8/16] 0.0, 128
    %613 = vxpose.xlu0.b32.cont [9/16] 0.0, 128
    %614 = vxpose.xlu0.b32.cont [10/16] 0.0, 128
    %615 = vxpose.xlu0.b32.cont [11/16] 0.0, 128
    %616 = vxpose.xlu0.b32.cont [12/16] 0.0, 128
    %617 = vxpose.xlu0.b32.cont [13/16] 0.0, 128
    %618 = vxpose.xlu0.b32.cont [14/16] 0.0, 128
    %619 = vxpose.xlu0.b32.cont [15/16] 0.0, 128
    %620 = vxpose.xlu0.b32.end [16/16] 0.0, 128
    %v621 = vpop.trf.xlu0
    %v622 = vpop.trf.xlu0
    %v623 = vpop.trf.xlu0
    %v624 = vpop.trf.xlu0
    %v625 = vpop.trf.xlu0
    %v626 = vpop.trf.xlu0
    %v627 = vpop.trf.xlu0
    %v628 = vpop.trf.xlu0
    %v629 = vpop.trf.xlu0
    %v630 = vpop.trf.xlu0
    %v631 = vpop.trf.xlu0
    %v632 = vpop.trf.xlu0
    %v633 = vpop.trf.xlu0
    %v634 = vpop.trf.xlu0
    %v635 = vpop.trf.xlu0
    %v636 = vpop.trf.xlu0
    %637 = vset.pattern.permute.xlu0 0
    %638 = vperm.xlu0 %637, %v434
    %v639 = vpop.permute.xlu0 %638
    %641 = vset.pattern.permute.xlu0 0
    %642 = vperm.xlu0 %641, %v437
    %v643 = vpop.permute.xlu0 %642
    %645 = vset.pattern.permute.xlu0 0
    %646 = vperm.xlu0 %645, %v440
    %v647 = vpop.permute.xlu0 %646
    %649 = vset.pattern.permute.xlu0 0
    %650 = vperm.xlu0 %649, %v443
    %v651 = vpop.permute.xlu0 %650
    %653 = vset.pattern.permute.xlu0 0
    %654 = vperm.xlu0 %653, %v446
    %v655 = vpop.permute.xlu0 %654
    %657 = vset.pattern.permute.xlu0 0
    %658 = vperm.xlu0 %657, %v449
    %v659 = vpop.permute.xlu0 %658
    %661 = vset.pattern.permute.xlu0 0
    %662 = vperm.xlu0 %661, %v452
    %v663 = vpop.permute.xlu0 %662
    %665 = vset.pattern.permute.xlu0 0
    %666 = vperm.xlu0 %665, %v455
    %v667 = vpop.permute.xlu0 %666
    %669 = vset.pattern.permute.xlu0 0
    %670 = vperm.xlu0 %669, %v458
    %v671 = vpop.permute.xlu0 %670
    %673 = vset.pattern.permute.xlu0 0
    %674 = vperm.xlu0 %673, %v461
    %v675 = vpop.permute.xlu0 %674
    %677 = vset.pattern.permute.xlu0 0
    %678 = vperm.xlu0 %677, %v464
    %v679 = vpop.permute.xlu0 %678
    %681 = vset.pattern.permute.xlu0 0
    %682 = vperm.xlu0 %681, %v467
    %v683 = vpop.permute.xlu0 %682
    %685 = vset.pattern.permute.xlu0 0
    %686 = vperm.xlu0 %685, %v470
    %v687 = vpop.permute.xlu0 %686
    %689 = vset.pattern.permute.xlu0 0
    %690 = vperm.xlu0 %689, %v473
    %v691 = vpop.permute.xlu0 %690
    %693 = vset.pattern.permute.xlu0 0
    %694 = vperm.xlu0 %693, %v476
    %v695 = vpop.permute.xlu0 %694
    %697 = vset.pattern.permute.xlu0 0
    %698 = vperm.xlu0 %697, %v479
    %v699 = vpop.permute.xlu0 %698
    %701 = vset.pattern.permute.xlu0 0
    %702 = vperm.xlu0 %701, %v482
    %v703 = vpop.permute.xlu0 %702
    %705 = vset.pattern.permute.xlu0 0
    %706 = vperm.xlu0 %705, %v485
    %v707 = vpop.permute.xlu0 %706
    %709 = vset.pattern.permute.xlu0 0
    %710 = vperm.xlu0 %709, %v488
    %v711 = vpop.permute.xlu0 %710
    %713 = vset.pattern.permute.xlu0 0
    %714 = vperm.xlu0 %713, %v491
    %v715 = vpop.permute.xlu0 %714
    %v717 = vperm.slane %v589, 0
    %v718 = vperm.slane %v621, 0
    %v719 = vadd.f32 %v639, %v717
    %v720 = vadd.f32 %v639, %v718
    %v721 = vadd.f32 %v643, %v717
    %v722 = vadd.f32 %v643, %v718
    %v723 = vadd.f32 %v647, %v717
    %v724 = vadd.f32 %v647, %v718
    %v725 = vadd.f32 %v651, %v717
    %v726 = vadd.f32 %v651, %v718
    %v727 = vadd.f32 %v655, %v717
    %v728 = vadd.f32 %v655, %v718
    %v729 = vadd.f32 %v659, %v717
    %v730 = vadd.f32 %v659, %v718
    %v731 = vadd.f32 %v663, %v717
    %v732 = vadd.f32 %v663, %v718
    %v733 = vadd.f32 %v667, %v717
    %v734 = vadd.f32 %v667, %v718
    %v735 = vadd.f32 %v671, %v717
    %v736 = vadd.f32 %v671, %v718
    %v737 = vadd.f32 %v675, %v717
    %v738 = vadd.f32 %v675, %v718
    %v739 = vadd.f32 %v679, %v717
    %v740 = vadd.f32 %v679, %v718
    %v741 = vadd.f32 %v683, %v717
    %v742 = vadd.f32 %v683, %v718
    %v743 = vadd.f32 %v687, %v717
    %v744 = vadd.f32 %v687, %v718
    %v745 = vadd.f32 %v691, %v717
    %v746 = vadd.f32 %v691, %v718
    %v747 = vadd.f32 %v695, %v717
    %v748 = vadd.f32 %v695, %v718
    %v749 = vadd.f32 %v699, %v717
    %v750 = vadd.f32 %v699, %v718
    %v751 = vadd.f32 %v703, %v717
    %v752 = vadd.f32 %v703, %v718
    %v753 = vadd.f32 %v707, %v717
    %v754 = vadd.f32 %v707, %v718
    %v755 = vadd.f32 %v711, %v717
    %v756 = vadd.f32 %v711, %v718
    %v757 = vadd.f32 %v715, %v717
    %v758 = vadd.f32 %v715, %v718
    %vm759 = vcmp.gt.f32.partialorder %v719, 0.0
    %vm760 = vcmp.gt.f32.partialorder %v720, 0.0
    %vm761 = vcmp.gt.f32.partialorder %v721, 0.0
    %vm762 = vcmp.gt.f32.partialorder %v722, 0.0
    %vm763 = vcmp.gt.f32.partialorder %v723, 0.0
    %vm764 = vcmp.gt.f32.partialorder %v724, 0.0
    %vm765 = vcmp.gt.f32.partialorder %v725, 0.0
    %vm766 = vcmp.gt.f32.partialorder %v726, 0.0
    %vm767 = vcmp.gt.f32.partialorder %v727, 0.0
    %vm768 = vcmp.gt.f32.partialorder %v728, 0.0
    %vm769 = vcmp.gt.f32.partialorder %v729, 0.0
    %vm770 = vcmp.gt.f32.partialorder %v730, 0.0
    %vm771 = vcmp.gt.f32.partialorder %v731, 0.0
    %vm772 = vcmp.gt.f32.partialorder %v732, 0.0
    %vm773 = vcmp.gt.f32.partialorder %v733, 0.0
    %vm774 = vcmp.gt.f32.partialorder %v734, 0.0
    %vm775 = vcmp.gt.f32.partialorder %v735, 0.0
    %vm776 = vcmp.gt.f32.partialorder %v736, 0.0
    %vm777 = vcmp.gt.f32.partialorder %v737, 0.0
    %vm778 = vcmp.gt.f32.partialorder %v738, 0.0
    %vm779 = vcmp.gt.f32.partialorder %v739, 0.0
    %vm780 = vcmp.gt.f32.partialorder %v740, 0.0
    %vm781 = vcmp.gt.f32.partialorder %v741, 0.0
    %vm782 = vcmp.gt.f32.partialorder %v742, 0.0
    %vm783 = vcmp.gt.f32.partialorder %v743, 0.0
    %vm784 = vcmp.gt.f32.partialorder %v744, 0.0
    %vm785 = vcmp.gt.f32.partialorder %v745, 0.0
    %vm786 = vcmp.gt.f32.partialorder %v746, 0.0
    %vm787 = vcmp.gt.f32.partialorder %v747, 0.0
    %vm788 = vcmp.gt.f32.partialorder %v748, 0.0
    %vm789 = vcmp.gt.f32.partialorder %v749, 0.0
    %vm790 = vcmp.gt.f32.partialorder %v750, 0.0
    %vm791 = vcmp.gt.f32.partialorder %v751, 0.0
    %vm792 = vcmp.gt.f32.partialorder %v752, 0.0
    %vm793 = vcmp.gt.f32.partialorder %v753, 0.0
    %vm794 = vcmp.gt.f32.partialorder %v754, 0.0
    %vm795 = vcmp.gt.f32.partialorder %v755, 0.0
    %vm796 = vcmp.gt.f32.partialorder %v756, 0.0
    %vm797 = vcmp.gt.f32.partialorder %v757, 0.0
    %vm798 = vcmp.gt.f32.partialorder %v758, 0.0
    %v799 = vmul.f32 %v719, 0.2
    %v800 = vmul.f32 %v720, 0.2
    %v801 = vmul.f32 %v721, 0.2
    %v802 = vmul.f32 %v722, 0.2
    %v803 = vmul.f32 %v723, 0.2
    %v804 = vmul.f32 %v724, 0.2
    %v805 = vmul.f32 %v725, 0.2
    %v806 = vmul.f32 %v726, 0.2
    %v807 = vmul.f32 %v727, 0.2
    %v808 = vmul.f32 %v728, 0.2
    %v809 = vmul.f32 %v729, 0.2
    %v810 = vmul.f32 %v730, 0.2
    %v811 = vmul.f32 %v731, 0.2
    %v812 = vmul.f32 %v732, 0.2
    %v813 = vmul.f32 %v733, 0.2
    %v814 = vmul.f32 %v734, 0.2
    %v815 = vmul.f32 %v735, 0.2
    %v816 = vmul.f32 %v736, 0.2
    %v817 = vmul.f32 %v737, 0.2
    %v818 = vmul.f32 %v738, 0.2
    %v819 = vmul.f32 %v739, 0.2
    %v820 = vmul.f32 %v740, 0.2
    %v821 = vmul.f32 %v741, 0.2
    %v822 = vmul.f32 %v742, 0.2
    %v823 = vmul.f32 %v743, 0.2
    %v824 = vmul.f32 %v744, 0.2
    %v825 = vmul.f32 %v745, 0.2
    %v826 = vmul.f32 %v746, 0.2
    %v827 = vmul.f32 %v747, 0.2
    %v828 = vmul.f32 %v748, 0.2
    %v829 = vmul.f32 %v749, 0.2
    %v830 = vmul.f32 %v750, 0.2
    %v831 = vmul.f32 %v751, 0.2
    %v832 = vmul.f32 %v752, 0.2
    %v833 = vmul.f32 %v753, 0.2
    %v834 = vmul.f32 %v754, 0.2
    %v835 = vmul.f32 %v755, 0.2
    %v836 = vmul.f32 %v756, 0.2
    %v837 = vmul.f32 %v757, 0.2
    %v838 = vmul.f32 %v758, 0.2
    %v839 = vsel %vm759, %v719, %v799
    %v840 = vsel %vm760, %v720, %v800
    %v841 = vsel %vm761, %v721, %v801
    %v842 = vsel %vm762, %v722, %v802
    %v843 = vsel %vm763, %v723, %v803
    %v844 = vsel %vm764, %v724, %v804
    %v845 = vsel %vm765, %v725, %v805
    %v846 = vsel %vm766, %v726, %v806
    %v847 = vsel %vm767, %v727, %v807
    %v848 = vsel %vm768, %v728, %v808
    %v849 = vsel %vm769, %v729, %v809
    %v850 = vsel %vm770, %v730, %v810
    %v851 = vsel %vm771, %v731, %v811
    %v852 = vsel %vm772, %v732, %v812
    %v853 = vsel %vm773, %v733, %v813
    %v854 = vsel %vm774, %v734, %v814
    %v855 = vsel %vm775, %v735, %v815
    %v856 = vsel %vm776, %v736, %v816
    %v857 = vsel %vm777, %v737, %v817
    %v858 = vsel %vm778, %v738, %v818
    %v859 = vsel %vm779, %v739, %v819
    %v860 = vsel %vm780, %v740, %v820
    %v861 = vsel %vm781, %v741, %v821
    %v862 = vsel %vm782, %v742, %v822
    %v863 = vsel %vm783, %v743, %v823
    %v864 = vsel %vm784, %v744, %v824
    %v865 = vsel %vm785, %v745, %v825
    %v866 = vsel %vm786, %v746, %v826
    %v867 = vsel %vm787, %v747, %v827
    %v868 = vsel %vm788, %v748, %v828
    %v869 = vsel %vm789, %v749, %v829
    %v870 = vsel %vm790, %v750, %v830
    %v871 = vsel %vm791, %v751, %v831
    %v872 = vsel %vm792, %v752, %v832
    %v873 = vsel %vm793, %v753, %v833
    %v874 = vsel %vm794, %v754, %v834
    %v875 = vsel %vm795, %v755, %v835
    %v876 = vsel %vm796, %v756, %v836
    %v877 = vsel %vm797, %v757, %v837
    %v878 = vsel %vm798, %v758, %v838
    %v879 = vadd.f32 %v839, %v154
    %v880 = vadd.f32 %v840, %v155
    %v881 = vadd.f32 %v841, %v156
    %v882 = vadd.f32 %v842, %v157
    %v883 = vadd.f32 %v843, %v158
    %v884 = vadd.f32 %v844, %v159
    %v885 = vadd.f32 %v845, %v160
    %v886 = vadd.f32 %v846, %v161
    %v887 = vadd.f32 %v847, %v162
    %v888 = vadd.f32 %v848, %v163
    %v889 = vadd.f32 %v849, %v164
    %v890 = vadd.f32 %v850, %v165
    %v891 = vadd.f32 %v851, %v166
    %v892 = vadd.f32 %v852, %v167
    %v893 = vadd.f32 %v853, %v168
    %v894 = vadd.f32 %v854, %v169
    %v895 = vadd.f32 %v855, %v170
    %v896 = vadd.f32 %v856, %v171
    %v897 = vadd.f32 %v857, %v172
    %v898 = vadd.f32 %v858, %v173
    %v899 = vadd.f32 %v859, %v174
    %v900 = vadd.f32 %v860, %v175
    %v901 = vadd.f32 %v861, %v176
    %v902 = vadd.f32 %v862, %v177
    %v903 = vadd.f32 %v863, %v178
    %v904 = vadd.f32 %v864, %v179
    %v905 = vadd.f32 %v865, %v180
    %v906 = vadd.f32 %v866, %v181
    %v907 = vadd.f32 %v867, %v182
    %v908 = vadd.f32 %v868, %v183
    %v909 = vadd.f32 %v869, %v184
    %v910 = vadd.f32 %v870, %v185
    %v911 = vadd.f32 %v871, %v186
    %v912 = vadd.f32 %v872, %v187
    %v913 = vadd.f32 %v873, %v188
    %v914 = vadd.f32 %v874, %v189
    %v915 = vadd.f32 %v875, %v190
    %v916 = vadd.f32 %v876, %v191
    %v917 = vadd.f32 %v877, %v192
    %v918 = vadd.f32 %v878, %v193
    %vm919 = vcmask 228352
    %v920 = vsel %vm919, %v880, -inf
    %v921 = vmax.f32 %v879, %v920
    %922 = vmax.xlane.f32.xlu0 %v921
    %v923 = vpop.xlane.xlu0 %922
    %v924 = vsel %vm919, %v882, -inf
    %v925 = vmax.f32 %v881, %v924
    %926 = vmax.xlane.f32.xlu0 %v925
    %v927 = vpop.xlane.xlu0 %926
    %v928 = vsel %vm919, %v884, -inf
    %v929 = vmax.f32 %v883, %v928
    %930 = vmax.xlane.f32.xlu0 %v929
    %v931 = vpop.xlane.xlu0 %930
    %v932 = vsel %vm919, %v886, -inf
    %v933 = vmax.f32 %v885, %v932
    %934 = vmax.xlane.f32.xlu0 %v933
    %v935 = vpop.xlane.xlu0 %934
    %v936 = vsel %vm919, %v888, -inf
    %v937 = vmax.f32 %v887, %v936
    %938 = vmax.xlane.f32.xlu0 %v937
    %v939 = vpop.xlane.xlu0 %938
    %v940 = vsel %vm919, %v890, -inf
    %v941 = vmax.f32 %v889, %v940
    %942 = vmax.xlane.f32.xlu0 %v941
    %v943 = vpop.xlane.xlu0 %942
    %v944 = vsel %vm919, %v892, -inf
    %v945 = vmax.f32 %v891, %v944
    %946 = vmax.xlane.f32.xlu0 %v945
    %v947 = vpop.xlane.xlu0 %946
    %v948 = vsel %vm919, %v894, -inf
    %v949 = vmax.f32 %v893, %v948
    %950 = vmax.xlane.f32.xlu0 %v949
    %v951 = vpop.xlane.xlu0 %950
    %v952 = vsel %vm919, %v896, -inf
    %v953 = vmax.f32 %v895, %v952
    %954 = vmax.xlane.f32.xlu0 %v953
    %v955 = vpop.xlane.xlu0 %954
    %v956 = vsel %vm919, %v898, -inf
    %v957 = vmax.f32 %v897, %v956
    %958 = vmax.xlane.f32.xlu0 %v957
    %v959 = vpop.xlane.xlu0 %958
    %v960 = vsel %vm919, %v900, -inf
    %v961 = vmax.f32 %v899, %v960
    %962 = vmax.xlane.f32.xlu0 %v961
    %v963 = vpop.xlane.xlu0 %962
    %v964 = vsel %vm919, %v902, -inf
    %v965 = vmax.f32 %v901, %v964
    %966 = vmax.xlane.f32.xlu0 %v965
    %v967 = vpop.xlane.xlu0 %966
    %v968 = vsel %vm919, %v904, -inf
    %v969 = vmax.f32 %v903, %v968
    %970 = vmax.xlane.f32.xlu0 %v969
    %v971 = vpop.xlane.xlu0 %970
    %v972 = vsel %vm919, %v906, -inf
    %v973 = vmax.f32 %v905, %v972
    %974 = vmax.xlane.f32.xlu0 %v973
    %v975 = vpop.xlane.xlu0 %974
    %v976 = vsel %vm919, %v908, -inf
    %v977 = vmax.f32 %v907, %v976
    %978 = vmax.xlane.f32.xlu0 %v977
    %v979 = vpop.xlane.xlu0 %978
    %v980 = vsel %vm919, %v910, -inf
    %v981 = vmax.f32 %v909, %v980
    %982 = vmax.xlane.f32.xlu0 %v981
    %v983 = vpop.xlane.xlu0 %982
    %v984 = vsel %vm919, %v912, -inf
    %v985 = vmax.f32 %v911, %v984
    %986 = vmax.xlane.f32.xlu0 %v985
    %v987 = vpop.xlane.xlu0 %986
    %v988 = vsel %vm919, %v914, -inf
    %v989 = vmax.f32 %v913, %v988
    %990 = vmax.xlane.f32.xlu0 %v989
    %v991 = vpop.xlane.xlu0 %990
    %v992 = vsel %vm919, %v916, -inf
    %v993 = vmax.f32 %v915, %v992
    %994 = vmax.xlane.f32.xlu0 %v993
    %v995 = vpop.xlane.xlu0 %994
    %vm996 = vcmask 1043456
    %v997 = vsel %vm996, %v917, -inf
    %vm998 = vcmask 224256
    %v999 = vsel %vm998, %v918, -inf
    %v1000 = vmax.f32 %v997, %v999
    %1001 = vmax.xlane.f32.xlu0 %v1000
    %v1002 = vpop.xlane.xlu0 %1001
    %v1003 = vsub.f32 %v879, %v923
    %v1004 = vsub.f32 %v880, %v923
    %v1005 = vsub.f32 %v881, %v927
    %v1006 = vsub.f32 %v882, %v927
    %v1007 = vsub.f32 %v883, %v931
    %v1008 = vsub.f32 %v884, %v931
    %v1009 = vsub.f32 %v885, %v935
    %v1010 = vsub.f32 %v886, %v935
    %v1011 = vsub.f32 %v887, %v939
    %v1012 = vsub.f32 %v888, %v939
    %v1013 = vsub.f32 %v889, %v943
    %v1014 = vsub.f32 %v890, %v943
    %v1015 = vsub.f32 %v891, %v947
    %v1016 = vsub.f32 %v892, %v947
    %v1017 = vsub.f32 %v893, %v951
    %v1018 = vsub.f32 %v894, %v951
    %v1019 = vsub.f32 %v895, %v955
    %v1020 = vsub.f32 %v896, %v955
    %v1021 = vsub.f32 %v897, %v959
    %v1022 = vsub.f32 %v898, %v959
    %v1023 = vsub.f32 %v899, %v963
    %v1024 = vsub.f32 %v900, %v963
    %v1025 = vsub.f32 %v901, %v967
    %v1026 = vsub.f32 %v902, %v967
    %v1027 = vsub.f32 %v903, %v971
    %v1028 = vsub.f32 %v904, %v971
    %v1029 = vsub.f32 %v905, %v975
    %v1030 = vsub.f32 %v906, %v975
    %v1031 = vsub.f32 %v907, %v979
    %v1032 = vsub.f32 %v908, %v979
    %v1033 = vsub.f32 %v909, %v983
    %v1034 = vsub.f32 %v910, %v983
    %v1035 = vsub.f32 %v911, %v987
    %v1036 = vsub.f32 %v912, %v987
    %v1037 = vsub.f32 %v913, %v991
    %v1038 = vsub.f32 %v914, %v991
    %v1039 = vsub.f32 %v915, %v995
    %v1040 = vsub.f32 %v916, %v995
    %v1041 = vsub.f32 %v917, %v1002
    %v1042 = vsub.f32 %v918, %v1002
    %v1043 = vmul.f32 %v1003, 1.442695
    %v1044 = vpow.pop %v1043
    %v1045 = vmul.f32 %v1004, 1.442695
    %v1046 = vpow.pop %v1045
    %v1047 = vmul.f32 %v1005, 1.442695
    %v1048 = vpow.pop %v1047
    %v1049 = vmul.f32 %v1006, 1.442695
    %v1050 = vpow.pop %v1049
    %v1051 = vmul.f32 %v1007, 1.442695
    %v1052 = vpow.pop %v1051
    %v1053 = vmul.f32 %v1008, 1.442695
    %v1054 = vpow.pop %v1053
    %v1055 = vmul.f32 %v1009, 1.442695
    %v1056 = vpow.pop %v1055
    %v1057 = vmul.f32 %v1010, 1.442695
    %v1058 = vpow.pop %v1057
    %v1059 = vmul.f32 %v1011, 1.442695
    %v1060 = vpow.pop %v1059
    %v1061 = vmul.f32 %v1012, 1.442695
    %v1062 = vpow.pop %v1061
    %v1063 = vmul.f32 %v1013, 1.442695
    %v1064 = vpow.pop %v1063
    %v1065 = vmul.f32 %v1014, 1.442695
    %v1066 = vpow.pop %v1065
    %v1067 = vmul.f32 %v1015, 1.442695
    %v1068 = vpow.pop %v1067
    %v1069 = vmul.f32 %v1016, 1.442695
    %v1070 = vpow.pop %v1069
    %v1071 = vmul.f32 %v1017, 1.442695
    %v1072 = vpow.pop %v1071
    %v1073 = vmul.f32 %v1018, 1.442695
    %v1074 = vpow.pop %v1073
    %v1075 = vmul.f32 %v1019, 1.442695
    %v1076 = vpow.pop %v1075
    %v1077 = vmul.f32 %v1020, 1.442695
    %v1078 = vpow.pop %v1077
    %v1079 = vmul.f32 %v1021, 1.442695
    %v1080 = vpow.pop %v1079
    %v1081 = vmul.f32 %v1022, 1.442695
    %v1082 = vpow.pop %v1081
    %v1083 = vmul.f32 %v1023, 1.442695
    %v1084 = vpow.pop %v1083
    %v1085 = vmul.f32 %v1024, 1.442695
    %v1086 = vpow.pop %v1085
    %v1087 = vmul.f32 %v1025, 1.442695
    %v1088 = vpow.pop %v1087
    %v1089 = vmul.f32 %v1026, 1.442695
    %v1090 = vpow.pop %v1089
    %v1091 = vmul.f32 %v1027, 1.442695
    %v1092 = vpow.pop %v1091
    %v1093 = vmul.f32 %v1028, 1.442695
    %v1094 = vpow.pop %v1093
    %v1095 = vmul.f32 %v1029, 1.442695
    %v1096 = vpow.pop %v1095
    %v1097 = vmul.f32 %v1030, 1.442695
    %v1098 = vpow.pop %v1097
    %v1099 = vmul.f32 %v1031, 1.442695
    %v1100 = vpow.pop %v1099
    %v1101 = vmul.f32 %v1032, 1.442695
    %v1102 = vpow.pop %v1101
    %v1103 = vmul.f32 %v1033, 1.442695
    %v1104 = vpow.pop %v1103
    %v1105 = vmul.f32 %v1034, 1.442695
    %v1106 = vpow.pop %v1105
    %v1107 = vmul.f32 %v1035, 1.442695
    %v1108 = vpow.pop %v1107
    %v1109 = vmul.f32 %v1036, 1.442695
    %v1110 = vpow.pop %v1109
    %v1111 = vmul.f32 %v1037, 1.442695
    %v1112 = vpow.pop %v1111
    %v1113 = vmul.f32 %v1038, 1.442695
    %v1114 = vpow.pop %v1113
    %v1115 = vmul.f32 %v1039, 1.442695
    %v1116 = vpow.pop %v1115
    %v1117 = vmul.f32 %v1040, 1.442695
    %v1118 = vpow.pop %v1117
    %v1119 = vmul.f32 %v1041, 1.442695
    %v1120 = vpow.pop %v1119
    %v1121 = vmul.f32 %v1042, 1.442695
    %v1122 = vpow.pop %v1121
    %v1123 = vsel %vm919, %v1046, 0.0
    %v1124 = vadd.f32 %v1044, %v1123
    %1125 = vadd.xlane.f32.xlu0 %v1124
    %v1126 = vpop.xlane.xlu0 %1125
    %v1127 = vsel %vm919, %v1050, 0.0
    %v1128 = vadd.f32 %v1048, %v1127
    %1129 = vadd.xlane.f32.xlu0 %v1128
    %v1130 = vpop.xlane.xlu0 %1129
    %v1131 = vsel %vm919, %v1054, 0.0
    %v1132 = vadd.f32 %v1052, %v1131
    %1133 = vadd.xlane.f32.xlu0 %v1132
    %v1134 = vpop.xlane.xlu0 %1133
    %v1135 = vsel %vm919, %v1058, 0.0
    %v1136 = vadd.f32 %v1056, %v1135
    %1137 = vadd.xlane.f32.xlu0 %v1136
    %v1138 = vpop.xlane.xlu0 %1137
    %v1139 = vsel %vm919, %v1062, 0.0
    %v1140 = vadd.f32 %v1060, %v1139
    %1141 = vadd.xlane.f32.xlu0 %v1140
    %v1142 = vpop.xlane.xlu0 %1141
    %v1143 = vsel %vm919, %v1066, 0.0
    %v1144 = vadd.f32 %v1064, %v1143
    %1145 = vadd.xlane.f32.xlu0 %v1144
    %v1146 = vpop.xlane.xlu0 %1145
    %v1147 = vsel %vm919, %v1070, 0.0
    %v1148 = vadd.f32 %v1068, %v1147
    %1149 = vadd.xlane.f32.xlu0 %v1148
    %v1150 = vpop.xlane.xlu0 %1149
    %v1151 = vsel %vm919, %v1074, 0.0
    %v1152 = vadd.f32 %v1072, %v1151
    %1153 = vadd.xlane.f32.xlu0 %v1152
    %v1154 = vpop.xlane.xlu0 %1153
    %v1155 = vsel %vm919, %v1078, 0.0
    %v1156 = vadd.f32 %v1076, %v1155
    %1157 = vadd.xlane.f32.xlu0 %v1156
    %v1158 = vpop.xlane.xlu0 %1157
    %v1159 = vsel %vm919, %v1082, 0.0
    %v1160 = vadd.f32 %v1080, %v1159
    %1161 = vadd.xlane.f32.xlu0 %v1160
    %v1162 = vpop.xlane.xlu0 %1161
    %v1163 = vsel %vm919, %v1086, 0.0
    %v1164 = vadd.f32 %v1084, %v1163
    %1165 = vadd.xlane.f32.xlu0 %v1164
    %v1166 = vpop.xlane.xlu0 %1165
    %v1167 = vsel %vm919, %v1090, 0.0
    %v1168 = vadd.f32 %v1088, %v1167
    %1169 = vadd.xlane.f32.xlu0 %v1168
    %v1170 = vpop.xlane.xlu0 %1169
    %v1171 = vsel %vm919, %v1094, 0.0
    %v1172 = vadd.f32 %v1092, %v1171
    %1173 = vadd.xlane.f32.xlu0 %v1172
    %v1174 = vpop.xlane.xlu0 %1173
    %v1175 = vsel %vm919, %v1098, 0.0
    %v1176 = vadd.f32 %v1096, %v1175
    %1177 = vadd.xlane.f32.xlu0 %v1176
    %v1178 = vpop.xlane.xlu0 %1177
    %v1179 = vsel %vm919, %v1102, 0.0
    %v1180 = vadd.f32 %v1100, %v1179
    %1181 = vadd.xlane.f32.xlu0 %v1180
    %v1182 = vpop.xlane.xlu0 %1181
    %v1183 = vsel %vm919, %v1106, 0.0
    %v1184 = vadd.f32 %v1104, %v1183
    %1185 = vadd.xlane.f32.xlu0 %v1184
    %v1186 = vpop.xlane.xlu0 %1185
    %v1187 = vsel %vm919, %v1110, 0.0
    %v1188 = vadd.f32 %v1108, %v1187
    %1189 = vadd.xlane.f32.xlu0 %v1188
    %v1190 = vpop.xlane.xlu0 %1189
    %v1191 = vsel %vm919, %v1114, 0.0
    %v1192 = vadd.f32 %v1112, %v1191
    %1193 = vadd.xlane.f32.xlu0 %v1192
    %v1194 = vpop.xlane.xlu0 %1193
    %v1195 = vsel %vm919, %v1118, 0.0
    %v1196 = vadd.f32 %v1116, %v1195
    %1197 = vadd.xlane.f32.xlu0 %v1196
    %v1198 = vpop.xlane.xlu0 %1197
    %v1199 = vsel %vm996, %v1120, 0.0
    %v1200 = vsel %vm998, %v1122, 0.0
    %v1201 = vadd.f32 %v1199, %v1200
    %1202 = vadd.xlane.f32.xlu0 %v1201
    %v1203 = vpop.xlane.xlu0 %1202
    %v1204 = vpack.c.bf16 %v1048, %v1044
    %v1205 = vpack.c.bf16 %v1050, %v1046
    %v1206 = vpack.c.bf16 %v1056, %v1052
    %v1207 = vpack.c.bf16 %v1058, %v1054
    %v1208 = vpack.c.bf16 %v1064, %v1060
    %v1209 = vpack.c.bf16 %v1066, %v1062
    %v1210 = vpack.c.bf16 %v1072, %v1068
    %v1211 = vpack.c.bf16 %v1074, %v1070
    %v1212 = vpack.c.bf16 %v1080, %v1076
    %v1213 = vpack.c.bf16 %v1082, %v1078
    %v1214 = vpack.c.bf16 %v1088, %v1084
    %v1215 = vpack.c.bf16 %v1090, %v1086
    %v1216 = vpack.c.bf16 %v1096, %v1092
    %v1217 = vpack.c.bf16 %v1098, %v1094
    %v1218 = vpack.c.bf16 %v1104, %v1100
    %v1219 = vpack.c.bf16 %v1106, %v1102
    %v1220 = vpack.c.bf16 %v1112, %v1108
    %v1221 = vpack.c.bf16 %v1114, %v1110
    %v1222 = vpack.c.bf16 %v1120, %v1116
    %v1223 = vpack.c.bf16 %v1122, %v1118
    %v1224 = vpack.c.bf16 %v297, %v294
    %v1225 = vpack.c.bf16 %v303, %v300
    %v1226 = vpack.c.bf16 %v309, %v306
    %v1227 = vpack.c.bf16 %v315, %v312
    %v1228 = vpack.c.bf16 %v321, %v318
    %v1229 = vpack.c.bf16 %v327, %v324
    %v1230 = vpack.c.bf16 %v333, %v330
    %v1231 = vpack.c.bf16 %v339, %v336
    %v1232 = vpack.c.bf16 %v345, %v342
    %v1233 = vpack.c.bf16 %v351, %v348
    %v1235 = vsel %vm919, %v1205, 0
    %v1238 = vsel %vm919, %v1207, 0
    %v1241 = vsel %vm919, %v1209, 0
    %v1244 = vsel %vm919, %v1211, 0
    %v1247 = vsel %vm919, %v1213, 0
    %v1250 = vsel %vm919, %v1215, 0
    %v1253 = vsel %vm919, %v1217, 0
    %v1256 = vsel %vm919, %v1219, 0
    %v1259 = vsel %vm919, %v1221, 0
    %v1262 = vsel %vm919, %v1223, 0
    %vm1264 = vcmask 1045504
    %v1266 = vsel %vm1264, %v1233, 0
    %1268 = vmatpush.bf16.msra.mxu0 %v1231
    %1269 = vmatpush.bf16.msra.mxu0 %v1230
    %1270 = vmatpush.bf16.msra.mxu0 %v1229
    %1271 = vmatpush.bf16.msra.mxu0 %v1228
    %1272 = vmatpush.bf16.msra.mxu0 %v1227
    %1273 = vmatpush.bf16.msra.mxu0 %v1226
    %1274 = vmatpush.bf16.msra.mxu0 %v1225
    %1275 = vmatpush.bf16.msra.mxu0 %v1224
    %1276 = vmatmul.bf16.gmra.mxu0 %v1204
    %v1277 = vpop.f32.mrf.mxu0
    %v1278 = vadd.f32 0.0, %v1277
    %v1279 = vpop.f32.mrf.mxu0
    %v1280 = vadd.f32 0.0, %v1279
    %1281 = vmatmul.bf16.gmra.mxu0 %v1206
    %v1282 = vpop.f32.mrf.mxu0
    %v1283 = vadd.f32 0.0, %v1282
    %v1284 = vpop.f32.mrf.mxu0
    %v1285 = vadd.f32 0.0, %v1284
    %1286 = vmatmul.bf16.gmra.mxu0 %v1208
    %v1287 = vpop.f32.mrf.mxu0
    %v1288 = vadd.f32 0.0, %v1287
    %v1289 = vpop.f32.mrf.mxu0
    %v1290 = vadd.f32 0.0, %v1289
    %1291 = vmatmul.bf16.gmra.mxu0 %v1210
    %v1292 = vpop.f32.mrf.mxu0
    %v1293 = vadd.f32 0.0, %v1292
    %v1294 = vpop.f32.mrf.mxu0
    %v1295 = vadd.f32 0.0, %v1294
    %1296 = vmatmul.bf16.gmra.mxu0 %v1212
    %v1297 = vpop.f32.mrf.mxu0
    %v1298 = vadd.f32 0.0, %v1297
    %v1299 = vpop.f32.mrf.mxu0
    %v1300 = vadd.f32 0.0, %v1299
    %1301 = vmatmul.bf16.gmra.mxu0 %v1214
    %v1302 = vpop.f32.mrf.mxu0
    %v1303 = vadd.f32 0.0, %v1302
    %v1304 = vpop.f32.mrf.mxu0
    %v1305 = vadd.f32 0.0, %v1304
    %1306 = vmatmul.bf16.gmra.mxu0 %v1216
    %v1307 = vpop.f32.mrf.mxu0
    %v1308 = vadd.f32 0.0, %v1307
    %v1309 = vpop.f32.mrf.mxu0
    %v1310 = vadd.f32 0.0, %v1309
    %1311 = vmatmul.bf16.gmra.mxu0 %v1218
    %v1312 = vpop.f32.mrf.mxu0
    %v1313 = vadd.f32 0.0, %v1312
    %v1314 = vpop.f32.mrf.mxu0
    %v1315 = vadd.f32 0.0, %v1314
    %1316 = vmatmul.bf16.gmra.mxu0 %v1220
    %v1317 = vpop.f32.mrf.mxu0
    %v1318 = vadd.f32 0.0, %v1317
    %v1319 = vpop.f32.mrf.mxu0
    %v1320 = vadd.f32 0.0, %v1319
    %1321 = vmatmul.bf16.gmra.mxu0 %v1222
    %v1322 = vpop.f32.mrf.mxu0
    %v1323 = vadd.f32 0.0, %v1322
    %v1324 = vpop.f32.mrf.mxu0
    %v1325 = vadd.f32 0.0, %v1324
    %1326 = vdwg.mxu0
    %1327 = vmatpush.bf16.msra.mxu0 0
    %1328 = vmatpush.bf16.msra.mxu0 0
    %1329 = vmatpush.bf16.msra.mxu0 0
    %1330 = vmatpush.bf16.msra.mxu0 0
    %1331 = vmatpush.bf16.msra.mxu0 0
    %1332 = vmatpush.bf16.msra.mxu0 0
    %1333 = vmatpush.bf16.msra.mxu0 %v1266
    %1334 = vmatpush.bf16.msra.mxu0 %v1232
    %1335 = vmatmul.bf16.gmra.mxu0 %v1235
    %v1336 = vpop.f32.mrf.mxu0
    %v1337 = vadd.f32 %v1278, %v1336
    %v1338 = vpop.f32.mrf.mxu0
    %v1339 = vadd.f32 %v1280, %v1338
    %1340 = vmatmul.bf16.gmra.mxu0 %v1238
    %v1341 = vpop.f32.mrf.mxu0
    %v1342 = vadd.f32 %v1283, %v1341
    %v1343 = vpop.f32.mrf.mxu0
    %v1344 = vadd.f32 %v1285, %v1343
    %1345 = vmatmul.bf16.gmra.mxu0 %v1241
    %v1346 = vpop.f32.mrf.mxu0
    %v1347 = vadd.f32 %v1288, %v1346
    %v1348 = vpop.f32.mrf.mxu0
    %v1349 = vadd.f32 %v1290, %v1348
    %1350 = vmatmul.bf16.gmra.mxu0 %v1244
    %v1351 = vpop.f32.mrf.mxu0
    %v1352 = vadd.f32 %v1293, %v1351
    %v1353 = vpop.f32.mrf.mxu0
    %v1354 = vadd.f32 %v1295, %v1353
    %1355 = vmatmul.bf16.gmra.mxu0 %v1247
    %v1356 = vpop.f32.mrf.mxu0
    %v1357 = vadd.f32 %v1298, %v1356
    %v1358 = vpop.f32.mrf.mxu0
    %v1359 = vadd.f32 %v1300, %v1358
    %1360 = vmatmul.bf16.gmra.mxu0 %v1250
    %v1361 = vpop.f32.mrf.mxu0
    %v1362 = vadd.f32 %v1303, %v1361
    %v1363 = vpop.f32.mrf.mxu0
    %v1364 = vadd.f32 %v1305, %v1363
    %1365 = vmatmul.bf16.gmra.mxu0 %v1253
    %v1366 = vpop.f32.mrf.mxu0
    %v1367 = vadd.f32 %v1308, %v1366
    %v1368 = vpop.f32.mrf.mxu0
    %v1369 = vadd.f32 %v1310, %v1368
    %1370 = vmatmul.bf16.gmra.mxu0 %v1256
    %v1371 = vpop.f32.mrf.mxu0
    %v1372 = vadd.f32 %v1313, %v1371
    %v1373 = vpop.f32.mrf.mxu0
    %v1374 = vadd.f32 %v1315, %v1373
    %1375 = vmatmul.bf16.gmra.mxu0 %v1259
    %v1376 = vpop.f32.mrf.mxu0
    %v1377 = vadd.f32 %v1318, %v1376
    %v1378 = vpop.f32.mrf.mxu0
    %v1379 = vadd.f32 %v1320, %v1378
    %1380 = vmatmul.bf16.gmra.mxu0 %v1262
    %v1381 = vpop.f32.mrf.mxu0
    %v1382 = vadd.f32 %v1323, %v1381
    %v1383 = vpop.f32.mrf.mxu0
    %v1384 = vadd.f32 %v1325, %v1383
    %1385 = vdwg.mxu0
    %v1386 = vrcp.pop %v1126
    %v1387 = vrcp.pop %v1130
    %v1388 = vrcp.pop %v1134
    %v1389 = vrcp.pop %v1138
    %v1390 = vrcp.pop %v1142
    %v1391 = vrcp.pop %v1146
    %v1392 = vrcp.pop %v1150
    %v1393 = vrcp.pop %v1154
    %v1394 = vrcp.pop %v1158
    %v1395 = vrcp.pop %v1162
    %v1396 = vrcp.pop %v1166
    %v1397 = vrcp.pop %v1170
    %v1398 = vrcp.pop %v1174
    %v1399 = vrcp.pop %v1178
    %v1400 = vrcp.pop %v1182
    %v1401 = vrcp.pop %v1186
    %v1402 = vrcp.pop %v1190
    %v1403 = vrcp.pop %v1194
    %v1404 = vrcp.pop %v1198
    %v1405 = vrcp.pop %v1203
    %v1406 = vmul.f32 %v1337, %v1386
    %v1407 = vmul.f32 %v1339, %v1387
    %v1408 = vmul.f32 %v1342, %v1388
    %v1409 = vmul.f32 %v1344, %v1389
    %v1410 = vmul.f32 %v1347, %v1390
    %v1411 = vmul.f32 %v1349, %v1391
    %v1412 = vmul.f32 %v1352, %v1392
    %v1413 = vmul.f32 %v1354, %v1393
    %v1414 = vmul.f32 %v1357, %v1394
    %v1415 = vmul.f32 %v1359, %v1395
    %v1416 = vmul.f32 %v1362, %v1396
    %v1417 = vmul.f32 %v1364, %v1397
    %v1418 = vmul.f32 %v1367, %v1398
    %v1419 = vmul.f32 %v1369, %v1399
    %v1420 = vmul.f32 %v1372, %v1400
    %v1421 = vmul.f32 %v1374, %v1401
    %v1422 = vmul.f32 %v1377, %v1402
    %v1423 = vmul.f32 %v1379, %v1403
    %v1424 = vmul.f32 %v1382, %v1404
    %v1425 = vmul.f32 %v1384, %v1405
    %vm1426 = vcmp.gt.f32.partialorder %v1406, 0.0
    %vm1427 = vcmp.gt.f32.partialorder %v1407, 0.0
    %vm1428 = vcmp.gt.f32.partialorder %v1408, 0.0
    %vm1429 = vcmp.gt.f32.partialorder %v1409, 0.0
    %vm1430 = vcmp.gt.f32.partialorder %v1410, 0.0
    %vm1431 = vcmp.gt.f32.partialorder %v1411, 0.0
    %vm1432 = vcmp.gt.f32.partialorder %v1412, 0.0
    %vm1433 = vcmp.gt.f32.partialorder %v1413, 0.0
    %vm1434 = vcmp.gt.f32.partialorder %v1414, 0.0
    %vm1435 = vcmp.gt.f32.partialorder %v1415, 0.0
    %vm1436 = vcmp.gt.f32.partialorder %v1416, 0.0
    %vm1437 = vcmp.gt.f32.partialorder %v1417, 0.0
    %vm1438 = vcmp.gt.f32.partialorder %v1418, 0.0
    %vm1439 = vcmp.gt.f32.partialorder %v1419, 0.0
    %vm1440 = vcmp.gt.f32.partialorder %v1420, 0.0
    %vm1441 = vcmp.gt.f32.partialorder %v1421, 0.0
    %vm1442 = vcmp.gt.f32.partialorder %v1422, 0.0
    %vm1443 = vcmp.gt.f32.partialorder %v1423, 0.0
    %vm1444 = vcmp.gt.f32.partialorder %v1424, 0.0
    %vm1445 = vcmp.gt.f32.partialorder %v1425, 0.0
    %v1446 = vmin.f32 %v1406, 0.0
    %v1447 = vmin.f32 %v1407, 0.0
    %v1448 = vmin.f32 %v1408, 0.0
    %v1449 = vmin.f32 %v1409, 0.0
    %v1450 = vmin.f32 %v1410, 0.0
    %v1451 = vmin.f32 %v1411, 0.0
    %v1452 = vmin.f32 %v1412, 0.0
    %v1453 = vmin.f32 %v1413, 0.0
    %v1454 = vmin.f32 %v1414, 0.0
    %v1455 = vmin.f32 %v1415, 0.0
    %v1456 = vmin.f32 %v1416, 0.0
    %v1457 = vmin.f32 %v1417, 0.0
    %v1458 = vmin.f32 %v1418, 0.0
    %v1459 = vmin.f32 %v1419, 0.0
    %v1460 = vmin.f32 %v1420, 0.0
    %v1461 = vmin.f32 %v1421, 0.0
    %v1462 = vmin.f32 %v1422, 0.0
    %v1463 = vmin.f32 %v1423, 0.0
    %v1464 = vmin.f32 %v1424, 0.0
    %v1465 = vmin.f32 %v1425, 0.0
    %v1466 = vmul.f32 %v1446, 1.442695
    %v1467 = vpow.pop %v1466
    %v1468 = vmul.f32 %v1447, 1.442695
    %v1469 = vpow.pop %v1468
    %v1470 = vmul.f32 %v1448, 1.442695
    %v1471 = vpow.pop %v1470
    %v1472 = vmul.f32 %v1449, 1.442695
    %v1473 = vpow.pop %v1472
    %v1474 = vmul.f32 %v1450, 1.442695
    %v1475 = vpow.pop %v1474
    %v1476 = vmul.f32 %v1451, 1.442695
    %v1477 = vpow.pop %v1476
    %v1478 = vmul.f32 %v1452, 1.442695
    %v1479 = vpow.pop %v1478
    %v1480 = vmul.f32 %v1453, 1.442695
    %v1481 = vpow.pop %v1480
    %v1482 = vmul.f32 %v1454, 1.442695
    %v1483 = vpow.pop %v1482
    %v1484 = vmul.f32 %v1455, 1.442695
    %v1485 = vpow.pop %v1484
    %v1486 = vmul.f32 %v1456, 1.442695
    %v1487 = vpow.pop %v1486
    %v1488 = vmul.f32 %v1457, 1.442695
    %v1489 = vpow.pop %v1488
    %v1490 = vmul.f32 %v1458, 1.442695
    %v1491 = vpow.pop %v1490
    %v1492 = vmul.f32 %v1459, 1.442695
    %v1493 = vpow.pop %v1492
    %v1494 = vmul.f32 %v1460, 1.442695
    %v1495 = vpow.pop %v1494
    %v1496 = vmul.f32 %v1461, 1.442695
    %v1497 = vpow.pop %v1496
    %v1498 = vmul.f32 %v1462, 1.442695
    %v1499 = vpow.pop %v1498
    %v1500 = vmul.f32 %v1463, 1.442695
    %v1501 = vpow.pop %v1500
    %v1502 = vmul.f32 %v1464, 1.442695
    %v1503 = vpow.pop %v1502
    %v1504 = vmul.f32 %v1465, 1.442695
    %v1505 = vpow.pop %v1504
    %v1506 = vsub.f32 %v1467, 1.0
    %v1507 = vsub.f32 %v1469, 1.0
    %v1508 = vsub.f32 %v1471, 1.0
    %v1509 = vsub.f32 %v1473, 1.0
    %v1510 = vsub.f32 %v1475, 1.0
    %v1511 = vsub.f32 %v1477, 1.0
    %v1512 = vsub.f32 %v1479, 1.0
    %v1513 = vsub.f32 %v1481, 1.0
    %v1514 = vsub.f32 %v1483, 1.0
    %v1515 = vsub.f32 %v1485, 1.0
    %v1516 = vsub.f32 %v1487, 1.0
    %v1517 = vsub.f32 %v1489, 1.0
    %v1518 = vsub.f32 %v1491, 1.0
    %v1519 = vsub.f32 %v1493, 1.0
    %v1520 = vsub.f32 %v1495, 1.0
    %v1521 = vsub.f32 %v1497, 1.0
    %v1522 = vsub.f32 %v1499, 1.0
    %v1523 = vsub.f32 %v1501, 1.0
    %v1524 = vsub.f32 %v1503, 1.0
    %v1525 = vsub.f32 %v1505, 1.0
    %v1526 = vsel %vm1426, %v1406, %v1506
    %v1527 = vsel %vm1427, %v1407, %v1507
    %v1528 = vsel %vm1428, %v1408, %v1508
    %v1529 = vsel %vm1429, %v1409, %v1509
    %v1530 = vsel %vm1430, %v1410, %v1510
    %v1531 = vsel %vm1431, %v1411, %v1511
    %v1532 = vsel %vm1432, %v1412, %v1512
    %v1533 = vsel %vm1433, %v1413, %v1513
    %v1534 = vsel %vm1434, %v1414, %v1514
    %v1535 = vsel %vm1435, %v1415, %v1515
    %v1536 = vsel %vm1436, %v1416, %v1516
    %v1537 = vsel %vm1437, %v1417, %v1517
    %v1538 = vsel %vm1438, %v1418, %v1518
    %v1539 = vsel %vm1439, %v1419, %v1519
    %v1540 = vsel %vm1440, %v1420, %v1520
    %v1541 = vsel %vm1441, %v1421, %v1521
    %v1542 = vsel %vm1442, %v1422, %v1522
    %v1543 = vsel %vm1443, %v1423, %v1523
    %v1544 = vsel %vm1444, %v1424, %v1524
    %v1545 = vsel %vm1445, %v1425, %v1525
    %1546 = vrot.lane.b32.xlu0 %v434, 125
    %v1547 = vpop.permute.xlu0 %1546
    %1548 = vrot.lane.b32.xlu0 %v437, 125
    %v1549 = vpop.permute.xlu0 %1548
    %1550 = vrot.lane.b32.xlu0 %v440, 125
    %v1551 = vpop.permute.xlu0 %1550
    %1552 = vrot.lane.b32.xlu0 %v443, 125
    %v1553 = vpop.permute.xlu0 %1552
    %1554 = vrot.lane.b32.xlu0 %v446, 125
    %v1555 = vpop.permute.xlu0 %1554
    %1556 = vrot.lane.b32.xlu0 %v449, 125
    %v1557 = vpop.permute.xlu0 %1556
    %1558 = vrot.lane.b32.xlu0 %v452, 125
    %v1559 = vpop.permute.xlu0 %1558
    %1560 = vrot.lane.b32.xlu0 %v455, 125
    %v1561 = vpop.permute.xlu0 %1560
    %1562 = vrot.lane.b32.xlu0 %v458, 125
    %v1563 = vpop.permute.xlu0 %1562
    %1564 = vrot.lane.b32.xlu0 %v461, 125
    %v1565 = vpop.permute.xlu0 %1564
    %1566 = vrot.lane.b32.xlu0 %v464, 125
    %v1567 = vpop.permute.xlu0 %1566
    %1568 = vrot.lane.b32.xlu0 %v467, 125
    %v1569 = vpop.permute.xlu0 %1568
    %1570 = vrot.lane.b32.xlu0 %v470, 125
    %v1571 = vpop.permute.xlu0 %1570
    %1572 = vrot.lane.b32.xlu0 %v473, 125
    %v1573 = vpop.permute.xlu0 %1572
    %1574 = vrot.lane.b32.xlu0 %v476, 125
    %v1575 = vpop.permute.xlu0 %1574
    %1576 = vrot.lane.b32.xlu0 %v479, 125
    %v1577 = vpop.permute.xlu0 %1576
    %1578 = vrot.lane.b32.xlu0 %v482, 125
    %v1579 = vpop.permute.xlu0 %1578
    %1580 = vrot.lane.b32.xlu0 %v485, 125
    %v1581 = vpop.permute.xlu0 %1580
    %1582 = vrot.lane.b32.xlu0 %v488, 125
    %v1583 = vpop.permute.xlu0 %1582
    %1584 = vrot.lane.b32.xlu0 %v491, 125
    %v1585 = vpop.permute.xlu0 %1584
    %1606 = vxpose.xlu0.b32.start [1/16] %v1547, 128
    %1607 = vxpose.xlu0.b32.cont [2/16] %v1549, 128
    %1608 = vxpose.xlu0.b32.cont [3/16] %v1551, 128
    %1609 = vxpose.xlu0.b32.cont [4/16] %v1553, 128
    %1610 = vxpose.xlu0.b32.cont [5/16] %v1555, 128
    %1611 = vxpose.xlu0.b32.cont [6/16] %v1557, 128
    %1612 = vxpose.xlu0.b32.cont [7/16] %v1559, 128
    %1613 = vxpose.xlu0.b32.cont [8/16] %v1561, 128
    %1614 = vxpose.xlu0.b32.cont [9/16] %v1563, 128
    %1615 = vxpose.xlu0.b32.cont [10/16] %v1565, 128
    %1616 = vxpose.xlu0.b32.cont [11/16] %v1567, 128
    %1617 = vxpose.xlu0.b32.cont [12/16] %v1569, 128
    %1618 = vxpose.xlu0.b32.cont [13/16] %v1571, 128
    %1619 = vxpose.xlu0.b32.cont [14/16] %v1573, 128
    %1620 = vxpose.xlu0.b32.cont [15/16] %v1575, 128
    %1621 = vxpose.xlu0.b32.end [16/16] %v1577, 128
    %v1622 = vpop.trf.xlu0
    %v1623 = vpop.trf.xlu0
    %v1624 = vpop.trf.xlu0
    %v1625 = vpop.trf.xlu0
    %v1626 = vpop.trf.xlu0
    %v1627 = vpop.trf.xlu0
    %v1628 = vpop.trf.xlu0
    %v1629 = vpop.trf.xlu0
    %v1630 = vpop.trf.xlu0
    %v1631 = vpop.trf.xlu0
    %v1632 = vpop.trf.xlu0
    %v1633 = vpop.trf.xlu0
    %v1634 = vpop.trf.xlu0
    %v1635 = vpop.trf.xlu0
    %v1636 = vpop.trf.xlu0
    %v1637 = vpop.trf.xlu0
    %1638 = vxpose.xlu0.b32.start [1/16] %v1579, 128
    %1639 = vxpose.xlu0.b32.cont [2/16] %v1581, 128
    %1640 = vxpose.xlu0.b32.cont [3/16] %v1583, 128
    %1641 = vxpose.xlu0.b32.cont [4/16] %v1585, 128
    %1642 = vxpose.xlu0.b32.cont [5/16] 0.0, 128
    %1643 = vxpose.xlu0.b32.cont [6/16] 0.0, 128
    %1644 = vxpose.xlu0.b32.cont [7/16] 0.0, 128
    %1645 = vxpose.xlu0.b32.cont [8/16] 0.0, 128
    %1646 = vxpose.xlu0.b32.cont [9/16] 0.0, 128
    %1647 = vxpose.xlu0.b32.cont [10/16] 0.0, 128
    %1648 = vxpose.xlu0.b32.cont [11/16] 0.0, 128
    %1649 = vxpose.xlu0.b32.cont [12/16] 0.0, 128
    %1650 = vxpose.xlu0.b32.cont [13/16] 0.0, 128
    %1651 = vxpose.xlu0.b32.cont [14/16] 0.0, 128
    %1652 = vxpose.xlu0.b32.cont [15/16] 0.0, 128
    %1653 = vxpose.xlu0.b32.end [16/16] 0.0, 128
    %v1654 = vpop.trf.xlu0
    %v1655 = vpop.trf.xlu0
    %v1656 = vpop.trf.xlu0
    %v1657 = vpop.trf.xlu0
    %v1658 = vpop.trf.xlu0
    %v1659 = vpop.trf.xlu0
    %v1660 = vpop.trf.xlu0
    %v1661 = vpop.trf.xlu0
    %v1662 = vpop.trf.xlu0
    %v1663 = vpop.trf.xlu0
    %v1664 = vpop.trf.xlu0
    %v1665 = vpop.trf.xlu0
    %v1666 = vpop.trf.xlu0
    %v1667 = vpop.trf.xlu0
    %v1668 = vpop.trf.xlu0
    %v1669 = vpop.trf.xlu0
    %1670 = vset.pattern.permute.xlu0 2
    %1671 = vperm.xlu0 %1670, %v434
    %v1672 = vpop.permute.xlu0 %1671
    %1674 = vset.pattern.permute.xlu0 2
    %1675 = vperm.xlu0 %1674, %v437
    %v1676 = vpop.permute.xlu0 %1675
    %1678 = vset.pattern.permute.xlu0 2
    %1679 = vperm.xlu0 %1678, %v440
    %v1680 = vpop.permute.xlu0 %1679
    %1682 = vset.pattern.permute.xlu0 2
    %1683 = vperm.xlu0 %1682, %v443
    %v1684 = vpop.permute.xlu0 %1683
    %1686 = vset.pattern.permute.xlu0 2
    %1687 = vperm.xlu0 %1686, %v446
    %v1688 = vpop.permute.xlu0 %1687
    %1690 = vset.pattern.permute.xlu0 2
    %1691 = vperm.xlu0 %1690, %v449
    %v1692 = vpop.permute.xlu0 %1691
    %1694 = vset.pattern.permute.xlu0 2
    %1695 = vperm.xlu0 %1694, %v452
    %v1696 = vpop.permute.xlu0 %1695
    %1698 = vset.pattern.permute.xlu0 2
    %1699 = vperm.xlu0 %1698, %v455
    %v1700 = vpop.permute.xlu0 %1699
    %1702 = vset.pattern.permute.xlu0 2
    %1703 = vperm.xlu0 %1702, %v458
    %v1704 = vpop.permute.xlu0 %1703
    %1706 = vset.pattern.permute.xlu0 2
    %1707 = vperm.xlu0 %1706, %v461
    %v1708 = vpop.permute.xlu0 %1707
    %1710 = vset.pattern.permute.xlu0 2
    %1711 = vperm.xlu0 %1710, %v464
    %v1712 = vpop.permute.xlu0 %1711
    %1714 = vset.pattern.permute.xlu0 2
    %1715 = vperm.xlu0 %1714, %v467
    %v1716 = vpop.permute.xlu0 %1715
    %1718 = vset.pattern.permute.xlu0 2
    %1719 = vperm.xlu0 %1718, %v470
    %v1720 = vpop.permute.xlu0 %1719
    %1722 = vset.pattern.permute.xlu0 2
    %1723 = vperm.xlu0 %1722, %v473
    %v1724 = vpop.permute.xlu0 %1723
    %1726 = vset.pattern.permute.xlu0 2
    %1727 = vperm.xlu0 %1726, %v476
    %v1728 = vpop.permute.xlu0 %1727
    %1730 = vset.pattern.permute.xlu0 2
    %1731 = vperm.xlu0 %1730, %v479
    %v1732 = vpop.permute.xlu0 %1731
    %1734 = vset.pattern.permute.xlu0 2
    %1735 = vperm.xlu0 %1734, %v482
    %v1736 = vpop.permute.xlu0 %1735
    %1738 = vset.pattern.permute.xlu0 2
    %1739 = vperm.xlu0 %1738, %v485
    %v1740 = vpop.permute.xlu0 %1739
    %1742 = vset.pattern.permute.xlu0 2
    %1743 = vperm.xlu0 %1742, %v488
    %v1744 = vpop.permute.xlu0 %1743
    %1746 = vset.pattern.permute.xlu0 2
    %1747 = vperm.xlu0 %1746, %v491
    %v1748 = vpop.permute.xlu0 %1747
    %v1750 = vperm.slane %v1622, 0
    %v1751 = vperm.slane %v1654, 0
    %v1752 = vadd.f32 %v1672, %v1750
    %v1753 = vadd.f32 %v1672, %v1751
    %v1754 = vadd.f32 %v1676, %v1750
    %v1755 = vadd.f32 %v1676, %v1751
    %v1756 = vadd.f32 %v1680, %v1750
    %v1757 = vadd.f32 %v1680, %v1751
    %v1758 = vadd.f32 %v1684, %v1750
    %v1759 = vadd.f32 %v1684, %v1751
    %v1760 = vadd.f32 %v1688, %v1750
    %v1761 = vadd.f32 %v1688, %v1751
    %v1762 = vadd.f32 %v1692, %v1750
    %v1763 = vadd.f32 %v1692, %v1751
    %v1764 = vadd.f32 %v1696, %v1750
    %v1765 = vadd.f32 %v1696, %v1751
    %v1766 = vadd.f32 %v1700, %v1750
    %v1767 = vadd.f32 %v1700, %v1751
    %v1768 = vadd.f32 %v1704, %v1750
    %v1769 = vadd.f32 %v1704, %v1751
    %v1770 = vadd.f32 %v1708, %v1750
    %v1771 = vadd.f32 %v1708, %v1751
    %v1772 = vadd.f32 %v1712, %v1750
    %v1773 = vadd.f32 %v1712, %v1751
    %v1774 = vadd.f32 %v1716, %v1750
    %v1775 = vadd.f32 %v1716, %v1751
    %v1776 = vadd.f32 %v1720, %v1750
    %v1777 = vadd.f32 %v1720, %v1751
    %v1778 = vadd.f32 %v1724, %v1750
    %v1779 = vadd.f32 %v1724, %v1751
    %v1780 = vadd.f32 %v1728, %v1750
    %v1781 = vadd.f32 %v1728, %v1751
    %v1782 = vadd.f32 %v1732, %v1750
    %v1783 = vadd.f32 %v1732, %v1751
    %v1784 = vadd.f32 %v1736, %v1750
    %v1785 = vadd.f32 %v1736, %v1751
    %v1786 = vadd.f32 %v1740, %v1750
    %v1787 = vadd.f32 %v1740, %v1751
    %v1788 = vadd.f32 %v1744, %v1750
    %v1789 = vadd.f32 %v1744, %v1751
    %v1790 = vadd.f32 %v1748, %v1750
    %v1791 = vadd.f32 %v1748, %v1751
    %vm1792 = vcmp.gt.f32.partialorder %v1752, 0.0
    %vm1793 = vcmp.gt.f32.partialorder %v1753, 0.0
    %vm1794 = vcmp.gt.f32.partialorder %v1754, 0.0
    %vm1795 = vcmp.gt.f32.partialorder %v1755, 0.0
    %vm1796 = vcmp.gt.f32.partialorder %v1756, 0.0
    %vm1797 = vcmp.gt.f32.partialorder %v1757, 0.0
    %vm1798 = vcmp.gt.f32.partialorder %v1758, 0.0
    %vm1799 = vcmp.gt.f32.partialorder %v1759, 0.0
    %vm1800 = vcmp.gt.f32.partialorder %v1760, 0.0
    %vm1801 = vcmp.gt.f32.partialorder %v1761, 0.0
    %vm1802 = vcmp.gt.f32.partialorder %v1762, 0.0
    %vm1803 = vcmp.gt.f32.partialorder %v1763, 0.0
    %vm1804 = vcmp.gt.f32.partialorder %v1764, 0.0
    %vm1805 = vcmp.gt.f32.partialorder %v1765, 0.0
    %vm1806 = vcmp.gt.f32.partialorder %v1766, 0.0
    %vm1807 = vcmp.gt.f32.partialorder %v1767, 0.0
    %vm1808 = vcmp.gt.f32.partialorder %v1768, 0.0
    %vm1809 = vcmp.gt.f32.partialorder %v1769, 0.0
    %vm1810 = vcmp.gt.f32.partialorder %v1770, 0.0
    %vm1811 = vcmp.gt.f32.partialorder %v1771, 0.0
    %vm1812 = vcmp.gt.f32.partialorder %v1772, 0.0
    %vm1813 = vcmp.gt.f32.partialorder %v1773, 0.0
    %vm1814 = vcmp.gt.f32.partialorder %v1774, 0.0
    %vm1815 = vcmp.gt.f32.partialorder %v1775, 0.0
    %vm1816 = vcmp.gt.f32.partialorder %v1776, 0.0
    %vm1817 = vcmp.gt.f32.partialorder %v1777, 0.0
    %vm1818 = vcmp.gt.f32.partialorder %v1778, 0.0
    %vm1819 = vcmp.gt.f32.partialorder %v1779, 0.0
    %vm1820 = vcmp.gt.f32.partialorder %v1780, 0.0
    %vm1821 = vcmp.gt.f32.partialorder %v1781, 0.0
    %vm1822 = vcmp.gt.f32.partialorder %v1782, 0.0
    %vm1823 = vcmp.gt.f32.partialorder %v1783, 0.0
    %vm1824 = vcmp.gt.f32.partialorder %v1784, 0.0
    %vm1825 = vcmp.gt.f32.partialorder %v1785, 0.0
    %vm1826 = vcmp.gt.f32.partialorder %v1786, 0.0
    %vm1827 = vcmp.gt.f32.partialorder %v1787, 0.0
    %vm1828 = vcmp.gt.f32.partialorder %v1788, 0.0
    %vm1829 = vcmp.gt.f32.partialorder %v1789, 0.0
    %vm1830 = vcmp.gt.f32.partialorder %v1790, 0.0
    %vm1831 = vcmp.gt.f32.partialorder %v1791, 0.0
    %v1832 = vmul.f32 %v1752, 0.2
    %v1833 = vmul.f32 %v1753, 0.2
    %v1834 = vmul.f32 %v1754, 0.2
    %v1835 = vmul.f32 %v1755, 0.2
    %v1836 = vmul.f32 %v1756, 0.2
    %v1837 = vmul.f32 %v1757, 0.2
    %v1838 = vmul.f32 %v1758, 0.2
    %v1839 = vmul.f32 %v1759, 0.2
    %v1840 = vmul.f32 %v1760, 0.2
    %v1841 = vmul.f32 %v1761, 0.2
    %v1842 = vmul.f32 %v1762, 0.2
    %v1843 = vmul.f32 %v1763, 0.2
    %v1844 = vmul.f32 %v1764, 0.2
    %v1845 = vmul.f32 %v1765, 0.2
    %v1846 = vmul.f32 %v1766, 0.2
    %v1847 = vmul.f32 %v1767, 0.2
    %v1848 = vmul.f32 %v1768, 0.2
    %v1849 = vmul.f32 %v1769, 0.2
    %v1850 = vmul.f32 %v1770, 0.2
    %v1851 = vmul.f32 %v1771, 0.2
    %v1852 = vmul.f32 %v1772, 0.2
    %v1853 = vmul.f32 %v1773, 0.2
    %v1854 = vmul.f32 %v1774, 0.2
    %v1855 = vmul.f32 %v1775, 0.2
    %v1856 = vmul.f32 %v1776, 0.2
    %v1857 = vmul.f32 %v1777, 0.2
    %v1858 = vmul.f32 %v1778, 0.2
    %v1859 = vmul.f32 %v1779, 0.2
    %v1860 = vmul.f32 %v1780, 0.2
    %v1861 = vmul.f32 %v1781, 0.2
    %v1862 = vmul.f32 %v1782, 0.2
    %v1863 = vmul.f32 %v1783, 0.2
    %v1864 = vmul.f32 %v1784, 0.2
    %v1865 = vmul.f32 %v1785, 0.2
    %v1866 = vmul.f32 %v1786, 0.2
    %v1867 = vmul.f32 %v1787, 0.2
    %v1868 = vmul.f32 %v1788, 0.2
    %v1869 = vmul.f32 %v1789, 0.2
    %v1870 = vmul.f32 %v1790, 0.2
    %v1871 = vmul.f32 %v1791, 0.2
    %v1872 = vsel %vm1792, %v1752, %v1832
    %v1873 = vsel %vm1793, %v1753, %v1833
    %v1874 = vsel %vm1794, %v1754, %v1834
    %v1875 = vsel %vm1795, %v1755, %v1835
    %v1876 = vsel %vm1796, %v1756, %v1836
    %v1877 = vsel %vm1797, %v1757, %v1837
    %v1878 = vsel %vm1798, %v1758, %v1838
    %v1879 = vsel %vm1799, %v1759, %v1839
    %v1880 = vsel %vm1800, %v1760, %v1840
    %v1881 = vsel %vm1801, %v1761, %v1841
    %v1882 = vsel %vm1802, %v1762, %v1842
    %v1883 = vsel %vm1803, %v1763, %v1843
    %v1884 = vsel %vm1804, %v1764, %v1844
    %v1885 = vsel %vm1805, %v1765, %v1845
    %v1886 = vsel %vm1806, %v1766, %v1846
    %v1887 = vsel %vm1807, %v1767, %v1847
    %v1888 = vsel %vm1808, %v1768, %v1848
    %v1889 = vsel %vm1809, %v1769, %v1849
    %v1890 = vsel %vm1810, %v1770, %v1850
    %v1891 = vsel %vm1811, %v1771, %v1851
    %v1892 = vsel %vm1812, %v1772, %v1852
    %v1893 = vsel %vm1813, %v1773, %v1853
    %v1894 = vsel %vm1814, %v1774, %v1854
    %v1895 = vsel %vm1815, %v1775, %v1855
    %v1896 = vsel %vm1816, %v1776, %v1856
    %v1897 = vsel %vm1817, %v1777, %v1857
    %v1898 = vsel %vm1818, %v1778, %v1858
    %v1899 = vsel %vm1819, %v1779, %v1859
    %v1900 = vsel %vm1820, %v1780, %v1860
    %v1901 = vsel %vm1821, %v1781, %v1861
    %v1902 = vsel %vm1822, %v1782, %v1862
    %v1903 = vsel %vm1823, %v1783, %v1863
    %v1904 = vsel %vm1824, %v1784, %v1864
    %v1905 = vsel %vm1825, %v1785, %v1865
    %v1906 = vsel %vm1826, %v1786, %v1866
    %v1907 = vsel %vm1827, %v1787, %v1867
    %v1908 = vsel %vm1828, %v1788, %v1868
    %v1909 = vsel %vm1829, %v1789, %v1869
    %v1910 = vsel %vm1830, %v1790, %v1870
    %v1911 = vsel %vm1831, %v1791, %v1871
    %v1912 = vadd.f32 %v1872, %v154
    %v1913 = vadd.f32 %v1873, %v155
    %v1914 = vadd.f32 %v1874, %v156
    %v1915 = vadd.f32 %v1875, %v157
    %v1916 = vadd.f32 %v1876, %v158
    %v1917 = vadd.f32 %v1877, %v159
    %v1918 = vadd.f32 %v1878, %v160
    %v1919 = vadd.f32 %v1879, %v161
    %v1920 = vadd.f32 %v1880, %v162
    %v1921 = vadd.f32 %v1881, %v163
    %v1922 = vadd.f32 %v1882, %v164
    %v1923 = vadd.f32 %v1883, %v165
    %v1924 = vadd.f32 %v1884, %v166
    %v1925 = vadd.f32 %v1885, %v167
    %v1926 = vadd.f32 %v1886, %v168
    %v1927 = vadd.f32 %v1887, %v169
    %v1928 = vadd.f32 %v1888, %v170
    %v1929 = vadd.f32 %v1889, %v171
    %v1930 = vadd.f32 %v1890, %v172
    %v1931 = vadd.f32 %v1891, %v173
    %v1932 = vadd.f32 %v1892, %v174
    %v1933 = vadd.f32 %v1893, %v175
    %v1934 = vadd.f32 %v1894, %v176
    %v1935 = vadd.f32 %v1895, %v177
    %v1936 = vadd.f32 %v1896, %v178
    %v1937 = vadd.f32 %v1897, %v179
    %v1938 = vadd.f32 %v1898, %v180
    %v1939 = vadd.f32 %v1899, %v181
    %v1940 = vadd.f32 %v1900, %v182
    %v1941 = vadd.f32 %v1901, %v183
    %v1942 = vadd.f32 %v1902, %v184
    %v1943 = vadd.f32 %v1903, %v185
    %v1944 = vadd.f32 %v1904, %v186
    %v1945 = vadd.f32 %v1905, %v187
    %v1946 = vadd.f32 %v1906, %v188
    %v1947 = vadd.f32 %v1907, %v189
    %v1948 = vadd.f32 %v1908, %v190
    %v1949 = vadd.f32 %v1909, %v191
    %v1950 = vadd.f32 %v1910, %v192
    %v1951 = vadd.f32 %v1911, %v193
    %v1952 = vsel %vm919, %v1913, -inf
    %v1953 = vmax.f32 %v1912, %v1952
    %1954 = vmax.xlane.f32.xlu0 %v1953
    %v1955 = vpop.xlane.xlu0 %1954
    %v1956 = vsel %vm919, %v1915, -inf
    %v1957 = vmax.f32 %v1914, %v1956
    %1958 = vmax.xlane.f32.xlu0 %v1957
    %v1959 = vpop.xlane.xlu0 %1958
    %v1960 = vsel %vm919, %v1917, -inf
    %v1961 = vmax.f32 %v1916, %v1960
    %1962 = vmax.xlane.f32.xlu0 %v1961
    %v1963 = vpop.xlane.xlu0 %1962
    %v1964 = vsel %vm919, %v1919, -inf
    %v1965 = vmax.f32 %v1918, %v1964
    %1966 = vmax.xlane.f32.xlu0 %v1965
    %v1967 = vpop.xlane.xlu0 %1966
    %v1968 = vsel %vm919, %v1921, -inf
    %v1969 = vmax.f32 %v1920, %v1968
    %1970 = vmax.xlane.f32.xlu0 %v1969
    %v1971 = vpop.xlane.xlu0 %1970
    %v1972 = vsel %vm919, %v1923, -inf
    %v1973 = vmax.f32 %v1922, %v1972
    %1974 = vmax.xlane.f32.xlu0 %v1973
    %v1975 = vpop.xlane.xlu0 %1974
    %v1976 = vsel %vm919, %v1925, -inf
    %v1977 = vmax.f32 %v1924, %v1976
    %1978 = vmax.xlane.f32.xlu0 %v1977
    %v1979 = vpop.xlane.xlu0 %1978
    %v1980 = vsel %vm919, %v1927, -inf
    %v1981 = vmax.f32 %v1926, %v1980
    %1982 = vmax.xlane.f32.xlu0 %v1981
    %v1983 = vpop.xlane.xlu0 %1982
    %v1984 = vsel %vm919, %v1929, -inf
    %v1985 = vmax.f32 %v1928, %v1984
    %1986 = vmax.xlane.f32.xlu0 %v1985
    %v1987 = vpop.xlane.xlu0 %1986
    %v1988 = vsel %vm919, %v1931, -inf
    %v1989 = vmax.f32 %v1930, %v1988
    %1990 = vmax.xlane.f32.xlu0 %v1989
    %v1991 = vpop.xlane.xlu0 %1990
    %v1992 = vsel %vm919, %v1933, -inf
    %v1993 = vmax.f32 %v1932, %v1992
    %1994 = vmax.xlane.f32.xlu0 %v1993
    %v1995 = vpop.xlane.xlu0 %1994
    %v1996 = vsel %vm919, %v1935, -inf
    %v1997 = vmax.f32 %v1934, %v1996
    %1998 = vmax.xlane.f32.xlu0 %v1997
    %v1999 = vpop.xlane.xlu0 %1998
    %v2000 = vsel %vm919, %v1937, -inf
    %v2001 = vmax.f32 %v1936, %v2000
    %2002 = vmax.xlane.f32.xlu0 %v2001
    %v2003 = vpop.xlane.xlu0 %2002
    %v2004 = vsel %vm919, %v1939, -inf
    %v2005 = vmax.f32 %v1938, %v2004
    %2006 = vmax.xlane.f32.xlu0 %v2005
    %v2007 = vpop.xlane.xlu0 %2006
    %v2008 = vsel %vm919, %v1941, -inf
    %v2009 = vmax.f32 %v1940, %v2008
    %2010 = vmax.xlane.f32.xlu0 %v2009
    %v2011 = vpop.xlane.xlu0 %2010
    %v2012 = vsel %vm919, %v1943, -inf
    %v2013 = vmax.f32 %v1942, %v2012
    %2014 = vmax.xlane.f32.xlu0 %v2013
    %v2015 = vpop.xlane.xlu0 %2014
    %v2016 = vsel %vm919, %v1945, -inf
    %v2017 = vmax.f32 %v1944, %v2016
    %2018 = vmax.xlane.f32.xlu0 %v2017
    %v2019 = vpop.xlane.xlu0 %2018
    %v2020 = vsel %vm919, %v1947, -inf
    %v2021 = vmax.f32 %v1946, %v2020
    %2022 = vmax.xlane.f32.xlu0 %v2021
    %v2023 = vpop.xlane.xlu0 %2022
    %v2024 = vsel %vm919, %v1949, -inf
    %v2025 = vmax.f32 %v1948, %v2024
    %2026 = vmax.xlane.f32.xlu0 %v2025
    %v2027 = vpop.xlane.xlu0 %2026
    %v2028 = vsel %vm996, %v1950, -inf
    %v2029 = vsel %vm998, %v1951, -inf
    %v2030 = vmax.f32 %v2028, %v2029
    %2031 = vmax.xlane.f32.xlu0 %v2030
    %v2032 = vpop.xlane.xlu0 %2031
    %v2033 = vsub.f32 %v1912, %v1955
    %v2034 = vsub.f32 %v1913, %v1955
    %v2035 = vsub.f32 %v1914, %v1959
    %v2036 = vsub.f32 %v1915, %v1959
    %v2037 = vsub.f32 %v1916, %v1963
    %v2038 = vsub.f32 %v1917, %v1963
    %v2039 = vsub.f32 %v1918, %v1967
    %v2040 = vsub.f32 %v1919, %v1967
    %v2041 = vsub.f32 %v1920, %v1971
    %v2042 = vsub.f32 %v1921, %v1971
    %v2043 = vsub.f32 %v1922, %v1975
    %v2044 = vsub.f32 %v1923, %v1975
    %v2045 = vsub.f32 %v1924, %v1979
    %v2046 = vsub.f32 %v1925, %v1979
    %v2047 = vsub.f32 %v1926, %v1983
    %v2048 = vsub.f32 %v1927, %v1983
    %v2049 = vsub.f32 %v1928, %v1987
    %v2050 = vsub.f32 %v1929, %v1987
    %v2051 = vsub.f32 %v1930, %v1991
    %v2052 = vsub.f32 %v1931, %v1991
    %v2053 = vsub.f32 %v1932, %v1995
    %v2054 = vsub.f32 %v1933, %v1995
    %v2055 = vsub.f32 %v1934, %v1999
    %v2056 = vsub.f32 %v1935, %v1999
    %v2057 = vsub.f32 %v1936, %v2003
    %v2058 = vsub.f32 %v1937, %v2003
    %v2059 = vsub.f32 %v1938, %v2007
    %v2060 = vsub.f32 %v1939, %v2007
    %v2061 = vsub.f32 %v1940, %v2011
    %v2062 = vsub.f32 %v1941, %v2011
    %v2063 = vsub.f32 %v1942, %v2015
    %v2064 = vsub.f32 %v1943, %v2015
    %v2065 = vsub.f32 %v1944, %v2019
    %v2066 = vsub.f32 %v1945, %v2019
    %v2067 = vsub.f32 %v1946, %v2023
    %v2068 = vsub.f32 %v1947, %v2023
    %v2069 = vsub.f32 %v1948, %v2027
    %v2070 = vsub.f32 %v1949, %v2027
    %v2071 = vsub.f32 %v1950, %v2032
    %v2072 = vsub.f32 %v1951, %v2032
    %v2073 = vmul.f32 %v2033, 1.442695
    %v2074 = vpow.pop %v2073
    %v2075 = vmul.f32 %v2034, 1.442695
    %v2076 = vpow.pop %v2075
    %v2077 = vmul.f32 %v2035, 1.442695
    %v2078 = vpow.pop %v2077
    %v2079 = vmul.f32 %v2036, 1.442695
    %v2080 = vpow.pop %v2079
    %v2081 = vmul.f32 %v2037, 1.442695
    %v2082 = vpow.pop %v2081
    %v2083 = vmul.f32 %v2038, 1.442695
    %v2084 = vpow.pop %v2083
    %v2085 = vmul.f32 %v2039, 1.442695
    %v2086 = vpow.pop %v2085
    %v2087 = vmul.f32 %v2040, 1.442695
    %v2088 = vpow.pop %v2087
    %v2089 = vmul.f32 %v2041, 1.442695
    %v2090 = vpow.pop %v2089
    %v2091 = vmul.f32 %v2042, 1.442695
    %v2092 = vpow.pop %v2091
    %v2093 = vmul.f32 %v2043, 1.442695
    %v2094 = vpow.pop %v2093
    %v2095 = vmul.f32 %v2044, 1.442695
    %v2096 = vpow.pop %v2095
    %v2097 = vmul.f32 %v2045, 1.442695
    %v2098 = vpow.pop %v2097
    %v2099 = vmul.f32 %v2046, 1.442695
    %v2100 = vpow.pop %v2099
    %v2101 = vmul.f32 %v2047, 1.442695
    %v2102 = vpow.pop %v2101
    %v2103 = vmul.f32 %v2048, 1.442695
    %v2104 = vpow.pop %v2103
    %v2105 = vmul.f32 %v2049, 1.442695
    %v2106 = vpow.pop %v2105
    %v2107 = vmul.f32 %v2050, 1.442695
    %v2108 = vpow.pop %v2107
    %v2109 = vmul.f32 %v2051, 1.442695
    %v2110 = vpow.pop %v2109
    %v2111 = vmul.f32 %v2052, 1.442695
    %v2112 = vpow.pop %v2111
    %v2113 = vmul.f32 %v2053, 1.442695
    %v2114 = vpow.pop %v2113
    %v2115 = vmul.f32 %v2054, 1.442695
    %v2116 = vpow.pop %v2115
    %v2117 = vmul.f32 %v2055, 1.442695
    %v2118 = vpow.pop %v2117
    %v2119 = vmul.f32 %v2056, 1.442695
    %v2120 = vpow.pop %v2119
    %v2121 = vmul.f32 %v2057, 1.442695
    %v2122 = vpow.pop %v2121
    %v2123 = vmul.f32 %v2058, 1.442695
    %v2124 = vpow.pop %v2123
    %v2125 = vmul.f32 %v2059, 1.442695
    %v2126 = vpow.pop %v2125
    %v2127 = vmul.f32 %v2060, 1.442695
    %v2128 = vpow.pop %v2127
    %v2129 = vmul.f32 %v2061, 1.442695
    %v2130 = vpow.pop %v2129
    %v2131 = vmul.f32 %v2062, 1.442695
    %v2132 = vpow.pop %v2131
    %v2133 = vmul.f32 %v2063, 1.442695
    %v2134 = vpow.pop %v2133
    %v2135 = vmul.f32 %v2064, 1.442695
    %v2136 = vpow.pop %v2135
    %v2137 = vmul.f32 %v2065, 1.442695
    %v2138 = vpow.pop %v2137
    %v2139 = vmul.f32 %v2066, 1.442695
    %v2140 = vpow.pop %v2139
    %v2141 = vmul.f32 %v2067, 1.442695
    %v2142 = vpow.pop %v2141
    %v2143 = vmul.f32 %v2068, 1.442695
    %v2144 = vpow.pop %v2143
    %v2145 = vmul.f32 %v2069, 1.442695
    %v2146 = vpow.pop %v2145
    %v2147 = vmul.f32 %v2070, 1.442695
    %v2148 = vpow.pop %v2147
    %v2149 = vmul.f32 %v2071, 1.442695
    %v2150 = vpow.pop %v2149
    %v2151 = vmul.f32 %v2072, 1.442695
    %v2152 = vpow.pop %v2151
    %v2153 = vsel %vm919, %v2076, 0.0
    %v2154 = vadd.f32 %v2074, %v2153
    %2155 = vadd.xlane.f32.xlu0 %v2154
    %v2156 = vpop.xlane.xlu0 %2155
    %v2157 = vsel %vm919, %v2080, 0.0
    %v2158 = vadd.f32 %v2078, %v2157
    %2159 = vadd.xlane.f32.xlu0 %v2158
    %v2160 = vpop.xlane.xlu0 %2159
    %v2161 = vsel %vm919, %v2084, 0.0
    %v2162 = vadd.f32 %v2082, %v2161
    %2163 = vadd.xlane.f32.xlu0 %v2162
    %v2164 = vpop.xlane.xlu0 %2163
    %v2165 = vsel %vm919, %v2088, 0.0
    %v2166 = vadd.f32 %v2086, %v2165
    %2167 = vadd.xlane.f32.xlu0 %v2166
    %v2168 = vpop.xlane.xlu0 %2167
    %v2169 = vsel %vm919, %v2092, 0.0
    %v2170 = vadd.f32 %v2090, %v2169
    %2171 = vadd.xlane.f32.xlu0 %v2170
    %v2172 = vpop.xlane.xlu0 %2171
    %v2173 = vsel %vm919, %v2096, 0.0
    %v2174 = vadd.f32 %v2094, %v2173
    %2175 = vadd.xlane.f32.xlu0 %v2174
    %v2176 = vpop.xlane.xlu0 %2175
    %v2177 = vsel %vm919, %v2100, 0.0
    %v2178 = vadd.f32 %v2098, %v2177
    %2179 = vadd.xlane.f32.xlu0 %v2178
    %v2180 = vpop.xlane.xlu0 %2179
    %v2181 = vsel %vm919, %v2104, 0.0
    %v2182 = vadd.f32 %v2102, %v2181
    %2183 = vadd.xlane.f32.xlu0 %v2182
    %v2184 = vpop.xlane.xlu0 %2183
    %v2185 = vsel %vm919, %v2108, 0.0
    %v2186 = vadd.f32 %v2106, %v2185
    %2187 = vadd.xlane.f32.xlu0 %v2186
    %v2188 = vpop.xlane.xlu0 %2187
    %v2189 = vsel %vm919, %v2112, 0.0
    %v2190 = vadd.f32 %v2110, %v2189
    %2191 = vadd.xlane.f32.xlu0 %v2190
    %v2192 = vpop.xlane.xlu0 %2191
    %v2193 = vsel %vm919, %v2116, 0.0
    %v2194 = vadd.f32 %v2114, %v2193
    %2195 = vadd.xlane.f32.xlu0 %v2194
    %v2196 = vpop.xlane.xlu0 %2195
    %v2197 = vsel %vm919, %v2120, 0.0
    %v2198 = vadd.f32 %v2118, %v2197
    %2199 = vadd.xlane.f32.xlu0 %v2198
    %v2200 = vpop.xlane.xlu0 %2199
    %v2201 = vsel %vm919, %v2124, 0.0
    %v2202 = vadd.f32 %v2122, %v2201
    %2203 = vadd.xlane.f32.xlu0 %v2202
    %v2204 = vpop.xlane.xlu0 %2203
    %v2205 = vsel %vm919, %v2128, 0.0
    %v2206 = vadd.f32 %v2126, %v2205
    %2207 = vadd.xlane.f32.xlu0 %v2206
    %v2208 = vpop.xlane.xlu0 %2207
    %v2209 = vsel %vm919, %v2132, 0.0
    %v2210 = vadd.f32 %v2130, %v2209
    %2211 = vadd.xlane.f32.xlu0 %v2210
    %v2212 = vpop.xlane.xlu0 %2211
    %v2213 = vsel %vm919, %v2136, 0.0
    %v2214 = vadd.f32 %v2134, %v2213
    %2215 = vadd.xlane.f32.xlu0 %v2214
    %v2216 = vpop.xlane.xlu0 %2215
    %v2217 = vsel %vm919, %v2140, 0.0
    %v2218 = vadd.f32 %v2138, %v2217
    %2219 = vadd.xlane.f32.xlu0 %v2218
    %v2220 = vpop.xlane.xlu0 %2219
    %v2221 = vsel %vm919, %v2144, 0.0
    %v2222 = vadd.f32 %v2142, %v2221
    %2223 = vadd.xlane.f32.xlu0 %v2222
    %v2224 = vpop.xlane.xlu0 %2223
    %v2225 = vsel %vm919, %v2148, 0.0
    %v2226 = vadd.f32 %v2146, %v2225
    %2227 = vadd.xlane.f32.xlu0 %v2226
    %v2228 = vpop.xlane.xlu0 %2227
    %v2229 = vsel %vm996, %v2150, 0.0
    %v2230 = vsel %vm998, %v2152, 0.0
    %v2231 = vadd.f32 %v2229, %v2230
    %2232 = vadd.xlane.f32.xlu0 %v2231
    %v2233 = vpop.xlane.xlu0 %2232
    %v2234 = vpack.c.bf16 %v2078, %v2074
    %v2235 = vpack.c.bf16 %v2080, %v2076
    %v2236 = vpack.c.bf16 %v2086, %v2082
    %v2237 = vpack.c.bf16 %v2088, %v2084
    %v2238 = vpack.c.bf16 %v2094, %v2090
    %v2239 = vpack.c.bf16 %v2096, %v2092
    %v2240 = vpack.c.bf16 %v2102, %v2098
    %v2241 = vpack.c.bf16 %v2104, %v2100
    %v2242 = vpack.c.bf16 %v2110, %v2106
    %v2243 = vpack.c.bf16 %v2112, %v2108
    %v2244 = vpack.c.bf16 %v2118, %v2114
    %v2245 = vpack.c.bf16 %v2120, %v2116
    %v2246 = vpack.c.bf16 %v2126, %v2122
    %v2247 = vpack.c.bf16 %v2128, %v2124
    %v2248 = vpack.c.bf16 %v2134, %v2130
    %v2249 = vpack.c.bf16 %v2136, %v2132
    %v2250 = vpack.c.bf16 %v2142, %v2138
    %v2251 = vpack.c.bf16 %v2144, %v2140
    %v2252 = vpack.c.bf16 %v2150, %v2146
    %v2253 = vpack.c.bf16 %v2152, %v2148
    %2264 = vrot.lane.b32.xlu0 %v1224, 120
    %v2265 = vpop.permute.xlu0 %2264
    %2266 = vrot.lane.b32.xlu0 %v1225, 120
    %v2267 = vpop.permute.xlu0 %2266
    %2268 = vrot.lane.b32.xlu0 %v1226, 120
    %v2269 = vpop.permute.xlu0 %2268
    %2270 = vrot.lane.b32.xlu0 %v1227, 120
    %v2271 = vpop.permute.xlu0 %2270
    %2272 = vrot.lane.b32.xlu0 %v1228, 120
    %v2273 = vpop.permute.xlu0 %2272
    %2274 = vrot.lane.b32.xlu0 %v1229, 120
    %v2275 = vpop.permute.xlu0 %2274
    %2276 = vrot.lane.b32.xlu0 %v1230, 120
    %v2277 = vpop.permute.xlu0 %2276
    %2278 = vrot.lane.b32.xlu0 %v1231, 120
    %v2279 = vpop.permute.xlu0 %2278
    %2280 = vrot.lane.b32.xlu0 %v1232, 120
    %v2281 = vpop.permute.xlu0 %2280
    %2282 = vrot.lane.b32.xlu0 %v1233, 120
    %v2283 = vpop.permute.xlu0 %2282
    %v2294 = vsel %vm919, %v2235, 0
    %v2297 = vsel %vm919, %v2237, 0
    %v2300 = vsel %vm919, %v2239, 0
    %v2303 = vsel %vm919, %v2241, 0
    %v2306 = vsel %vm919, %v2243, 0
    %v2309 = vsel %vm919, %v2245, 0
    %v2312 = vsel %vm919, %v2247, 0
    %v2315 = vsel %vm919, %v2249, 0
    %v2318 = vsel %vm919, %v2251, 0
    %v2321 = vsel %vm919, %v2253, 0
    %v2324 = vsel %vm1264, %v2283, 0
    %2326 = vmatpush.bf16.msra.mxu0 %v2279
    %2327 = vmatpush.bf16.msra.mxu0 %v2277
    %2328 = vmatpush.bf16.msra.mxu0 %v2275
    %2329 = vmatpush.bf16.msra.mxu0 %v2273
    %2330 = vmatpush.bf16.msra.mxu0 %v2271
    %2331 = vmatpush.bf16.msra.mxu0 %v2269
    %2332 = vmatpush.bf16.msra.mxu0 %v2267
    %2333 = vmatpush.bf16.msra.mxu0 %v2265
    %2334 = vmatmul.bf16.gmra.mxu0 %v2234
    %v2335 = vpop.f32.mrf.mxu0
    %v2336 = vadd.f32 0.0, %v2335
    %v2337 = vpop.f32.mrf.mxu0
    %v2338 = vadd.f32 0.0, %v2337
    %2339 = vmatmul.bf16.gmra.mxu0 %v2236
    %v2340 = vpop.f32.mrf.mxu0
    %v2341 = vadd.f32 0.0, %v2340
    %v2342 = vpop.f32.mrf.mxu0
    %v2343 = vadd.f32 0.0, %v2342
    %2344 = vmatmul.bf16.gmra.mxu0 %v2238
    %v2345 = vpop.f32.mrf.mxu0
    %v2346 = vadd.f32 0.0, %v2345
    %v2347 = vpop.f32.mrf.mxu0
    %v2348 = vadd.f32 0.0, %v2347
    %2349 = vmatmul.bf16.gmra.mxu0 %v2240
    %v2350 = vpop.f32.mrf.mxu0
    %v2351 = vadd.f32 0.0, %v2350
    %v2352 = vpop.f32.mrf.mxu0
    %v2353 = vadd.f32 0.0, %v2352
    %2354 = vmatmul.bf16.gmra.mxu0 %v2242
    %v2355 = vpop.f32.mrf.mxu0
    %v2356 = vadd.f32 0.0, %v2355
    %v2357 = vpop.f32.mrf.mxu0
    %v2358 = vadd.f32 0.0, %v2357
    %2359 = vmatmul.bf16.gmra.mxu0 %v2244
    %v2360 = vpop.f32.mrf.mxu0
    %v2361 = vadd.f32 0.0, %v2360
    %v2362 = vpop.f32.mrf.mxu0
    %v2363 = vadd.f32 0.0, %v2362
    %2364 = vmatmul.bf16.gmra.mxu0 %v2246
    %v2365 = vpop.f32.mrf.mxu0
    %v2366 = vadd.f32 0.0, %v2365
    %v2367 = vpop.f32.mrf.mxu0
    %v2368 = vadd.f32 0.0, %v2367
    %2369 = vmatmul.bf16.gmra.mxu0 %v2248
    %v2370 = vpop.f32.mrf.mxu0
    %v2371 = vadd.f32 0.0, %v2370
    %v2372 = vpop.f32.mrf.mxu0
    %v2373 = vadd.f32 0.0, %v2372
    %2374 = vmatmul.bf16.gmra.mxu0 %v2250
    %v2375 = vpop.f32.mrf.mxu0
    %v2376 = vadd.f32 0.0, %v2375
    %v2377 = vpop.f32.mrf.mxu0
    %v2378 = vadd.f32 0.0, %v2377
    %2379 = vmatmul.bf16.gmra.mxu0 %v2252
    %v2380 = vpop.f32.mrf.mxu0
    %v2381 = vadd.f32 0.0, %v2380
    %v2382 = vpop.f32.mrf.mxu0
    %v2383 = vadd.f32 0.0, %v2382
    %2384 = vdwg.mxu0
    %2385 = vmatpush.bf16.msra.mxu0 0
    %2386 = vmatpush.bf16.msra.mxu0 0
    %2387 = vmatpush.bf16.msra.mxu0 0
    %2388 = vmatpush.bf16.msra.mxu0 0
    %2389 = vmatpush.bf16.msra.mxu0 0
    %2390 = vmatpush.bf16.msra.mxu0 0
    %2391 = vmatpush.bf16.msra.mxu0 %v2324
    %2392 = vmatpush.bf16.msra.mxu0 %v2281
    %2393 = vmatmul.bf16.gmra.mxu0 %v2294
    %v2394 = vpop.f32.mrf.mxu0
    %v2395 = vadd.f32 %v2336, %v2394
    %v2396 = vpop.f32.mrf.mxu0
    %v2397 = vadd.f32 %v2338, %v2396
    %2398 = vmatmul.bf16.gmra.mxu0 %v2297
    %v2399 = vpop.f32.mrf.mxu0
    %v2400 = vadd.f32 %v2341, %v2399
    %v2401 = vpop.f32.mrf.mxu0
    %v2402 = vadd.f32 %v2343, %v2401
    %2403 = vmatmul.bf16.gmra.mxu0 %v2300
    %v2404 = vpop.f32.mrf.mxu0
    %v2405 = vadd.f32 %v2346, %v2404
    %v2406 = vpop.f32.mrf.mxu0
    %v2407 = vadd.f32 %v2348, %v2406
    %2408 = vmatmul.bf16.gmra.mxu0 %v2303
    %v2409 = vpop.f32.mrf.mxu0
    %v2410 = vadd.f32 %v2351, %v2409
    %v2411 = vpop.f32.mrf.mxu0
    %v2412 = vadd.f32 %v2353, %v2411
    %2413 = vmatmul.bf16.gmra.mxu0 %v2306
    %v2414 = vpop.f32.mrf.mxu0
    %v2415 = vadd.f32 %v2356, %v2414
    %v2416 = vpop.f32.mrf.mxu0
    %v2417 = vadd.f32 %v2358, %v2416
    %2418 = vmatmul.bf16.gmra.mxu0 %v2309
    %v2419 = vpop.f32.mrf.mxu0
    %v2420 = vadd.f32 %v2361, %v2419
    %v2421 = vpop.f32.mrf.mxu0
    %v2422 = vadd.f32 %v2363, %v2421
    %2423 = vmatmul.bf16.gmra.mxu0 %v2312
    %v2424 = vpop.f32.mrf.mxu0
    %v2425 = vadd.f32 %v2366, %v2424
    %v2426 = vpop.f32.mrf.mxu0
    %v2427 = vadd.f32 %v2368, %v2426
    %2428 = vmatmul.bf16.gmra.mxu0 %v2315
    %v2429 = vpop.f32.mrf.mxu0
    %v2430 = vadd.f32 %v2371, %v2429
    %v2431 = vpop.f32.mrf.mxu0
    %v2432 = vadd.f32 %v2373, %v2431
    %2433 = vmatmul.bf16.gmra.mxu0 %v2318
    %v2434 = vpop.f32.mrf.mxu0
    %v2435 = vadd.f32 %v2376, %v2434
    %v2436 = vpop.f32.mrf.mxu0
    %v2437 = vadd.f32 %v2378, %v2436
    %2438 = vmatmul.bf16.gmra.mxu0 %v2321
    %v2439 = vpop.f32.mrf.mxu0
    %v2440 = vadd.f32 %v2381, %v2439
    %v2441 = vpop.f32.mrf.mxu0
    %v2442 = vadd.f32 %v2383, %v2441
    %2443 = vdwg.mxu0
    %v2444 = vrcp.pop %v2156
    %v2445 = vrcp.pop %v2160
    %v2446 = vrcp.pop %v2164
    %v2447 = vrcp.pop %v2168
    %v2448 = vrcp.pop %v2172
    %v2449 = vrcp.pop %v2176
    %v2450 = vrcp.pop %v2180
    %v2451 = vrcp.pop %v2184
    %v2452 = vrcp.pop %v2188
    %v2453 = vrcp.pop %v2192
    %v2454 = vrcp.pop %v2196
    %v2455 = vrcp.pop %v2200
    %v2456 = vrcp.pop %v2204
    %v2457 = vrcp.pop %v2208
    %v2458 = vrcp.pop %v2212
    %v2459 = vrcp.pop %v2216
    %v2460 = vrcp.pop %v2220
    %v2461 = vrcp.pop %v2224
    %v2462 = vrcp.pop %v2228
    %v2463 = vrcp.pop %v2233
    %v2464 = vmul.f32 %v2395, %v2444
    %v2465 = vmul.f32 %v2397, %v2445
    %v2466 = vmul.f32 %v2400, %v2446
    %v2467 = vmul.f32 %v2402, %v2447
    %v2468 = vmul.f32 %v2405, %v2448
    %v2469 = vmul.f32 %v2407, %v2449
    %v2470 = vmul.f32 %v2410, %v2450
    %v2471 = vmul.f32 %v2412, %v2451
    %v2472 = vmul.f32 %v2415, %v2452
    %v2473 = vmul.f32 %v2417, %v2453
    %v2474 = vmul.f32 %v2420, %v2454
    %v2475 = vmul.f32 %v2422, %v2455
    %v2476 = vmul.f32 %v2425, %v2456
    %v2477 = vmul.f32 %v2427, %v2457
    %v2478 = vmul.f32 %v2430, %v2458
    %v2479 = vmul.f32 %v2432, %v2459
    %v2480 = vmul.f32 %v2435, %v2460
    %v2481 = vmul.f32 %v2437, %v2461
    %v2482 = vmul.f32 %v2440, %v2462
    %v2483 = vmul.f32 %v2442, %v2463
    %vm2484 = vcmp.gt.f32.partialorder %v2464, 0.0
    %vm2485 = vcmp.gt.f32.partialorder %v2465, 0.0
    %vm2486 = vcmp.gt.f32.partialorder %v2466, 0.0
    %vm2487 = vcmp.gt.f32.partialorder %v2467, 0.0
    %vm2488 = vcmp.gt.f32.partialorder %v2468, 0.0
    %vm2489 = vcmp.gt.f32.partialorder %v2469, 0.0
    %vm2490 = vcmp.gt.f32.partialorder %v2470, 0.0
    %vm2491 = vcmp.gt.f32.partialorder %v2471, 0.0
    %vm2492 = vcmp.gt.f32.partialorder %v2472, 0.0
    %vm2493 = vcmp.gt.f32.partialorder %v2473, 0.0
    %vm2494 = vcmp.gt.f32.partialorder %v2474, 0.0
    %vm2495 = vcmp.gt.f32.partialorder %v2475, 0.0
    %vm2496 = vcmp.gt.f32.partialorder %v2476, 0.0
    %vm2497 = vcmp.gt.f32.partialorder %v2477, 0.0
    %vm2498 = vcmp.gt.f32.partialorder %v2478, 0.0
    %vm2499 = vcmp.gt.f32.partialorder %v2479, 0.0
    %vm2500 = vcmp.gt.f32.partialorder %v2480, 0.0
    %vm2501 = vcmp.gt.f32.partialorder %v2481, 0.0
    %vm2502 = vcmp.gt.f32.partialorder %v2482, 0.0
    %vm2503 = vcmp.gt.f32.partialorder %v2483, 0.0
    %v2504 = vmin.f32 %v2464, 0.0
    %v2505 = vmin.f32 %v2465, 0.0
    %v2506 = vmin.f32 %v2466, 0.0
    %v2507 = vmin.f32 %v2467, 0.0
    %v2508 = vmin.f32 %v2468, 0.0
    %v2509 = vmin.f32 %v2469, 0.0
    %v2510 = vmin.f32 %v2470, 0.0
    %v2511 = vmin.f32 %v2471, 0.0
    %v2512 = vmin.f32 %v2472, 0.0
    %v2513 = vmin.f32 %v2473, 0.0
    %v2514 = vmin.f32 %v2474, 0.0
    %v2515 = vmin.f32 %v2475, 0.0
    %v2516 = vmin.f32 %v2476, 0.0
    %v2517 = vmin.f32 %v2477, 0.0
    %v2518 = vmin.f32 %v2478, 0.0
    %v2519 = vmin.f32 %v2479, 0.0
    %v2520 = vmin.f32 %v2480, 0.0
    %v2521 = vmin.f32 %v2481, 0.0
    %v2522 = vmin.f32 %v2482, 0.0
    %v2523 = vmin.f32 %v2483, 0.0
    %v2524 = vmul.f32 %v2504, 1.442695
    %v2525 = vpow.pop %v2524
    %v2526 = vmul.f32 %v2505, 1.442695
    %v2527 = vpow.pop %v2526
    %v2528 = vmul.f32 %v2506, 1.442695
    %v2529 = vpow.pop %v2528
    %v2530 = vmul.f32 %v2507, 1.442695
    %v2531 = vpow.pop %v2530
    %v2532 = vmul.f32 %v2508, 1.442695
    %v2533 = vpow.pop %v2532
    %v2534 = vmul.f32 %v2509, 1.442695
    %v2535 = vpow.pop %v2534
    %v2536 = vmul.f32 %v2510, 1.442695
    %v2537 = vpow.pop %v2536
    %v2538 = vmul.f32 %v2511, 1.442695
    %v2539 = vpow.pop %v2538
    %v2540 = vmul.f32 %v2512, 1.442695
    %v2541 = vpow.pop %v2540
    %v2542 = vmul.f32 %v2513, 1.442695
    %v2543 = vpow.pop %v2542
    %v2544 = vmul.f32 %v2514, 1.442695
    %v2545 = vpow.pop %v2544
    %v2546 = vmul.f32 %v2515, 1.442695
    %v2547 = vpow.pop %v2546
    %v2548 = vmul.f32 %v2516, 1.442695
    %v2549 = vpow.pop %v2548
    %v2550 = vmul.f32 %v2517, 1.442695
    %v2551 = vpow.pop %v2550
    %v2552 = vmul.f32 %v2518, 1.442695
    %v2553 = vpow.pop %v2552
    %v2554 = vmul.f32 %v2519, 1.442695
    %v2555 = vpow.pop %v2554
    %v2556 = vmul.f32 %v2520, 1.442695
    %v2557 = vpow.pop %v2556
    %v2558 = vmul.f32 %v2521, 1.442695
    %v2559 = vpow.pop %v2558
    %v2560 = vmul.f32 %v2522, 1.442695
    %v2561 = vpow.pop %v2560
    %v2562 = vmul.f32 %v2523, 1.442695
    %v2563 = vpow.pop %v2562
    %v2564 = vsub.f32 %v2525, 1.0
    %v2565 = vsub.f32 %v2527, 1.0
    %v2566 = vsub.f32 %v2529, 1.0
    %v2567 = vsub.f32 %v2531, 1.0
    %v2568 = vsub.f32 %v2533, 1.0
    %v2569 = vsub.f32 %v2535, 1.0
    %v2570 = vsub.f32 %v2537, 1.0
    %v2571 = vsub.f32 %v2539, 1.0
    %v2572 = vsub.f32 %v2541, 1.0
    %v2573 = vsub.f32 %v2543, 1.0
    %v2574 = vsub.f32 %v2545, 1.0
    %v2575 = vsub.f32 %v2547, 1.0
    %v2576 = vsub.f32 %v2549, 1.0
    %v2577 = vsub.f32 %v2551, 1.0
    %v2578 = vsub.f32 %v2553, 1.0
    %v2579 = vsub.f32 %v2555, 1.0
    %v2580 = vsub.f32 %v2557, 1.0
    %v2581 = vsub.f32 %v2559, 1.0
    %v2582 = vsub.f32 %v2561, 1.0
    %v2583 = vsub.f32 %v2563, 1.0
    %v2584 = vsel %vm2484, %v2464, %v2564
    %v2585 = vsel %vm2485, %v2465, %v2565
    %v2586 = vsel %vm2486, %v2466, %v2566
    %v2587 = vsel %vm2487, %v2467, %v2567
    %v2588 = vsel %vm2488, %v2468, %v2568
    %v2589 = vsel %vm2489, %v2469, %v2569
    %v2590 = vsel %vm2490, %v2470, %v2570
    %v2591 = vsel %vm2491, %v2471, %v2571
    %v2592 = vsel %vm2492, %v2472, %v2572
    %v2593 = vsel %vm2493, %v2473, %v2573
    %v2594 = vsel %vm2494, %v2474, %v2574
    %v2595 = vsel %vm2495, %v2475, %v2575
    %v2596 = vsel %vm2496, %v2476, %v2576
    %v2597 = vsel %vm2497, %v2477, %v2577
    %v2598 = vsel %vm2498, %v2478, %v2578
    %v2599 = vsel %vm2499, %v2479, %v2579
    %v2600 = vsel %vm2500, %v2480, %v2580
    %v2601 = vsel %vm2501, %v2481, %v2581
    %v2602 = vsel %vm2502, %v2482, %v2582
    %v2603 = vsel %vm2503, %v2483, %v2583
    %2624 = vrot.lane.b32.xlu0 %v2584, 8
    %v2625 = vpop.permute.xlu0 %2624
    %2626 = vrot.lane.b32.xlu0 %v2585, 8
    %v2627 = vpop.permute.xlu0 %2626
    %2628 = vrot.lane.b32.xlu0 %v2586, 8
    %v2629 = vpop.permute.xlu0 %2628
    %2630 = vrot.lane.b32.xlu0 %v2587, 8
    %v2631 = vpop.permute.xlu0 %2630
    %2632 = vrot.lane.b32.xlu0 %v2588, 8
    %v2633 = vpop.permute.xlu0 %2632
    %2634 = vrot.lane.b32.xlu0 %v2589, 8
    %v2635 = vpop.permute.xlu0 %2634
    %2636 = vrot.lane.b32.xlu0 %v2590, 8
    %v2637 = vpop.permute.xlu0 %2636
    %2638 = vrot.lane.b32.xlu0 %v2591, 8
    %v2639 = vpop.permute.xlu0 %2638
    %2640 = vrot.lane.b32.xlu0 %v2592, 8
    %v2641 = vpop.permute.xlu0 %2640
    %2642 = vrot.lane.b32.xlu0 %v2593, 8
    %v2643 = vpop.permute.xlu0 %2642
    %2644 = vrot.lane.b32.xlu0 %v2594, 8
    %v2645 = vpop.permute.xlu0 %2644
    %2646 = vrot.lane.b32.xlu0 %v2595, 8
    %v2647 = vpop.permute.xlu0 %2646
    %2648 = vrot.lane.b32.xlu0 %v2596, 8
    %v2649 = vpop.permute.xlu0 %2648
    %2650 = vrot.lane.b32.xlu0 %v2597, 8
    %v2651 = vpop.permute.xlu0 %2650
    %2652 = vrot.lane.b32.xlu0 %v2598, 8
    %v2653 = vpop.permute.xlu0 %2652
    %2654 = vrot.lane.b32.xlu0 %v2599, 8
    %v2655 = vpop.permute.xlu0 %2654
    %2656 = vrot.lane.b32.xlu0 %v2600, 8
    %v2657 = vpop.permute.xlu0 %2656
    %2658 = vrot.lane.b32.xlu0 %v2601, 8
    %v2659 = vpop.permute.xlu0 %2658
    %2660 = vrot.lane.b32.xlu0 %v2602, 8
    %v2661 = vpop.permute.xlu0 %2660
    %2662 = vrot.lane.b32.xlu0 %v2603, 8
    %v2663 = vpop.permute.xlu0 %2662
    %v2684 = vsel %vm215, %v1526, %v2625
    %v2685 = vsel %vm215, %v1527, %v2627
    %v2686 = vsel %vm215, %v1528, %v2629
    %v2687 = vsel %vm215, %v1529, %v2631
    %v2688 = vsel %vm215, %v1530, %v2633
    %v2689 = vsel %vm215, %v1531, %v2635
    %v2690 = vsel %vm215, %v1532, %v2637
    %v2691 = vsel %vm215, %v1533, %v2639
    %v2692 = vsel %vm215, %v1534, %v2641
    %v2693 = vsel %vm215, %v1535, %v2643
    %v2694 = vsel %vm215, %v1536, %v2645
    %v2695 = vsel %vm215, %v1537, %v2647
    %v2696 = vsel %vm215, %v1538, %v2649
    %v2697 = vsel %vm215, %v1539, %v2651
    %v2698 = vsel %vm215, %v1540, %v2653
    %v2699 = vsel %vm215, %v1541, %v2655
    %v2700 = vsel %vm215, %v1542, %v2657
    %v2701 = vsel %vm215, %v1543, %v2659
    %v2702 = vsel %vm215, %v1544, %v2661
    %v2703 = vsel %vm215, %v1545, %v2663
    %v2704 = vld [vmem:[%s4] sm:$0xff]
    %v2705 = vld [vmem:[%s4 + $0x8] sm:$0xff]
    %v2707 = vsel %vm355, %v2684, 0
    %v2710 = vsel %vm355, %v2685, 0
    %v2713 = vsel %vm355, %v2686, 0
    %v2716 = vsel %vm355, %v2687, 0
    %v2719 = vsel %vm355, %v2688, 0
    %v2722 = vsel %vm355, %v2689, 0
    %v2725 = vsel %vm355, %v2690, 0
    %v2728 = vsel %vm355, %v2691, 0
    %v2731 = vsel %vm355, %v2692, 0
    %v2734 = vsel %vm355, %v2693, 0
    %v2737 = vsel %vm355, %v2694, 0
    %v2740 = vsel %vm355, %v2695, 0
    %v2743 = vsel %vm355, %v2696, 0
    %v2746 = vsel %vm355, %v2697, 0
    %v2749 = vsel %vm355, %v2698, 0
    %v2752 = vsel %vm355, %v2699, 0
    %v2755 = vsel %vm355, %v2700, 0
    %v2758 = vsel %vm355, %v2701, 0
    %v2761 = vsel %vm355, %v2702, 0
    %v2764 = vsel %vm355, %v2703, 0
    %2766 = vmatpush.msra.mxu0 0.0
    %2767 = vmatpush.msra.mxu0 0.0
    %2768 = vmatpush.msra.mxu0 0.0
    %2769 = vmatpush.msra.mxu0 0.0
    %2770 = vmatpush.msra.mxu0 0.0
    %2771 = vmatpush.msra.mxu0 0.0
    %2772 = vmatpush.msra.mxu0 0.0
    %2773 = vmatpush.msra.mxu0 0.0
    %2774 = vmatpush.msra.mxu0 0.0
    %2775 = vmatpush.msra.mxu0 0.0
    %2776 = vmatpush.msra.mxu0 0.0
    %2777 = vmatpush.msra.mxu0 0.0
    %2778 = vmatpush.msra.mxu0 0.0
    %2779 = vmatpush.msra.mxu0 0.0
    %2780 = vmatpush.msra.mxu0 %v2705
    %2781 = vmatpush.msra.mxu0 %v2704
    %2782 = vmatmul.f32.gmra.mxu0 %v2707
    %v2783 = vpop.f32.mrf.mxu0
    %v2784 = vadd.f32 0.0, %v2783
    %2785 = vmatmul.f32.gmra.mxu0 %v2710
    %v2786 = vpop.f32.mrf.mxu0
    %v2787 = vadd.f32 0.0, %v2786
    %2788 = vmatmul.f32.gmra.mxu0 %v2713
    %v2789 = vpop.f32.mrf.mxu0
    %v2790 = vadd.f32 0.0, %v2789
    %2791 = vmatmul.f32.gmra.mxu0 %v2716
    %v2792 = vpop.f32.mrf.mxu0
    %v2793 = vadd.f32 0.0, %v2792
    %2794 = vmatmul.f32.gmra.mxu0 %v2719
    %v2795 = vpop.f32.mrf.mxu0
    %v2796 = vadd.f32 0.0, %v2795
    %2797 = vmatmul.f32.gmra.mxu0 %v2722
    %v2798 = vpop.f32.mrf.mxu0
    %v2799 = vadd.f32 0.0, %v2798
    %2800 = vmatmul.f32.gmra.mxu0 %v2725
    %v2801 = vpop.f32.mrf.mxu0
    %v2802 = vadd.f32 0.0, %v2801
    %2803 = vmatmul.f32.gmra.mxu0 %v2728
    %v2804 = vpop.f32.mrf.mxu0
    %v2805 = vadd.f32 0.0, %v2804
    %2806 = vmatmul.f32.gmra.mxu0 %v2731
    %v2807 = vpop.f32.mrf.mxu0
    %v2808 = vadd.f32 0.0, %v2807
    %2809 = vmatmul.f32.gmra.mxu0 %v2734
    %v2810 = vpop.f32.mrf.mxu0
    %v2811 = vadd.f32 0.0, %v2810
    %2812 = vmatmul.f32.gmra.mxu0 %v2737
    %v2813 = vpop.f32.mrf.mxu0
    %v2814 = vadd.f32 0.0, %v2813
    %2815 = vmatmul.f32.gmra.mxu0 %v2740
    %v2816 = vpop.f32.mrf.mxu0
    %v2817 = vadd.f32 0.0, %v2816
    %2818 = vmatmul.f32.gmra.mxu0 %v2743
    %v2819 = vpop.f32.mrf.mxu0
    %v2820 = vadd.f32 0.0, %v2819
    %2821 = vmatmul.f32.gmra.mxu0 %v2746
    %v2822 = vpop.f32.mrf.mxu0
    %v2823 = vadd.f32 0.0, %v2822
    %2824 = vmatmul.f32.gmra.mxu0 %v2749
    %v2825 = vpop.f32.mrf.mxu0
    %v2826 = vadd.f32 0.0, %v2825
    %2827 = vmatmul.f32.gmra.mxu0 %v2752
    %v2828 = vpop.f32.mrf.mxu0
    %v2829 = vadd.f32 0.0, %v2828
    %2830 = vmatmul.f32.gmra.mxu0 %v2755
    %v2831 = vpop.f32.mrf.mxu0
    %v2832 = vadd.f32 0.0, %v2831
    %2833 = vmatmul.f32.gmra.mxu0 %v2758
    %v2834 = vpop.f32.mrf.mxu0
    %v2835 = vadd.f32 0.0, %v2834
    %2836 = vmatmul.f32.gmra.mxu0 %v2761
    %v2837 = vpop.f32.mrf.mxu0
    %v2838 = vadd.f32 0.0, %v2837
    %2839 = vmatmul.f32.gmra.mxu0 %v2764
    %v2840 = vpop.f32.mrf.mxu0
    %v2841 = vadd.f32 0.0, %v2840
    %2842 = vdwg.mxu0
    %v2843 = vld [vmem:[%s5] sm:$0xff]
    %v2845 = vsel %vm215, %v2784, 0
    %v2848 = vsel %vm215, %v2787, 0
    %v2851 = vsel %vm215, %v2790, 0
    %v2854 = vsel %vm215, %v2793, 0
    %v2857 = vsel %vm215, %v2796, 0
    %v2860 = vsel %vm215, %v2799, 0
    %v2863 = vsel %vm215, %v2802, 0
    %v2866 = vsel %vm215, %v2805, 0
    %v2869 = vsel %vm215, %v2808, 0
    %v2872 = vsel %vm215, %v2811, 0
    %v2875 = vsel %vm215, %v2814, 0
    %v2878 = vsel %vm215, %v2817, 0
    %v2881 = vsel %vm215, %v2820, 0
    %v2884 = vsel %vm215, %v2823, 0
    %v2887 = vsel %vm215, %v2826, 0
    %v2890 = vsel %vm215, %v2829, 0
    %v2893 = vsel %vm215, %v2832, 0
    %v2896 = vsel %vm215, %v2835, 0
    %v2899 = vsel %vm215, %v2838, 0
    %v2902 = vsel %vm215, %v2841, 0
    %2904 = vmatpush.msra.mxu0 0.0
    %2905 = vmatpush.msra.mxu0 0.0
    %2906 = vmatpush.msra.mxu0 0.0
    %2907 = vmatpush.msra.mxu0 0.0
    %2908 = vmatpush.msra.mxu0 0.0
    %2909 = vmatpush.msra.mxu0 0.0
    %2910 = vmatpush.msra.mxu0 0.0
    %2911 = vmatpush.msra.mxu0 0.0
    %2912 = vmatpush.msra.mxu0 0.0
    %2913 = vmatpush.msra.mxu0 0.0
    %2914 = vmatpush.msra.mxu0 0.0
    %2915 = vmatpush.msra.mxu0 0.0
    %2916 = vmatpush.msra.mxu0 0.0
    %2917 = vmatpush.msra.mxu0 0.0
    %2918 = vmatpush.msra.mxu0 0.0
    %2919 = vmatpush.msra.mxu0 %v2843
    %2920 = vmatmul.f32.gmra.mxu0 %v2845
    %v2921 = vpop.f32.mrf.mxu0
    %v2922 = vadd.f32 0.0, %v2921
    %2923 = vmatmul.f32.gmra.mxu0 %v2848
    %v2924 = vpop.f32.mrf.mxu0
    %v2925 = vadd.f32 0.0, %v2924
    %2926 = vmatmul.f32.gmra.mxu0 %v2851
    %v2927 = vpop.f32.mrf.mxu0
    %v2928 = vadd.f32 0.0, %v2927
    %2929 = vmatmul.f32.gmra.mxu0 %v2854
    %v2930 = vpop.f32.mrf.mxu0
    %v2931 = vadd.f32 0.0, %v2930
    %2932 = vmatmul.f32.gmra.mxu0 %v2857
    %v2933 = vpop.f32.mrf.mxu0
    %v2934 = vadd.f32 0.0, %v2933
    %2935 = vmatmul.f32.gmra.mxu0 %v2860
    %v2936 = vpop.f32.mrf.mxu0
    %v2937 = vadd.f32 0.0, %v2936
    %2938 = vmatmul.f32.gmra.mxu0 %v2863
    %v2939 = vpop.f32.mrf.mxu0
    %v2940 = vadd.f32 0.0, %v2939
    %2941 = vmatmul.f32.gmra.mxu0 %v2866
    %v2942 = vpop.f32.mrf.mxu0
    %v2943 = vadd.f32 0.0, %v2942
    %2944 = vmatmul.f32.gmra.mxu0 %v2869
    %v2945 = vpop.f32.mrf.mxu0
    %v2946 = vadd.f32 0.0, %v2945
    %2947 = vmatmul.f32.gmra.mxu0 %v2872
    %v2948 = vpop.f32.mrf.mxu0
    %v2949 = vadd.f32 0.0, %v2948
    %2950 = vmatmul.f32.gmra.mxu0 %v2875
    %v2951 = vpop.f32.mrf.mxu0
    %v2952 = vadd.f32 0.0, %v2951
    %2953 = vmatmul.f32.gmra.mxu0 %v2878
    %v2954 = vpop.f32.mrf.mxu0
    %v2955 = vadd.f32 0.0, %v2954
    %2956 = vmatmul.f32.gmra.mxu0 %v2881
    %v2957 = vpop.f32.mrf.mxu0
    %v2958 = vadd.f32 0.0, %v2957
    %2959 = vmatmul.f32.gmra.mxu0 %v2884
    %v2960 = vpop.f32.mrf.mxu0
    %v2961 = vadd.f32 0.0, %v2960
    %2962 = vmatmul.f32.gmra.mxu0 %v2887
    %v2963 = vpop.f32.mrf.mxu0
    %v2964 = vadd.f32 0.0, %v2963
    %2965 = vmatmul.f32.gmra.mxu0 %v2890
    %v2966 = vpop.f32.mrf.mxu0
    %v2967 = vadd.f32 0.0, %v2966
    %2968 = vmatmul.f32.gmra.mxu0 %v2893
    %v2969 = vpop.f32.mrf.mxu0
    %v2970 = vadd.f32 0.0, %v2969
    %2971 = vmatmul.f32.gmra.mxu0 %v2896
    %v2972 = vpop.f32.mrf.mxu0
    %v2973 = vadd.f32 0.0, %v2972
    %2974 = vmatmul.f32.gmra.mxu0 %v2899
    %v2975 = vpop.f32.mrf.mxu0
    %v2976 = vadd.f32 0.0, %v2975
    %2977 = vmatmul.f32.gmra.mxu0 %v2902
    %v2978 = vpop.f32.mrf.mxu0
    %v2979 = vadd.f32 0.0, %v2978
    %2980 = vdwg.mxu0
    %3001 = vrot.lane.b32.xlu0 %v2922, 127
    %v3002 = vpop.permute.xlu0 %3001
    %3003 = vrot.lane.b32.xlu0 %v2925, 127
    %v3004 = vpop.permute.xlu0 %3003
    %3005 = vrot.lane.b32.xlu0 %v2928, 127
    %v3006 = vpop.permute.xlu0 %3005
    %3007 = vrot.lane.b32.xlu0 %v2931, 127
    %v3008 = vpop.permute.xlu0 %3007
    %3009 = vrot.lane.b32.xlu0 %v2934, 127
    %v3010 = vpop.permute.xlu0 %3009
    %3011 = vrot.lane.b32.xlu0 %v2937, 127
    %v3012 = vpop.permute.xlu0 %3011
    %3013 = vrot.lane.b32.xlu0 %v2940, 127
    %v3014 = vpop.permute.xlu0 %3013
    %3015 = vrot.lane.b32.xlu0 %v2943, 127
    %v3016 = vpop.permute.xlu0 %3015
    %3017 = vrot.lane.b32.xlu0 %v2946, 127
    %v3018 = vpop.permute.xlu0 %3017
    %3019 = vrot.lane.b32.xlu0 %v2949, 127
    %v3020 = vpop.permute.xlu0 %3019
    %3021 = vrot.lane.b32.xlu0 %v2952, 127
    %v3022 = vpop.permute.xlu0 %3021
    %3023 = vrot.lane.b32.xlu0 %v2955, 127
    %v3024 = vpop.permute.xlu0 %3023
    %3025 = vrot.lane.b32.xlu0 %v2958, 127
    %v3026 = vpop.permute.xlu0 %3025
    %3027 = vrot.lane.b32.xlu0 %v2961, 127
    %v3028 = vpop.permute.xlu0 %3027
    %3029 = vrot.lane.b32.xlu0 %v2964, 127
    %v3030 = vpop.permute.xlu0 %3029
    %3031 = vrot.lane.b32.xlu0 %v2967, 127
    %v3032 = vpop.permute.xlu0 %3031
    %3033 = vrot.lane.b32.xlu0 %v2970, 127
    %v3034 = vpop.permute.xlu0 %3033
    %3035 = vrot.lane.b32.xlu0 %v2973, 127
    %v3036 = vpop.permute.xlu0 %3035
    %3037 = vrot.lane.b32.xlu0 %v2976, 127
    %v3038 = vpop.permute.xlu0 %3037
    %3039 = vrot.lane.b32.xlu0 %v2979, 127
    %v3040 = vpop.permute.xlu0 %3039
    %3061 = vxpose.xlu0.b32.start [1/16] %v3002, 128
    %3062 = vxpose.xlu0.b32.cont [2/16] %v3004, 128
    %3063 = vxpose.xlu0.b32.cont [3/16] %v3006, 128
    %3064 = vxpose.xlu0.b32.cont [4/16] %v3008, 128
    %3065 = vxpose.xlu0.b32.cont [5/16] %v3010, 128
    %3066 = vxpose.xlu0.b32.cont [6/16] %v3012, 128
    %3067 = vxpose.xlu0.b32.cont [7/16] %v3014, 128
    %3068 = vxpose.xlu0.b32.cont [8/16] %v3016, 128
    %3069 = vxpose.xlu0.b32.cont [9/16] %v3018, 128
    %3070 = vxpose.xlu0.b32.cont [10/16] %v3020, 128
    %3071 = vxpose.xlu0.b32.cont [11/16] %v3022, 128
    %3072 = vxpose.xlu0.b32.cont [12/16] %v3024, 128
    %3073 = vxpose.xlu0.b32.cont [13/16] %v3026, 128
    %3074 = vxpose.xlu0.b32.cont [14/16] %v3028, 128
    %3075 = vxpose.xlu0.b32.cont [15/16] %v3030, 128
    %3076 = vxpose.xlu0.b32.end [16/16] %v3032, 128
    %v3077 = vpop.trf.xlu0
    %v3078 = vpop.trf.xlu0
    %v3079 = vpop.trf.xlu0
    %v3080 = vpop.trf.xlu0
    %v3081 = vpop.trf.xlu0
    %v3082 = vpop.trf.xlu0
    %v3083 = vpop.trf.xlu0
    %v3084 = vpop.trf.xlu0
    %v3085 = vpop.trf.xlu0
    %v3086 = vpop.trf.xlu0
    %v3087 = vpop.trf.xlu0
    %v3088 = vpop.trf.xlu0
    %v3089 = vpop.trf.xlu0
    %v3090 = vpop.trf.xlu0
    %v3091 = vpop.trf.xlu0
    %v3092 = vpop.trf.xlu0
    %3093 = vxpose.xlu0.b32.start [1/16] %v3034, 128
    %3094 = vxpose.xlu0.b32.cont [2/16] %v3036, 128
    %3095 = vxpose.xlu0.b32.cont [3/16] %v3038, 128
    %3096 = vxpose.xlu0.b32.cont [4/16] %v3040, 128
    %3097 = vxpose.xlu0.b32.cont [5/16] 0.0, 128
    %3098 = vxpose.xlu0.b32.cont [6/16] 0.0, 128
    %3099 = vxpose.xlu0.b32.cont [7/16] 0.0, 128
    %3100 = vxpose.xlu0.b32.cont [8/16] 0.0, 128
    %3101 = vxpose.xlu0.b32.cont [9/16] 0.0, 128
    %3102 = vxpose.xlu0.b32.cont [10/16] 0.0, 128
    %3103 = vxpose.xlu0.b32.cont [11/16] 0.0, 128
    %3104 = vxpose.xlu0.b32.cont [12/16] 0.0, 128
    %3105 = vxpose.xlu0.b32.cont [13/16] 0.0, 128
    %3106 = vxpose.xlu0.b32.cont [14/16] 0.0, 128
    %3107 = vxpose.xlu0.b32.cont [15/16] 0.0, 128
    %3108 = vxpose.xlu0.b32.end [16/16] 0.0, 128
    %v3109 = vpop.trf.xlu0
    %v3110 = vpop.trf.xlu0
    %v3111 = vpop.trf.xlu0
    %v3112 = vpop.trf.xlu0
    %v3113 = vpop.trf.xlu0
    %v3114 = vpop.trf.xlu0
    %v3115 = vpop.trf.xlu0
    %v3116 = vpop.trf.xlu0
    %v3117 = vpop.trf.xlu0
    %v3118 = vpop.trf.xlu0
    %v3119 = vpop.trf.xlu0
    %v3120 = vpop.trf.xlu0
    %v3121 = vpop.trf.xlu0
    %v3122 = vpop.trf.xlu0
    %v3123 = vpop.trf.xlu0
    %v3124 = vpop.trf.xlu0
    %3125 = vset.pattern.permute.xlu0 0
    %3126 = vperm.xlu0 %3125, %v2922
    %v3127 = vpop.permute.xlu0 %3126
    %3129 = vset.pattern.permute.xlu0 0
    %3130 = vperm.xlu0 %3129, %v2925
    %v3131 = vpop.permute.xlu0 %3130
    %3133 = vset.pattern.permute.xlu0 0
    %3134 = vperm.xlu0 %3133, %v2928
    %v3135 = vpop.permute.xlu0 %3134
    %3137 = vset.pattern.permute.xlu0 0
    %3138 = vperm.xlu0 %3137, %v2931
    %v3139 = vpop.permute.xlu0 %3138
    %3141 = vset.pattern.permute.xlu0 0
    %3142 = vperm.xlu0 %3141, %v2934
    %v3143 = vpop.permute.xlu0 %3142
    %3145 = vset.pattern.permute.xlu0 0
    %3146 = vperm.xlu0 %3145, %v2937
    %v3147 = vpop.permute.xlu0 %3146
    %3149 = vset.pattern.permute.xlu0 0
    %3150 = vperm.xlu0 %3149, %v2940
    %v3151 = vpop.permute.xlu0 %3150
    %3153 = vset.pattern.permute.xlu0 0
    %3154 = vperm.xlu0 %3153, %v2943
    %v3155 = vpop.permute.xlu0 %3154
    %3157 = vset.pattern.permute.xlu0 0
    %3158 = vperm.xlu0 %3157, %v2946
    %v3159 = vpop.permute.xlu0 %3158
    %3161 = vset.pattern.permute.xlu0 0
    %3162 = vperm.xlu0 %3161, %v2949
    %v3163 = vpop.permute.xlu0 %3162
    %3165 = vset.pattern.permute.xlu0 0
    %3166 = vperm.xlu0 %3165, %v2952
    %v3167 = vpop.permute.xlu0 %3166
    %3169 = vset.pattern.permute.xlu0 0
    %3170 = vperm.xlu0 %3169, %v2955
    %v3171 = vpop.permute.xlu0 %3170
    %3173 = vset.pattern.permute.xlu0 0
    %3174 = vperm.xlu0 %3173, %v2958
    %v3175 = vpop.permute.xlu0 %3174
    %3177 = vset.pattern.permute.xlu0 0
    %3178 = vperm.xlu0 %3177, %v2961
    %v3179 = vpop.permute.xlu0 %3178
    %3181 = vset.pattern.permute.xlu0 0
    %3182 = vperm.xlu0 %3181, %v2964
    %v3183 = vpop.permute.xlu0 %3182
    %3185 = vset.pattern.permute.xlu0 0
    %3186 = vperm.xlu0 %3185, %v2967
    %v3187 = vpop.permute.xlu0 %3186
    %3189 = vset.pattern.permute.xlu0 0
    %3190 = vperm.xlu0 %3189, %v2970
    %v3191 = vpop.permute.xlu0 %3190
    %3193 = vset.pattern.permute.xlu0 0
    %3194 = vperm.xlu0 %3193, %v2973
    %v3195 = vpop.permute.xlu0 %3194
    %3197 = vset.pattern.permute.xlu0 0
    %3198 = vperm.xlu0 %3197, %v2976
    %v3199 = vpop.permute.xlu0 %3198
    %3201 = vset.pattern.permute.xlu0 0
    %3202 = vperm.xlu0 %3201, %v2979
    %v3203 = vpop.permute.xlu0 %3202
    %v3205 = vperm.slane %v3077, 0
    %v3206 = vperm.slane %v3109, 0
    %v3207 = vadd.f32 %v3127, %v3205
    %v3208 = vadd.f32 %v3127, %v3206
    %v3209 = vadd.f32 %v3131, %v3205
    %v3210 = vadd.f32 %v3131, %v3206
    %v3211 = vadd.f32 %v3135, %v3205
    %v3212 = vadd.f32 %v3135, %v3206
    %v3213 = vadd.f32 %v3139, %v3205
    %v3214 = vadd.f32 %v3139, %v3206
    %v3215 = vadd.f32 %v3143, %v3205
    %v3216 = vadd.f32 %v3143, %v3206
    %v3217 = vadd.f32 %v3147, %v3205
    %v3218 = vadd.f32 %v3147, %v3206
    %v3219 = vadd.f32 %v3151, %v3205
    %v3220 = vadd.f32 %v3151, %v3206
    %v3221 = vadd.f32 %v3155, %v3205
    %v3222 = vadd.f32 %v3155, %v3206
    %v3223 = vadd.f32 %v3159, %v3205
    %v3224 = vadd.f32 %v3159, %v3206
    %v3225 = vadd.f32 %v3163, %v3205
    %v3226 = vadd.f32 %v3163, %v3206
    %v3227 = vadd.f32 %v3167, %v3205
    %v3228 = vadd.f32 %v3167, %v3206
    %v3229 = vadd.f32 %v3171, %v3205
    %v3230 = vadd.f32 %v3171, %v3206
    %v3231 = vadd.f32 %v3175, %v3205
    %v3232 = vadd.f32 %v3175, %v3206
    %v3233 = vadd.f32 %v3179, %v3205
    %v3234 = vadd.f32 %v3179, %v3206
    %v3235 = vadd.f32 %v3183, %v3205
    %v3236 = vadd.f32 %v3183, %v3206
    %v3237 = vadd.f32 %v3187, %v3205
    %v3238 = vadd.f32 %v3187, %v3206
    %v3239 = vadd.f32 %v3191, %v3205
    %v3240 = vadd.f32 %v3191, %v3206
    %v3241 = vadd.f32 %v3195, %v3205
    %v3242 = vadd.f32 %v3195, %v3206
    %v3243 = vadd.f32 %v3199, %v3205
    %v3244 = vadd.f32 %v3199, %v3206
    %v3245 = vadd.f32 %v3203, %v3205
    %v3246 = vadd.f32 %v3203, %v3206
    %vm3247 = vcmp.gt.f32.partialorder %v3207, 0.0
    %vm3248 = vcmp.gt.f32.partialorder %v3208, 0.0
    %vm3249 = vcmp.gt.f32.partialorder %v3209, 0.0
    %vm3250 = vcmp.gt.f32.partialorder %v3210, 0.0
    %vm3251 = vcmp.gt.f32.partialorder %v3211, 0.0
    %vm3252 = vcmp.gt.f32.partialorder %v3212, 0.0
    %vm3253 = vcmp.gt.f32.partialorder %v3213, 0.0
    %vm3254 = vcmp.gt.f32.partialorder %v3214, 0.0
    %vm3255 = vcmp.gt.f32.partialorder %v3215, 0.0
    %vm3256 = vcmp.gt.f32.partialorder %v3216, 0.0
    %vm3257 = vcmp.gt.f32.partialorder %v3217, 0.0
    %vm3258 = vcmp.gt.f32.partialorder %v3218, 0.0
    %vm3259 = vcmp.gt.f32.partialorder %v3219, 0.0
    %vm3260 = vcmp.gt.f32.partialorder %v3220, 0.0
    %vm3261 = vcmp.gt.f32.partialorder %v3221, 0.0
    %vm3262 = vcmp.gt.f32.partialorder %v3222, 0.0
    %vm3263 = vcmp.gt.f32.partialorder %v3223, 0.0
    %vm3264 = vcmp.gt.f32.partialorder %v3224, 0.0
    %vm3265 = vcmp.gt.f32.partialorder %v3225, 0.0
    %vm3266 = vcmp.gt.f32.partialorder %v3226, 0.0
    %vm3267 = vcmp.gt.f32.partialorder %v3227, 0.0
    %vm3268 = vcmp.gt.f32.partialorder %v3228, 0.0
    %vm3269 = vcmp.gt.f32.partialorder %v3229, 0.0
    %vm3270 = vcmp.gt.f32.partialorder %v3230, 0.0
    %vm3271 = vcmp.gt.f32.partialorder %v3231, 0.0
    %vm3272 = vcmp.gt.f32.partialorder %v3232, 0.0
    %vm3273 = vcmp.gt.f32.partialorder %v3233, 0.0
    %vm3274 = vcmp.gt.f32.partialorder %v3234, 0.0
    %vm3275 = vcmp.gt.f32.partialorder %v3235, 0.0
    %vm3276 = vcmp.gt.f32.partialorder %v3236, 0.0
    %vm3277 = vcmp.gt.f32.partialorder %v3237, 0.0
    %vm3278 = vcmp.gt.f32.partialorder %v3238, 0.0
    %vm3279 = vcmp.gt.f32.partialorder %v3239, 0.0
    %vm3280 = vcmp.gt.f32.partialorder %v3240, 0.0
    %vm3281 = vcmp.gt.f32.partialorder %v3241, 0.0
    %vm3282 = vcmp.gt.f32.partialorder %v3242, 0.0
    %vm3283 = vcmp.gt.f32.partialorder %v3243, 0.0
    %vm3284 = vcmp.gt.f32.partialorder %v3244, 0.0
    %vm3285 = vcmp.gt.f32.partialorder %v3245, 0.0
    %vm3286 = vcmp.gt.f32.partialorder %v3246, 0.0
    %v3287 = vmul.f32 %v3207, 0.2
    %v3288 = vmul.f32 %v3208, 0.2
    %v3289 = vmul.f32 %v3209, 0.2
    %v3290 = vmul.f32 %v3210, 0.2
    %v3291 = vmul.f32 %v3211, 0.2
    %v3292 = vmul.f32 %v3212, 0.2
    %v3293 = vmul.f32 %v3213, 0.2
    %v3294 = vmul.f32 %v3214, 0.2
    %v3295 = vmul.f32 %v3215, 0.2
    %v3296 = vmul.f32 %v3216, 0.2
    %v3297 = vmul.f32 %v3217, 0.2
    %v3298 = vmul.f32 %v3218, 0.2
    %v3299 = vmul.f32 %v3219, 0.2
    %v3300 = vmul.f32 %v3220, 0.2
    %v3301 = vmul.f32 %v3221, 0.2
    %v3302 = vmul.f32 %v3222, 0.2
    %v3303 = vmul.f32 %v3223, 0.2
    %v3304 = vmul.f32 %v3224, 0.2
    %v3305 = vmul.f32 %v3225, 0.2
    %v3306 = vmul.f32 %v3226, 0.2
    %v3307 = vmul.f32 %v3227, 0.2
    %v3308 = vmul.f32 %v3228, 0.2
    %v3309 = vmul.f32 %v3229, 0.2
    %v3310 = vmul.f32 %v3230, 0.2
    %v3311 = vmul.f32 %v3231, 0.2
    %v3312 = vmul.f32 %v3232, 0.2
    %v3313 = vmul.f32 %v3233, 0.2
    %v3314 = vmul.f32 %v3234, 0.2
    %v3315 = vmul.f32 %v3235, 0.2
    %v3316 = vmul.f32 %v3236, 0.2
    %v3317 = vmul.f32 %v3237, 0.2
    %v3318 = vmul.f32 %v3238, 0.2
    %v3319 = vmul.f32 %v3239, 0.2
    %v3320 = vmul.f32 %v3240, 0.2
    %v3321 = vmul.f32 %v3241, 0.2
    %v3322 = vmul.f32 %v3242, 0.2
    %v3323 = vmul.f32 %v3243, 0.2
    %v3324 = vmul.f32 %v3244, 0.2
    %v3325 = vmul.f32 %v3245, 0.2
    %v3326 = vmul.f32 %v3246, 0.2
    %v3327 = vsel %vm3247, %v3207, %v3287
    %v3328 = vsel %vm3248, %v3208, %v3288
    %v3329 = vsel %vm3249, %v3209, %v3289
    %v3330 = vsel %vm3250, %v3210, %v3290
    %v3331 = vsel %vm3251, %v3211, %v3291
    %v3332 = vsel %vm3252, %v3212, %v3292
    %v3333 = vsel %vm3253, %v3213, %v3293
    %v3334 = vsel %vm3254, %v3214, %v3294
    %v3335 = vsel %vm3255, %v3215, %v3295
    %v3336 = vsel %vm3256, %v3216, %v3296
    %v3337 = vsel %vm3257, %v3217, %v3297
    %v3338 = vsel %vm3258, %v3218, %v3298
    %v3339 = vsel %vm3259, %v3219, %v3299
    %v3340 = vsel %vm3260, %v3220, %v3300
    %v3341 = vsel %vm3261, %v3221, %v3301
    %v3342 = vsel %vm3262, %v3222, %v3302
    %v3343 = vsel %vm3263, %v3223, %v3303
    %v3344 = vsel %vm3264, %v3224, %v3304
    %v3345 = vsel %vm3265, %v3225, %v3305
    %v3346 = vsel %vm3266, %v3226, %v3306
    %v3347 = vsel %vm3267, %v3227, %v3307
    %v3348 = vsel %vm3268, %v3228, %v3308
    %v3349 = vsel %vm3269, %v3229, %v3309
    %v3350 = vsel %vm3270, %v3230, %v3310
    %v3351 = vsel %vm3271, %v3231, %v3311
    %v3352 = vsel %vm3272, %v3232, %v3312
    %v3353 = vsel %vm3273, %v3233, %v3313
    %v3354 = vsel %vm3274, %v3234, %v3314
    %v3355 = vsel %vm3275, %v3235, %v3315
    %v3356 = vsel %vm3276, %v3236, %v3316
    %v3357 = vsel %vm3277, %v3237, %v3317
    %v3358 = vsel %vm3278, %v3238, %v3318
    %v3359 = vsel %vm3279, %v3239, %v3319
    %v3360 = vsel %vm3280, %v3240, %v3320
    %v3361 = vsel %vm3281, %v3241, %v3321
    %v3362 = vsel %vm3282, %v3242, %v3322
    %v3363 = vsel %vm3283, %v3243, %v3323
    %v3364 = vsel %vm3284, %v3244, %v3324
    %v3365 = vsel %vm3285, %v3245, %v3325
    %v3366 = vsel %vm3286, %v3246, %v3326
    %v3367 = vadd.f32 %v3327, %v154
    %v3368 = vadd.f32 %v3328, %v155
    %v3369 = vadd.f32 %v3329, %v156
    %v3370 = vadd.f32 %v3330, %v157
    %v3371 = vadd.f32 %v3331, %v158
    %v3372 = vadd.f32 %v3332, %v159
    %v3373 = vadd.f32 %v3333, %v160
    %v3374 = vadd.f32 %v3334, %v161
    %v3375 = vadd.f32 %v3335, %v162
    %v3376 = vadd.f32 %v3336, %v163
    %v3377 = vadd.f32 %v3337, %v164
    %v3378 = vadd.f32 %v3338, %v165
    %v3379 = vadd.f32 %v3339, %v166
    %v3380 = vadd.f32 %v3340, %v167
    %v3381 = vadd.f32 %v3341, %v168
    %v3382 = vadd.f32 %v3342, %v169
    %v3383 = vadd.f32 %v3343, %v170
    %v3384 = vadd.f32 %v3344, %v171
    %v3385 = vadd.f32 %v3345, %v172
    %v3386 = vadd.f32 %v3346, %v173
    %v3387 = vadd.f32 %v3347, %v174
    %v3388 = vadd.f32 %v3348, %v175
    %v3389 = vadd.f32 %v3349, %v176
    %v3390 = vadd.f32 %v3350, %v177
    %v3391 = vadd.f32 %v3351, %v178
    %v3392 = vadd.f32 %v3352, %v179
    %v3393 = vadd.f32 %v3353, %v180
    %v3394 = vadd.f32 %v3354, %v181
    %v3395 = vadd.f32 %v3355, %v182
    %v3396 = vadd.f32 %v3356, %v183
    %v3397 = vadd.f32 %v3357, %v184
    %v3398 = vadd.f32 %v3358, %v185
    %v3399 = vadd.f32 %v3359, %v186
    %v3400 = vadd.f32 %v3360, %v187
    %v3401 = vadd.f32 %v3361, %v188
    %v3402 = vadd.f32 %v3362, %v189
    %v3403 = vadd.f32 %v3363, %v190
    %v3404 = vadd.f32 %v3364, %v191
    %v3405 = vadd.f32 %v3365, %v192
    %v3406 = vadd.f32 %v3366, %v193
    %v3407 = vsel %vm919, %v3368, -inf
    %v3408 = vmax.f32 %v3367, %v3407
    %3409 = vmax.xlane.f32.xlu0 %v3408
    %v3410 = vpop.xlane.xlu0 %3409
    %v3411 = vsel %vm919, %v3370, -inf
    %v3412 = vmax.f32 %v3369, %v3411
    %3413 = vmax.xlane.f32.xlu0 %v3412
    %v3414 = vpop.xlane.xlu0 %3413
    %v3415 = vsel %vm919, %v3372, -inf
    %v3416 = vmax.f32 %v3371, %v3415
    %3417 = vmax.xlane.f32.xlu0 %v3416
    %v3418 = vpop.xlane.xlu0 %3417
    %v3419 = vsel %vm919, %v3374, -inf
    %v3420 = vmax.f32 %v3373, %v3419
    %3421 = vmax.xlane.f32.xlu0 %v3420
    %v3422 = vpop.xlane.xlu0 %3421
    %v3423 = vsel %vm919, %v3376, -inf
    %v3424 = vmax.f32 %v3375, %v3423
    %3425 = vmax.xlane.f32.xlu0 %v3424
    %v3426 = vpop.xlane.xlu0 %3425
    %v3427 = vsel %vm919, %v3378, -inf
    %v3428 = vmax.f32 %v3377, %v3427
    %3429 = vmax.xlane.f32.xlu0 %v3428
    %v3430 = vpop.xlane.xlu0 %3429
    %v3431 = vsel %vm919, %v3380, -inf
    %v3432 = vmax.f32 %v3379, %v3431
    %3433 = vmax.xlane.f32.xlu0 %v3432
    %v3434 = vpop.xlane.xlu0 %3433
    %v3435 = vsel %vm919, %v3382, -inf
    %v3436 = vmax.f32 %v3381, %v3435
    %3437 = vmax.xlane.f32.xlu0 %v3436
    %v3438 = vpop.xlane.xlu0 %3437
    %v3439 = vsel %vm919, %v3384, -inf
    %v3440 = vmax.f32 %v3383, %v3439
    %3441 = vmax.xlane.f32.xlu0 %v3440
    %v3442 = vpop.xlane.xlu0 %3441
    %v3443 = vsel %vm919, %v3386, -inf
    %v3444 = vmax.f32 %v3385, %v3443
    %3445 = vmax.xlane.f32.xlu0 %v3444
    %v3446 = vpop.xlane.xlu0 %3445
    %v3447 = vsel %vm919, %v3388, -inf
    %v3448 = vmax.f32 %v3387, %v3447
    %3449 = vmax.xlane.f32.xlu0 %v3448
    %v3450 = vpop.xlane.xlu0 %3449
    %v3451 = vsel %vm919, %v3390, -inf
    %v3452 = vmax.f32 %v3389, %v3451
    %3453 = vmax.xlane.f32.xlu0 %v3452
    %v3454 = vpop.xlane.xlu0 %3453
    %v3455 = vsel %vm919, %v3392, -inf
    %v3456 = vmax.f32 %v3391, %v3455
    %3457 = vmax.xlane.f32.xlu0 %v3456
    %v3458 = vpop.xlane.xlu0 %3457
    %v3459 = vsel %vm919, %v3394, -inf
    %v3460 = vmax.f32 %v3393, %v3459
    %3461 = vmax.xlane.f32.xlu0 %v3460
    %v3462 = vpop.xlane.xlu0 %3461
    %v3463 = vsel %vm919, %v3396, -inf
    %v3464 = vmax.f32 %v3395, %v3463
    %3465 = vmax.xlane.f32.xlu0 %v3464
    %v3466 = vpop.xlane.xlu0 %3465
    %v3467 = vsel %vm919, %v3398, -inf
    %v3468 = vmax.f32 %v3397, %v3467
    %3469 = vmax.xlane.f32.xlu0 %v3468
    %v3470 = vpop.xlane.xlu0 %3469
    %v3471 = vsel %vm919, %v3400, -inf
    %v3472 = vmax.f32 %v3399, %v3471
    %3473 = vmax.xlane.f32.xlu0 %v3472
    %v3474 = vpop.xlane.xlu0 %3473
    %v3475 = vsel %vm919, %v3402, -inf
    %v3476 = vmax.f32 %v3401, %v3475
    %3477 = vmax.xlane.f32.xlu0 %v3476
    %v3478 = vpop.xlane.xlu0 %3477
    %v3479 = vsel %vm919, %v3404, -inf
    %v3480 = vmax.f32 %v3403, %v3479
    %3481 = vmax.xlane.f32.xlu0 %v3480
    %v3482 = vpop.xlane.xlu0 %3481
    %v3483 = vsel %vm996, %v3405, -inf
    %v3484 = vsel %vm998, %v3406, -inf
    %v3485 = vmax.f32 %v3483, %v3484
    %3486 = vmax.xlane.f32.xlu0 %v3485
    %v3487 = vpop.xlane.xlu0 %3486
    %v3488 = vsub.f32 %v3367, %v3410
    %v3489 = vsub.f32 %v3368, %v3410
    %v3490 = vsub.f32 %v3369, %v3414
    %v3491 = vsub.f32 %v3370, %v3414
    %v3492 = vsub.f32 %v3371, %v3418
    %v3493 = vsub.f32 %v3372, %v3418
    %v3494 = vsub.f32 %v3373, %v3422
    %v3495 = vsub.f32 %v3374, %v3422
    %v3496 = vsub.f32 %v3375, %v3426
    %v3497 = vsub.f32 %v3376, %v3426
    %v3498 = vsub.f32 %v3377, %v3430
    %v3499 = vsub.f32 %v3378, %v3430
    %v3500 = vsub.f32 %v3379, %v3434
    %v3501 = vsub.f32 %v3380, %v3434
    %v3502 = vsub.f32 %v3381, %v3438
    %v3503 = vsub.f32 %v3382, %v3438
    %v3504 = vsub.f32 %v3383, %v3442
    %v3505 = vsub.f32 %v3384, %v3442
    %v3506 = vsub.f32 %v3385, %v3446
    %v3507 = vsub.f32 %v3386, %v3446
    %v3508 = vsub.f32 %v3387, %v3450
    %v3509 = vsub.f32 %v3388, %v3450
    %v3510 = vsub.f32 %v3389, %v3454
    %v3511 = vsub.f32 %v3390, %v3454
    %v3512 = vsub.f32 %v3391, %v3458
    %v3513 = vsub.f32 %v3392, %v3458
    %v3514 = vsub.f32 %v3393, %v3462
    %v3515 = vsub.f32 %v3394, %v3462
    %v3516 = vsub.f32 %v3395, %v3466
    %v3517 = vsub.f32 %v3396, %v3466
    %v3518 = vsub.f32 %v3397, %v3470
    %v3519 = vsub.f32 %v3398, %v3470
    %v3520 = vsub.f32 %v3399, %v3474
    %v3521 = vsub.f32 %v3400, %v3474
    %v3522 = vsub.f32 %v3401, %v3478
    %v3523 = vsub.f32 %v3402, %v3478
    %v3524 = vsub.f32 %v3403, %v3482
    %v3525 = vsub.f32 %v3404, %v3482
    %v3526 = vsub.f32 %v3405, %v3487
    %v3527 = vsub.f32 %v3406, %v3487
    %v3528 = vmul.f32 %v3488, 1.442695
    %v3529 = vpow.pop %v3528
    %v3530 = vmul.f32 %v3489, 1.442695
    %v3531 = vpow.pop %v3530
    %v3532 = vmul.f32 %v3490, 1.442695
    %v3533 = vpow.pop %v3532
    %v3534 = vmul.f32 %v3491, 1.442695
    %v3535 = vpow.pop %v3534
    %v3536 = vmul.f32 %v3492, 1.442695
    %v3537 = vpow.pop %v3536
    %v3538 = vmul.f32 %v3493, 1.442695
    %v3539 = vpow.pop %v3538
    %v3540 = vmul.f32 %v3494, 1.442695
    %v3541 = vpow.pop %v3540
    %v3542 = vmul.f32 %v3495, 1.442695
    %v3543 = vpow.pop %v3542
    %v3544 = vmul.f32 %v3496, 1.442695
    %v3545 = vpow.pop %v3544
    %v3546 = vmul.f32 %v3497, 1.442695
    %v3547 = vpow.pop %v3546
    %v3548 = vmul.f32 %v3498, 1.442695
    %v3549 = vpow.pop %v3548
    %v3550 = vmul.f32 %v3499, 1.442695
    %v3551 = vpow.pop %v3550
    %v3552 = vmul.f32 %v3500, 1.442695
    %v3553 = vpow.pop %v3552
    %v3554 = vmul.f32 %v3501, 1.442695
    %v3555 = vpow.pop %v3554
    %v3556 = vmul.f32 %v3502, 1.442695
    %v3557 = vpow.pop %v3556
    %v3558 = vmul.f32 %v3503, 1.442695
    %v3559 = vpow.pop %v3558
    %v3560 = vmul.f32 %v3504, 1.442695
    %v3561 = vpow.pop %v3560
    %v3562 = vmul.f32 %v3505, 1.442695
    %v3563 = vpow.pop %v3562
    %v3564 = vmul.f32 %v3506, 1.442695
    %v3565 = vpow.pop %v3564
    %v3566 = vmul.f32 %v3507, 1.442695
    %v3567 = vpow.pop %v3566
    %v3568 = vmul.f32 %v3508, 1.442695
    %v3569 = vpow.pop %v3568
    %v3570 = vmul.f32 %v3509, 1.442695
    %v3571 = vpow.pop %v3570
    %v3572 = vmul.f32 %v3510, 1.442695
    %v3573 = vpow.pop %v3572
    %v3574 = vmul.f32 %v3511, 1.442695
    %v3575 = vpow.pop %v3574
    %v3576 = vmul.f32 %v3512, 1.442695
    %v3577 = vpow.pop %v3576
    %v3578 = vmul.f32 %v3513, 1.442695
    %v3579 = vpow.pop %v3578
    %v3580 = vmul.f32 %v3514, 1.442695
    %v3581 = vpow.pop %v3580
    %v3582 = vmul.f32 %v3515, 1.442695
    %v3583 = vpow.pop %v3582
    %v3584 = vmul.f32 %v3516, 1.442695
    %v3585 = vpow.pop %v3584
    %v3586 = vmul.f32 %v3517, 1.442695
    %v3587 = vpow.pop %v3586
    %v3588 = vmul.f32 %v3518, 1.442695
    %v3589 = vpow.pop %v3588
    %v3590 = vmul.f32 %v3519, 1.442695
    %v3591 = vpow.pop %v3590
    %v3592 = vmul.f32 %v3520, 1.442695
    %v3593 = vpow.pop %v3592
    %v3594 = vmul.f32 %v3521, 1.442695
    %v3595 = vpow.pop %v3594
    %v3596 = vmul.f32 %v3522, 1.442695
    %v3597 = vpow.pop %v3596
    %v3598 = vmul.f32 %v3523, 1.442695
    %v3599 = vpow.pop %v3598
    %v3600 = vmul.f32 %v3524, 1.442695
    %v3601 = vpow.pop %v3600
    %v3602 = vmul.f32 %v3525, 1.442695
    %v3603 = vpow.pop %v3602
    %v3604 = vmul.f32 %v3526, 1.442695
    %v3605 = vpow.pop %v3604
    %v3606 = vmul.f32 %v3527, 1.442695
    %v3607 = vpow.pop %v3606
    %v3608 = vsel %vm919, %v3531, 0.0
    %v3609 = vadd.f32 %v3529, %v3608
    %3610 = vadd.xlane.f32.xlu0 %v3609
    %v3611 = vpop.xlane.xlu0 %3610
    %v3612 = vsel %vm919, %v3535, 0.0
    %v3613 = vadd.f32 %v3533, %v3612
    %3614 = vadd.xlane.f32.xlu0 %v3613
    %v3615 = vpop.xlane.xlu0 %3614
    %v3616 = vsel %vm919, %v3539, 0.0
    %v3617 = vadd.f32 %v3537, %v3616
    %3618 = vadd.xlane.f32.xlu0 %v3617
    %v3619 = vpop.xlane.xlu0 %3618
    %v3620 = vsel %vm919, %v3543, 0.0
    %v3621 = vadd.f32 %v3541, %v3620
    %3622 = vadd.xlane.f32.xlu0 %v3621
    %v3623 = vpop.xlane.xlu0 %3622
    %v3624 = vsel %vm919, %v3547, 0.0
    %v3625 = vadd.f32 %v3545, %v3624
    %3626 = vadd.xlane.f32.xlu0 %v3625
    %v3627 = vpop.xlane.xlu0 %3626
    %v3628 = vsel %vm919, %v3551, 0.0
    %v3629 = vadd.f32 %v3549, %v3628
    %3630 = vadd.xlane.f32.xlu0 %v3629
    %v3631 = vpop.xlane.xlu0 %3630
    %v3632 = vsel %vm919, %v3555, 0.0
    %v3633 = vadd.f32 %v3553, %v3632
    %3634 = vadd.xlane.f32.xlu0 %v3633
    %v3635 = vpop.xlane.xlu0 %3634
    %v3636 = vsel %vm919, %v3559, 0.0
    %v3637 = vadd.f32 %v3557, %v3636
    %3638 = vadd.xlane.f32.xlu0 %v3637
    %v3639 = vpop.xlane.xlu0 %3638
    %v3640 = vsel %vm919, %v3563, 0.0
    %v3641 = vadd.f32 %v3561, %v3640
    %3642 = vadd.xlane.f32.xlu0 %v3641
    %v3643 = vpop.xlane.xlu0 %3642
    %v3644 = vsel %vm919, %v3567, 0.0
    %v3645 = vadd.f32 %v3565, %v3644
    %3646 = vadd.xlane.f32.xlu0 %v3645
    %v3647 = vpop.xlane.xlu0 %3646
    %v3648 = vsel %vm919, %v3571, 0.0
    %v3649 = vadd.f32 %v3569, %v3648
    %3650 = vadd.xlane.f32.xlu0 %v3649
    %v3651 = vpop.xlane.xlu0 %3650
    %v3652 = vsel %vm919, %v3575, 0.0
    %v3653 = vadd.f32 %v3573, %v3652
    %3654 = vadd.xlane.f32.xlu0 %v3653
    %v3655 = vpop.xlane.xlu0 %3654
    %v3656 = vsel %vm919, %v3579, 0.0
    %v3657 = vadd.f32 %v3577, %v3656
    %3658 = vadd.xlane.f32.xlu0 %v3657
    %v3659 = vpop.xlane.xlu0 %3658
    %v3660 = vsel %vm919, %v3583, 0.0
    %v3661 = vadd.f32 %v3581, %v3660
    %3662 = vadd.xlane.f32.xlu0 %v3661
    %v3663 = vpop.xlane.xlu0 %3662
    %v3664 = vsel %vm919, %v3587, 0.0
    %v3665 = vadd.f32 %v3585, %v3664
    %3666 = vadd.xlane.f32.xlu0 %v3665
    %v3667 = vpop.xlane.xlu0 %3666
    %v3668 = vsel %vm919, %v3591, 0.0
    %v3669 = vadd.f32 %v3589, %v3668
    %3670 = vadd.xlane.f32.xlu0 %v3669
    %v3671 = vpop.xlane.xlu0 %3670
    %v3672 = vsel %vm919, %v3595, 0.0
    %v3673 = vadd.f32 %v3593, %v3672
    %3674 = vadd.xlane.f32.xlu0 %v3673
    %v3675 = vpop.xlane.xlu0 %3674
    %v3676 = vsel %vm919, %v3599, 0.0
    %v3677 = vadd.f32 %v3597, %v3676
    %3678 = vadd.xlane.f32.xlu0 %v3677
    %v3679 = vpop.xlane.xlu0 %3678
    %v3680 = vsel %vm919, %v3603, 0.0
    %v3681 = vadd.f32 %v3601, %v3680
    %3682 = vadd.xlane.f32.xlu0 %v3681
    %v3683 = vpop.xlane.xlu0 %3682
    %v3684 = vsel %vm996, %v3605, 0.0
    %v3685 = vsel %vm998, %v3607, 0.0
    %v3686 = vadd.f32 %v3684, %v3685
    %3687 = vadd.xlane.f32.xlu0 %v3686
    %v3688 = vpop.xlane.xlu0 %3687
    %v3689 = vrcp.pop %v3611
    %v3690 = vrcp.pop %v3615
    %v3691 = vrcp.pop %v3619
    %v3692 = vrcp.pop %v3623
    %v3693 = vrcp.pop %v3627
    %v3694 = vrcp.pop %v3631
    %v3695 = vrcp.pop %v3635
    %v3696 = vrcp.pop %v3639
    %v3697 = vrcp.pop %v3643
    %v3698 = vrcp.pop %v3647
    %v3699 = vrcp.pop %v3651
    %v3700 = vrcp.pop %v3655
    %v3701 = vrcp.pop %v3659
    %v3702 = vrcp.pop %v3663
    %v3703 = vrcp.pop %v3667
    %v3704 = vrcp.pop %v3671
    %v3705 = vrcp.pop %v3675
    %v3706 = vrcp.pop %v3679
    %v3707 = vrcp.pop %v3683
    %v3708 = vrcp.pop %v3688
    %3709 = vxpose.xlu0.b32.start [1/16] %v3689, 128
    %3710 = vxpose.xlu0.b32.cont [2/16] %v3690, 128
    %3711 = vxpose.xlu0.b32.cont [3/16] %v3691, 128
    %3712 = vxpose.xlu0.b32.cont [4/16] %v3692, 128
    %3713 = vxpose.xlu0.b32.cont [5/16] %v3693, 128
    %3714 = vxpose.xlu0.b32.cont [6/16] %v3694, 128
    %3715 = vxpose.xlu0.b32.cont [7/16] %v3695, 128
    %3716 = vxpose.xlu0.b32.cont [8/16] %v3696, 128
    %3717 = vxpose.xlu0.b32.cont [9/16] %v3697, 128
    %3718 = vxpose.xlu0.b32.cont [10/16] %v3698, 128
    %3719 = vxpose.xlu0.b32.cont [11/16] %v3699, 128
    %3720 = vxpose.xlu0.b32.cont [12/16] %v3700, 128
    %3721 = vxpose.xlu0.b32.cont [13/16] %v3701, 128
    %3722 = vxpose.xlu0.b32.cont [14/16] %v3702, 128
    %3723 = vxpose.xlu0.b32.cont [15/16] %v3703, 128
    %3724 = vxpose.xlu0.b32.end [16/16] %v3704, 128
    %v3725 = vpop.trf.xlu0
    %v3726 = vpop.trf.xlu0
    %v3727 = vpop.trf.xlu0
    %v3728 = vpop.trf.xlu0
    %v3729 = vpop.trf.xlu0
    %v3730 = vpop.trf.xlu0
    %v3731 = vpop.trf.xlu0
    %v3732 = vpop.trf.xlu0
    %v3733 = vpop.trf.xlu0
    %v3734 = vpop.trf.xlu0
    %v3735 = vpop.trf.xlu0
    %v3736 = vpop.trf.xlu0
    %v3737 = vpop.trf.xlu0
    %v3738 = vpop.trf.xlu0
    %v3739 = vpop.trf.xlu0
    %v3740 = vpop.trf.xlu0
    %3741 = vxpose.xlu0.b32.start [1/16] %v3705, 128
    %3742 = vxpose.xlu0.b32.cont [2/16] %v3706, 128
    %3743 = vxpose.xlu0.b32.cont [3/16] %v3707, 128
    %3744 = vxpose.xlu0.b32.cont [4/16] %v3708, 128
    %3745 = vxpose.xlu0.b32.cont [5/16] 0.0, 128
    %3746 = vxpose.xlu0.b32.cont [6/16] 0.0, 128
    %3747 = vxpose.xlu0.b32.cont [7/16] 0.0, 128
    %3748 = vxpose.xlu0.b32.cont [8/16] 0.0, 128
    %3749 = vxpose.xlu0.b32.cont [9/16] 0.0, 128
    %3750 = vxpose.xlu0.b32.cont [10/16] 0.0, 128
    %3751 = vxpose.xlu0.b32.cont [11/16] 0.0, 128
    %3752 = vxpose.xlu0.b32.cont [12/16] 0.0, 128
    %3753 = vxpose.xlu0.b32.cont [13/16] 0.0, 128
    %3754 = vxpose.xlu0.b32.cont [14/16] 0.0, 128
    %3755 = vxpose.xlu0.b32.cont [15/16] 0.0, 128
    %3756 = vxpose.xlu0.b32.end [16/16] 0.0, 128
    %v3757 = vpop.trf.xlu0
    %v3758 = vpop.trf.xlu0
    %v3759 = vpop.trf.xlu0
    %v3760 = vpop.trf.xlu0
    %v3761 = vpop.trf.xlu0
    %v3762 = vpop.trf.xlu0
    %v3763 = vpop.trf.xlu0
    %v3764 = vpop.trf.xlu0
    %v3765 = vpop.trf.xlu0
    %v3766 = vpop.trf.xlu0
    %v3767 = vpop.trf.xlu0
    %v3768 = vpop.trf.xlu0
    %v3769 = vpop.trf.xlu0
    %v3770 = vpop.trf.xlu0
    %v3771 = vpop.trf.xlu0
    %v3772 = vpop.trf.xlu0
    %v3773 = vld [vmem:[%s6] sm:$0xff]
    %v3774 = vld [vmem:[%s6 + $0x8] sm:$0xff]
    %v3775 = vld [vmem:[%s6 + $0x10] sm:$0xff]
    %v3776 = vld [vmem:[%s6 + $0x18] sm:$0xff]
    %v3777 = vld [vmem:[%s6 + $0x20] sm:$0xff]
    %v3778 = vld [vmem:[%s6 + $0x28] sm:$0xff]
    %v3779 = vld [vmem:[%s6 + $0x30] sm:$0xff]
    %v3780 = vld [vmem:[%s6 + $0x38] sm:$0xff]
    %v3781 = vld [vmem:[%s6 + $0x40] sm:$0xff]
    %v3782 = vld [vmem:[%s6 + $0x48] sm:$0xff]
    %v3783 = vld [vmem:[%s6 + $0x50] sm:$0xff]
    %v3784 = vld [vmem:[%s6 + $0x58] sm:$0xff]
    %v3785 = vld [vmem:[%s6 + $0x60] sm:$0xff]
    %v3786 = vld [vmem:[%s6 + $0x68] sm:$0xff]
    %v3787 = vld [vmem:[%s6 + $0x70] sm:$0xff]
    %v3788 = vld [vmem:[%s6 + $0x78] sm:$0xff]
    %v3789 = vperm.slane %v3725, 0
    %v3790 = vperm.slane %v3757, 0
    %v3791 = vmul.f32 %v3773, %v3789
    %v3792 = vmul.f32 %v3774, %v3790
    %v3793 = vmul.f32 %v3775, %v3789
    %v3794 = vmul.f32 %v3776, %v3790
    %v3795 = vmul.f32 %v3777, %v3789
    %v3796 = vmul.f32 %v3778, %v3790
    %v3797 = vmul.f32 %v3779, %v3789
    %v3798 = vmul.f32 %v3780, %v3790
    %v3799 = vmul.f32 %v3781, %v3789
    %v3800 = vmul.f32 %v3782, %v3790
    %v3801 = vmul.f32 %v3783, %v3789
    %v3802 = vmul.f32 %v3784, %v3790
    %v3803 = vmul.f32 %v3785, %v3789
    %v3804 = vmul.f32 %v3786, %v3790
    %v3805 = vmul.f32 %v3787, %v3789
    %v3806 = vmul.f32 %v3788, %v3790
    %v3807 = vpack.c.bf16 %v3793, %v3791
    %v3808 = vpack.c.bf16 %v3794, %v3792
    %v3809 = vpack.c.bf16 %v3797, %v3795
    %v3810 = vpack.c.bf16 %v3798, %v3796
    %v3811 = vpack.c.bf16 %v3801, %v3799
    %v3812 = vpack.c.bf16 %v3802, %v3800
    %v3813 = vpack.c.bf16 %v3805, %v3803
    %v3814 = vpack.c.bf16 %v3806, %v3804
    %v3815 = vpack.c.bf16 %v3533, %v3529
    %v3816 = vpack.c.bf16 %v3535, %v3531
    %v3817 = vpack.c.bf16 %v3541, %v3537
    %v3818 = vpack.c.bf16 %v3543, %v3539
    %v3819 = vpack.c.bf16 %v3549, %v3545
    %v3820 = vpack.c.bf16 %v3551, %v3547
    %v3821 = vpack.c.bf16 %v3557, %v3553
    %v3822 = vpack.c.bf16 %v3559, %v3555
    %v3823 = vpack.c.bf16 %v3565, %v3561
    %v3824 = vpack.c.bf16 %v3567, %v3563
    %v3825 = vpack.c.bf16 %v3573, %v3569
    %v3826 = vpack.c.bf16 %v3575, %v3571
    %v3827 = vpack.c.bf16 %v3581, %v3577
    %v3828 = vpack.c.bf16 %v3583, %v3579
    %v3829 = vpack.c.bf16 %v3589, %v3585
    %v3830 = vpack.c.bf16 %v3591, %v3587
    %v3831 = vpack.c.bf16 %v3597, %v3593
    %v3832 = vpack.c.bf16 %v3599, %v3595
    %v3833 = vpack.c.bf16 %v3605, %v3601
    %v3834 = vpack.c.bf16 %v3607, %v3603
    %v3836 = vsel %vm919, %v3808, 0
    %v3839 = vsel %vm919, %v3810, 0
    %v3842 = vsel %vm919, %v3812, 0
    %v3845 = vsel %vm919, %v3814, 0
    %v3848 = vsel %vm1264, %v3833, 0
    %v3851 = vsel %vm1264, %v3834, 0
    %3853 = vmatpush.bf16.msra.mxu0 %v3829
    %3854 = vmatpush.bf16.msra.mxu0 %v3827
    %3855 = vmatpush.bf16.msra.mxu0 %v3825
    %3856 = vmatpush.bf16.msra.mxu0 %v3823
    %3857 = vmatpush.bf16.msra.mxu0 %v3821
    %3858 = vmatpush.bf16.msra.mxu0 %v3819
    %3859 = vmatpush.bf16.msra.mxu0 %v3817
    %3860 = vmatpush.bf16.msra.mxu0 %v3815
    %3861 = vmatmul.bf16.gmra.mxu0 %v3807
    %v3862 = vpop.f32.mrf.mxu0
    %v3863 = vadd.f32 0.0, %v3862
    %v3864 = vpop.f32.mrf.mxu0
    %v3865 = vadd.f32 0.0, %v3864
    %3866 = vmatmul.bf16.gmra.mxu0 %v3809
    %v3867 = vpop.f32.mrf.mxu0
    %v3868 = vadd.f32 0.0, %v3867
    %v3869 = vpop.f32.mrf.mxu0
    %v3870 = vadd.f32 0.0, %v3869
    %3871 = vmatmul.bf16.gmra.mxu0 %v3811
    %v3872 = vpop.f32.mrf.mxu0
    %v3873 = vadd.f32 0.0, %v3872
    %v3874 = vpop.f32.mrf.mxu0
    %v3875 = vadd.f32 0.0, %v3874
    %3876 = vmatmul.bf16.gmra.mxu0 %v3813
    %v3877 = vpop.f32.mrf.mxu0
    %v3878 = vadd.f32 0.0, %v3877
    %v3879 = vpop.f32.mrf.mxu0
    %v3880 = vadd.f32 0.0, %v3879
    %3881 = vdwg.mxu0
    %3882 = vmatpush.bf16.msra.mxu0 0
    %3883 = vmatpush.bf16.msra.mxu0 0
    %3884 = vmatpush.bf16.msra.mxu0 0
    %3885 = vmatpush.bf16.msra.mxu0 0
    %3886 = vmatpush.bf16.msra.mxu0 0
    %3887 = vmatpush.bf16.msra.mxu0 0
    %3888 = vmatpush.bf16.msra.mxu0 %v3848
    %3889 = vmatpush.bf16.msra.mxu0 %v3831
    %3890 = vmatmul.bf16.gmra.mxu0 %v3836
    %v3891 = vpop.f32.mrf.mxu0
    %v3892 = vadd.f32 %v3863, %v3891
    %v3893 = vpop.f32.mrf.mxu0
    %v3894 = vadd.f32 %v3865, %v3893
    %3895 = vmatmul.bf16.gmra.mxu0 %v3839
    %v3896 = vpop.f32.mrf.mxu0
    %v3897 = vadd.f32 %v3868, %v3896
    %v3898 = vpop.f32.mrf.mxu0
    %v3899 = vadd.f32 %v3870, %v3898
    %3900 = vmatmul.bf16.gmra.mxu0 %v3842
    %v3901 = vpop.f32.mrf.mxu0
    %v3902 = vadd.f32 %v3873, %v3901
    %v3903 = vpop.f32.mrf.mxu0
    %v3904 = vadd.f32 %v3875, %v3903
    %3905 = vmatmul.bf16.gmra.mxu0 %v3845
    %v3906 = vpop.f32.mrf.mxu0
    %v3907 = vadd.f32 %v3878, %v3906
    %v3908 = vpop.f32.mrf.mxu0
    %v3909 = vadd.f32 %v3880, %v3908
    %3910 = vdwg.mxu0
    %3911 = vmatpush.bf16.msra.mxu0 %v3830
    %3912 = vmatpush.bf16.msra.mxu0 %v3828
    %3913 = vmatpush.bf16.msra.mxu0 %v3826
    %3914 = vmatpush.bf16.msra.mxu0 %v3824
    %3915 = vmatpush.bf16.msra.mxu0 %v3822
    %3916 = vmatpush.bf16.msra.mxu0 %v3820
    %3917 = vmatpush.bf16.msra.mxu0 %v3818
    %3918 = vmatpush.bf16.msra.mxu0 %v3816
    %3919 = vmatmul.bf16.gmra.mxu0 %v3807
    %v3920 = vpop.f32.mrf.mxu0
    %v3921 = vadd.f32 0.0, %v3920
    %v3922 = vpop.f32.mrf.mxu0
    %v3923 = vadd.f32 0.0, %v3922
    %3924 = vmatmul.bf16.gmra.mxu0 %v3809
    %v3925 = vpop.f32.mrf.mxu0
    %v3926 = vadd.f32 0.0, %v3925
    %v3927 = vpop.f32.mrf.mxu0
    %v3928 = vadd.f32 0.0, %v3927
    %3929 = vmatmul.bf16.gmra.mxu0 %v3811
    %v3930 = vpop.f32.mrf.mxu0
    %v3931 = vadd.f32 0.0, %v3930
    %v3932 = vpop.f32.mrf.mxu0
    %v3933 = vadd.f32 0.0, %v3932
    %3934 = vmatmul.bf16.gmra.mxu0 %v3813
    %v3935 = vpop.f32.mrf.mxu0
    %v3936 = vadd.f32 0.0, %v3935
    %v3937 = vpop.f32.mrf.mxu0
    %v3938 = vadd.f32 0.0, %v3937
    %3939 = vdwg.mxu0
    %3940 = vmatpush.bf16.msra.mxu0 0
    %3941 = vmatpush.bf16.msra.mxu0 0
    %3942 = vmatpush.bf16.msra.mxu0 0
    %3943 = vmatpush.bf16.msra.mxu0 0
    %3944 = vmatpush.bf16.msra.mxu0 0
    %3945 = vmatpush.bf16.msra.mxu0 0
    %3946 = vmatpush.bf16.msra.mxu0 %v3851
    %3947 = vmatpush.bf16.msra.mxu0 %v3832
    %3948 = vmatmul.bf16.gmra.mxu0 %v3836
    %v3949 = vpop.f32.mrf.mxu0
    %v3950 = vadd.f32 %v3921, %v3949
    %v3951 = vpop.f32.mrf.mxu0
    %v3952 = vadd.f32 %v3923, %v3951
    %3953 = vmatmul.bf16.gmra.mxu0 %v3839
    %v3954 = vpop.f32.mrf.mxu0
    %v3955 = vadd.f32 %v3926, %v3954
    %v3956 = vpop.f32.mrf.mxu0
    %v3957 = vadd.f32 %v3928, %v3956
    %3958 = vmatmul.bf16.gmra.mxu0 %v3842
    %v3959 = vpop.f32.mrf.mxu0
    %v3960 = vadd.f32 %v3931, %v3959
    %v3961 = vpop.f32.mrf.mxu0
    %v3962 = vadd.f32 %v3933, %v3961
    %3963 = vmatmul.bf16.gmra.mxu0 %v3845
    %v3964 = vpop.f32.mrf.mxu0
    %v3965 = vadd.f32 %v3936, %v3964
    %v3966 = vpop.f32.mrf.mxu0
    %v3967 = vadd.f32 %v3938, %v3966
    %3968 = vdwg.mxu0
    %v3969 = vpack.c.bf16 %v3894, %v3892
    %v3970 = vpack.c.bf16 %v3952, %v3950
    %v3971 = vpack.c.bf16 %v3899, %v3897
    %v3972 = vpack.c.bf16 %v3957, %v3955
    %v3973 = vpack.c.bf16 %v3904, %v3902
    %v3974 = vpack.c.bf16 %v3962, %v3960
    %v3975 = vpack.c.bf16 %v3909, %v3907
    %v3976 = vpack.c.bf16 %v3967, %v3965
    %v3977 = vld [vmem:[#allocation2] sm:$0xff]
    %v3978 = vld [vmem:[#allocation2 + $0x8] sm:$0xff]
    %v3979 = vld [vmem:[#allocation2 + $0x10] sm:$0xff]
    %v3980 = vld [vmem:[#allocation2 + $0x18] sm:$0xff]
    %v3981 = vld [vmem:[#allocation2 + $0x20] sm:$0xff]
    %v3982 = vld [vmem:[#allocation2 + $0x28] sm:$0xff]
    %v3983 = vld [vmem:[#allocation2 + $0x30] sm:$0xff]
    %v3984 = vld [vmem:[#allocation2 + $0x38] sm:$0xff]
    %v3985 = vld [vmem:[#allocation2 + $0x40] sm:$0xff]
    %v3986 = vld [vmem:[#allocation2 + $0x48] sm:$0xff]
    %v3987 = vld [vmem:[#allocation2 + $0x50] sm:$0xff]
    %v3988 = vld [vmem:[#allocation2 + $0x58] sm:$0xff]
    %v3989 = vld [vmem:[#allocation2 + $0x60] sm:$0xff]
    %v3990 = vld [vmem:[#allocation2 + $0x68] sm:$0xff]
    %v3991 = vld [vmem:[#allocation2 + $0x70] sm:$0xff]
    %v3992 = vld [vmem:[#allocation2 + $0x78] sm:$0xff]
    %v3993 = vld [vmem:[#allocation2 + $0x80] sm:$0xff]
    %v3994 = vld [vmem:[#allocation2 + $0x88] sm:$0xff]
    %v3995 = vld [vmem:[#allocation2 + $0x90] sm:$0xff]
    %v3996 = vld [vmem:[#allocation2 + $0x98] sm:$0xff]
    %v3997 = vld [vmem:[#allocation2 + $0xa0] sm:$0xff]
    %v3998 = vld [vmem:[#allocation2 + $0xa8] sm:$0xff]
    %v3999 = vld [vmem:[#allocation2 + $0xb0] sm:$0xff]
    %v4000 = vld [vmem:[#allocation2 + $0xb8] sm:$0xff]
    %v4001 = vld [vmem:[#allocation2 + $0xc0] sm:$0xff]
    %v4002 = vld [vmem:[#allocation2 + $0xc8] sm:$0xff]
    %v4003 = vld [vmem:[#allocation2 + $0xd0] sm:$0xff]
    %v4004 = vld [vmem:[#allocation2 + $0xd8] sm:$0xff]
    %v4005 = vld [vmem:[#allocation2 + $0xe0] sm:$0xff]
    %v4006 = vld [vmem:[#allocation2 + $0xe8] sm:$0xff]
    %v4007 = vld [vmem:[#allocation2 + $0xf0] sm:$0xff]
    %v4008 = vld [vmem:[#allocation2 + $0xf8] sm:$0xff]
    %v4009 = vld [vmem:[#allocation2 + $0x100] sm:$0xff]
    %v4010 = vld [vmem:[#allocation2 + $0x108] sm:$0xff]
    %v4011 = vld [vmem:[#allocation2 + $0x110] sm:$0xff]
    %v4012 = vld [vmem:[#allocation2 + $0x118] sm:$0xff]
    %v4013 = vld [vmem:[#allocation2 + $0x120] sm:$0xff]
    %v4014 = vld [vmem:[#allocation2 + $0x128] sm:$0xff]
    %v4015 = vld [vmem:[#allocation2 + $0x130] sm:$0xf]
    %v4016 = vld [vmem:[#allocation2 + $0x138] sm:$0xf]
    %v4017 = vpack.c.bf16 %v3979, %v3977
    %v4018 = vpack.c.bf16 %v3980, %v3978
    %v4019 = vpack.c.bf16 %v3983, %v3981
    %v4020 = vpack.c.bf16 %v3984, %v3982
    %v4021 = vpack.c.bf16 %v3987, %v3985
    %v4022 = vpack.c.bf16 %v3988, %v3986
    %v4023 = vpack.c.bf16 %v3991, %v3989
    %v4024 = vpack.c.bf16 %v3992, %v3990
    %v4025 = vpack.c.bf16 %v3995, %v3993
    %v4026 = vpack.c.bf16 %v3996, %v3994
    %v4027 = vpack.c.bf16 %v3999, %v3997
    %v4028 = vpack.c.bf16 %v4000, %v3998
    %v4029 = vpack.c.bf16 %v4003, %v4001
    %v4030 = vpack.c.bf16 %v4004, %v4002
    %v4031 = vpack.c.bf16 %v4007, %v4005
    %v4032 = vpack.c.bf16 %v4008, %v4006
    %v4033 = vpack.c.bf16 %v4011, %v4009
    %v4034 = vpack.c.bf16 %v4012, %v4010
    %v4035 = vpack.c.bf16 %v4015, %v4013
    %v4036 = vpack.c.bf16 %v4016, %v4014
    %v4037 = vld [vmem:[%s9] sm:$0x3]
    %v4039 = vperm.slane %v4037, 0
    %v4040 = vperm.slane %v4037, 1
    %v4044 = vsel %vm919, %v3970, 0
    %v4047 = vsel %vm919, %v3972, 0
    %v4050 = vsel %vm919, %v3974, 0
    %v4053 = vsel %vm919, %v3976, 0
    %v4056 = vsel %vm1264, %v4035, 0
    %v4059 = vsel %vm1264, %v4036, 0
    %4061 = vmatpush.bf16.msra.mxu0 %v4031
    %4062 = vmatpush.bf16.msra.mxu0 %v4029
    %4063 = vmatpush.bf16.msra.mxu0 %v4027
    %4064 = vmatpush.bf16.msra.mxu0 %v4025
    %4065 = vmatpush.bf16.msra.mxu0 %v4023
    %4066 = vmatpush.bf16.msra.mxu0 %v4021
    %4067 = vmatpush.bf16.msra.mxu0 %v4019
    %4068 = vmatpush.bf16.msra.mxu0 %v4017
    %4069 = vmatmul.bf16.gmra.mxu0 %v3969
    %v4070 = vpop.f32.mrf.mxu0
    %v4071 = vadd.f32 %v4039, %v4070
    %v4072 = vpop.f32.mrf.mxu0
    %v4073 = vadd.f32 %v4039, %v4072
    %4074 = vmatmul.bf16.gmra.mxu0 %v3971
    %v4075 = vpop.f32.mrf.mxu0
    %v4076 = vadd.f32 %v4039, %v4075
    %v4077 = vpop.f32.mrf.mxu0
    %v4078 = vadd.f32 %v4039, %v4077
    %4079 = vmatmul.bf16.gmra.mxu0 %v3973
    %v4080 = vpop.f32.mrf.mxu0
    %v4081 = vadd.f32 %v4039, %v4080
    %v4082 = vpop.f32.mrf.mxu0
    %v4083 = vadd.f32 %v4039, %v4082
    %4084 = vmatmul.bf16.gmra.mxu0 %v3975
    %v4085 = vpop.f32.mrf.mxu0
    %v4086 = vadd.f32 %v4039, %v4085
    %v4087 = vpop.f32.mrf.mxu0
    %v4088 = vadd.f32 %v4039, %v4087
    %4089 = vdwg.mxu0
    %4090 = vmatpush.bf16.msra.mxu0 0
    %4091 = vmatpush.bf16.msra.mxu0 0
    %4092 = vmatpush.bf16.msra.mxu0 0
    %4093 = vmatpush.bf16.msra.mxu0 0
    %4094 = vmatpush.bf16.msra.mxu0 0
    %4095 = vmatpush.bf16.msra.mxu0 0
    %4096 = vmatpush.bf16.msra.mxu0 %v4056
    %4097 = vmatpush.bf16.msra.mxu0 %v4033
    %4098 = vmatmul.bf16.gmra.mxu0 %v4044
    %v4099 = vpop.f32.mrf.mxu0
    %v4100 = vadd.f32 %v4071, %v4099
    %v4101 = vpop.f32.mrf.mxu0
    %v4102 = vadd.f32 %v4073, %v4101
    %4103 = vmatmul.bf16.gmra.mxu0 %v4047
    %v4104 = vpop.f32.mrf.mxu0
    %v4105 = vadd.f32 %v4076, %v4104
    %v4106 = vpop.f32.mrf.mxu0
    %v4107 = vadd.f32 %v4078, %v4106
    %4108 = vmatmul.bf16.gmra.mxu0 %v4050
    %v4109 = vpop.f32.mrf.mxu0
    %v4110 = vadd.f32 %v4081, %v4109
    %v4111 = vpop.f32.mrf.mxu0
    %v4112 = vadd.f32 %v4083, %v4111
    %4113 = vmatmul.bf16.gmra.mxu0 %v4053
    %v4114 = vpop.f32.mrf.mxu0
    %v4115 = vadd.f32 %v4086, %v4114
    %v4116 = vpop.f32.mrf.mxu0
    %v4117 = vadd.f32 %v4088, %v4116
    %4118 = vdwg.mxu0
    %4119 = vmatpush.bf16.msra.mxu0 %v4032
    %4120 = vmatpush.bf16.msra.mxu0 %v4030
    %4121 = vmatpush.bf16.msra.mxu0 %v4028
    %4122 = vmatpush.bf16.msra.mxu0 %v4026
    %4123 = vmatpush.bf16.msra.mxu0 %v4024
    %4124 = vmatpush.bf16.msra.mxu0 %v4022
    %4125 = vmatpush.bf16.msra.mxu0 %v4020
    %4126 = vmatpush.bf16.msra.mxu0 %v4018
    %4127 = vmatmul.bf16.gmra.mxu0 %v3969
    %v4128 = vpop.f32.mrf.mxu0
    %v4129 = vadd.f32 %v4040, %v4128
    %v4130 = vpop.f32.mrf.mxu0
    %v4131 = vadd.f32 %v4040, %v4130
    %4132 = vmatmul.bf16.gmra.mxu0 %v3971
    %v4133 = vpop.f32.mrf.mxu0
    %v4134 = vadd.f32 %v4040, %v4133
    %v4135 = vpop.f32.mrf.mxu0
    %v4136 = vadd.f32 %v4040, %v4135
    %4137 = vmatmul.bf16.gmra.mxu0 %v3973
    %v4138 = vpop.f32.mrf.mxu0
    %v4139 = vadd.f32 %v4040, %v4138
    %v4140 = vpop.f32.mrf.mxu0
    %v4141 = vadd.f32 %v4040, %v4140
    %4142 = vmatmul.bf16.gmra.mxu0 %v3975
    %v4143 = vpop.f32.mrf.mxu0
    %v4144 = vadd.f32 %v4040, %v4143
    %v4145 = vpop.f32.mrf.mxu0
    %v4146 = vadd.f32 %v4040, %v4145
    %4147 = vdwg.mxu0
    %4148 = vmatpush.bf16.msra.mxu0 0
    %4149 = vmatpush.bf16.msra.mxu0 0
    %4150 = vmatpush.bf16.msra.mxu0 0
    %4151 = vmatpush.bf16.msra.mxu0 0
    %4152 = vmatpush.bf16.msra.mxu0 0
    %4153 = vmatpush.bf16.msra.mxu0 0
    %4154 = vmatpush.bf16.msra.mxu0 %v4059
    %4155 = vmatpush.bf16.msra.mxu0 %v4034
    %4156 = vmatmul.bf16.gmra.mxu0 %v4044
    %v4157 = vpop.f32.mrf.mxu0
    %v4158 = vadd.f32 %v4129, %v4157
    %v4159 = vpop.f32.mrf.mxu0
    %v4160 = vadd.f32 %v4131, %v4159
    %4161 = vmatmul.bf16.gmra.mxu0 %v4047
    %v4162 = vpop.f32.mrf.mxu0
    %v4163 = vadd.f32 %v4134, %v4162
    %v4164 = vpop.f32.mrf.mxu0
    %v4165 = vadd.f32 %v4136, %v4164
    %4166 = vmatmul.bf16.gmra.mxu0 %v4050
    %v4167 = vpop.f32.mrf.mxu0
    %v4168 = vadd.f32 %v4139, %v4167
    %v4169 = vpop.f32.mrf.mxu0
    %v4170 = vadd.f32 %v4141, %v4169
    %4171 = vmatmul.bf16.gmra.mxu0 %v4053
    %v4172 = vpop.f32.mrf.mxu0
    %v4173 = vadd.f32 %v4144, %v4172
    %v4174 = vpop.f32.mrf.mxu0
    %v4175 = vadd.f32 %v4146, %v4174
    %4176 = vdwg.mxu0
    %v4177 = vld [vmem:[%s8] sm:$0xff]
    %v4178 = vld [vmem:[%s8 + $0x8] sm:$0xff]
    %v4179 = vld [vmem:[%s8 + $0x10] sm:$0xff]
    %v4180 = vld [vmem:[%s8 + $0x18] sm:$0xff]
    %v4181 = vld [vmem:[%s8 + $0x20] sm:$0xff]
    %v4182 = vld [vmem:[%s8 + $0x28] sm:$0xff]
    %v4183 = vld [vmem:[%s8 + $0x30] sm:$0xff]
    %v4184 = vld [vmem:[%s8 + $0x38] sm:$0xff]
    %v4185 = vld [vmem:[%s8 + $0x40] sm:$0xff]
    %v4186 = vld [vmem:[%s8 + $0x48] sm:$0xff]
    %v4187 = vld [vmem:[%s8 + $0x50] sm:$0xff]
    %v4188 = vld [vmem:[%s8 + $0x58] sm:$0xff]
    %v4189 = vld [vmem:[%s8 + $0x60] sm:$0xff]
    %v4190 = vld [vmem:[%s8 + $0x68] sm:$0xff]
    %v4191 = vld [vmem:[%s8 + $0x70] sm:$0xff]
    %v4192 = vld [vmem:[%s8 + $0x78] sm:$0xff]
    %v4193 = vpack.c.bf16 %v4179, %v4177
    %v4194 = vpack.c.bf16 %v4180, %v4178
    %v4195 = vpack.c.bf16 %v4183, %v4181
    %v4196 = vpack.c.bf16 %v4184, %v4182
    %v4197 = vpack.c.bf16 %v4187, %v4185
    %v4198 = vpack.c.bf16 %v4188, %v4186
    %v4199 = vpack.c.bf16 %v4191, %v4189
    %v4200 = vpack.c.bf16 %v4192, %v4190
    %vm4201 = vcmask 523264
    %v4203 = vsel %vm4201, 0, 0
    %4205 = vmatpush.bf16.msra.mxu0 0
    %4206 = vmatpush.bf16.msra.mxu0 0
    %4207 = vmatpush.bf16.msra.mxu0 0
    %4208 = vmatpush.bf16.msra.mxu0 0
    %4209 = vmatpush.bf16.msra.mxu0 %v4199
    %4210 = vmatpush.bf16.msra.mxu0 %v4197
    %4211 = vmatpush.bf16.msra.mxu0 %v4195
    %4212 = vmatpush.bf16.msra.mxu0 %v4193
    %4213 = vmatmul.bf16.gmra.mxu0 %v4203
    %v4214 = vpop.f32.mrf.mxu0
    %v4215 = vadd.f32 0.0, %v4214
    %v4216 = vpop.f32.mrf.mxu0
    %4217 = vdwg.mxu0
    %4218 = vmatpush.bf16.msra.mxu0 0
    %4219 = vmatpush.bf16.msra.mxu0 0
    %4220 = vmatpush.bf16.msra.mxu0 0
    %4221 = vmatpush.bf16.msra.mxu0 0
    %4222 = vmatpush.bf16.msra.mxu0 %v4200
    %4223 = vmatpush.bf16.msra.mxu0 %v4198
    %4224 = vmatpush.bf16.msra.mxu0 %v4196
    %4225 = vmatpush.bf16.msra.mxu0 %v4194
    %4226 = vmatmul.bf16.gmra.mxu0 %v4203
    %v4227 = vpop.f32.mrf.mxu0
    %v4228 = vadd.f32 0.0, %v4227
    %v4229 = vpop.f32.mrf.mxu0
    %4230 = vdwg.mxu0
    %v4231 = vadd.f32 %v4100, %v4215
    %v4232 = vadd.f32 %v4158, %v4228
    %v4233 = vxor.u32 %v4231, 2147483648
    %v4234 = vmul.f32 %v4233, 1.442695
    %v4235 = vpow.pop %v4234
    %v4236 = vadd.f32 %v4235, 1.0
    %v4237 = vrcp.pop %v4236
    %v4238 = vmul.f32 %v4236, %v4237
    %v4239 = vsub.f32 1.0, %v4238
    %v4240 = vmul.f32 %v4237, %v4239
    %v4241 = vadd.f32 %v4237, %v4240
    %vm4242 = vweird.f32 %v4236
    %vm4243 = vweird.f32 %v4237
    %vm4244 = vmor %vm4242, %vm4243
    %v4245 = vsel %vm4244, %v4237, %v4241
    %v4246 = vand.u32 2147483647, %v4236
    %vm4247 = vcmp.eq.f32.partialorder %v4246, 8.507059e+37
    %v4248 = vand.u32 %v4236, 2147483648
    %v4249 = vor.u32 1.1754944e-38, %v4248
    %v4250 = vsel %vm4247, %v4249, %v4245
    %v4251 = vmul.f32 1.0, %v4250
    %v4252 = vtanh.pop %v4232
    %v4253 = vxor.u32 %v4232, 2147483648
    %v4254 = vmul.f32 %v4253, 1.442695
    %v4255 = vpow.pop %v4254
    %v4256 = vadd.f32 %v4255, 1.0
    %v4257 = vrcp.pop %v4256
    %v4258 = vmul.f32 %v4256, %v4257
    %v4259 = vsub.f32 1.0, %v4258
    %v4260 = vmul.f32 %v4257, %v4259
    %v4261 = vadd.f32 %v4257, %v4260
    %vm4262 = vweird.f32 %v4256
    %vm4263 = vweird.f32 %v4257
    %vm4264 = vmor %vm4262, %vm4263
    %v4265 = vsel %vm4264, %v4257, %v4261
    %v4266 = vand.u32 2147483647, %v4256
    %vm4267 = vcmp.eq.f32.partialorder %v4266, 8.507059e+37
    %v4268 = vand.u32 %v4256, 2147483648
    %v4269 = vor.u32 1.1754944e-38, %v4268
    %v4270 = vsel %vm4267, %v4269, %v4265
    %v4271 = vmul.f32 1.0, %v4270
    %v4272 = vmul.f32 %v4251, 0.0
    %v4273 = vmul.f32 %v4251, %v4252
    %4275 = vrot.lane.b32.xlu0 %v4273, 64
    %v4276 = vpop.permute.xlu0 %4275
    %v4278 = vadd.f32 %v4272, %v4276
    %v4279 = vtanh.pop %v4278
    %v4280 = vmul.f32 %v4271, %v4279
    %v4281 = vpack.c.bf16 %v4280, %v4280
    %4283 = vrot.lane.b32.xlu0 %v4281, 64
    %v4284 = vpop.permute.xlu0 %4283
    %v4286 = vsel %vm4201, %v4284, 0
    %4288 = vmatpush.bf16.msra.mxu0 0
    %4289 = vmatpush.bf16.msra.mxu0 0
    %4290 = vmatpush.bf16.msra.mxu0 0
    %4291 = vmatpush.bf16.msra.mxu0 0
    %4292 = vmatpush.bf16.msra.mxu0 %v4199
    %4293 = vmatpush.bf16.msra.mxu0 %v4197
    %4294 = vmatpush.bf16.msra.mxu0 %v4195
    %4295 = vmatpush.bf16.msra.mxu0 %v4193
    %4296 = vmatmul.bf16.gmra.mxu0 %v4286
    %v4297 = vpop.f32.mrf.mxu0
    %v4298 = vadd.f32 0.0, %v4297
    %v4299 = vpop.f32.mrf.mxu0
    %4300 = vdwg.mxu0
    %4301 = vmatpush.bf16.msra.mxu0 0
    %4302 = vmatpush.bf16.msra.mxu0 0
    %4303 = vmatpush.bf16.msra.mxu0 0
    %4304 = vmatpush.bf16.msra.mxu0 0
    %4305 = vmatpush.bf16.msra.mxu0 %v4200
    %4306 = vmatpush.bf16.msra.mxu0 %v4198
    %4307 = vmatpush.bf16.msra.mxu0 %v4196
    %4308 = vmatpush.bf16.msra.mxu0 %v4194
    %4309 = vmatmul.bf16.gmra.mxu0 %v4286
    %v4310 = vpop.f32.mrf.mxu0
    %v4311 = vadd.f32 0.0, %v4310
    %v4312 = vpop.f32.mrf.mxu0
    %4313 = vdwg.mxu0
    %v4314 = vadd.f32 %v4102, %v4298
    %v4315 = vadd.f32 %v4160, %v4311
    %v4316 = vxor.u32 %v4314, 2147483648
    %v4317 = vmul.f32 %v4316, 1.442695
    %v4318 = vpow.pop %v4317
    %v4319 = vadd.f32 %v4318, 1.0
    %v4320 = vrcp.pop %v4319
    %v4321 = vmul.f32 %v4319, %v4320
    %v4322 = vsub.f32 1.0, %v4321
    %v4323 = vmul.f32 %v4320, %v4322
    %v4324 = vadd.f32 %v4320, %v4323
    %vm4325 = vweird.f32 %v4319
    %vm4326 = vweird.f32 %v4320
    %vm4327 = vmor %vm4325, %vm4326
    %v4328 = vsel %vm4327, %v4320, %v4324
    %v4329 = vand.u32 2147483647, %v4319
    %vm4330 = vcmp.eq.f32.partialorder %v4329, 8.507059e+37
    %v4331 = vand.u32 %v4319, 2147483648
    %v4332 = vor.u32 1.1754944e-38, %v4331
    %v4333 = vsel %vm4330, %v4332, %v4328
    %v4334 = vmul.f32 1.0, %v4333
    %v4335 = vtanh.pop %v4315
    %v4336 = vxor.u32 %v4315, 2147483648
    %v4337 = vmul.f32 %v4336, 1.442695
    %v4338 = vpow.pop %v4337
    %v4339 = vadd.f32 %v4338, 1.0
    %v4340 = vrcp.pop %v4339
    %v4341 = vmul.f32 %v4339, %v4340
    %v4342 = vsub.f32 1.0, %v4341
    %v4343 = vmul.f32 %v4340, %v4342
    %v4344 = vadd.f32 %v4340, %v4343
    %vm4345 = vweird.f32 %v4339
    %vm4346 = vweird.f32 %v4340
    %vm4347 = vmor %vm4345, %vm4346
    %v4348 = vsel %vm4347, %v4340, %v4344
    %v4349 = vand.u32 2147483647, %v4339
    %vm4350 = vcmp.eq.f32.partialorder %v4349, 8.507059e+37
    %v4351 = vand.u32 %v4339, 2147483648
    %v4352 = vor.u32 1.1754944e-38, %v4351
    %v4353 = vsel %vm4350, %v4352, %v4348
    %v4354 = vmul.f32 1.0, %v4353
    %v4355 = vmul.f32 %v4334, %v4278
    %v4356 = vmul.f32 %v4334, %v4335
    %4358 = vrot.lane.b32.xlu0 %v4356, 64
    %v4359 = vpop.permute.xlu0 %4358
    %v4361 = vadd.f32 %v4355, %v4359
    %v4362 = vtanh.pop %v4361
    %v4363 = vmul.f32 %v4354, %v4362
    %v4364 = vpack.c.bf16 %v4363, %v4363
    %4366 = vrot.lane.b32.xlu0 %v4364, 64
    %v4367 = vpop.permute.xlu0 %4366
    %v4369 = vsel %vm4201, %v4367, 0
    %4371 = vmatpush.bf16.msra.mxu0 0
    %4372 = vmatpush.bf16.msra.mxu0 0
    %4373 = vmatpush.bf16.msra.mxu0 0
    %4374 = vmatpush.bf16.msra.mxu0 0
    %4375 = vmatpush.bf16.msra.mxu0 %v4199
    %4376 = vmatpush.bf16.msra.mxu0 %v4197
    %4377 = vmatpush.bf16.msra.mxu0 %v4195
    %4378 = vmatpush.bf16.msra.mxu0 %v4193
    %4379 = vmatmul.bf16.gmra.mxu0 %v4369
    %v4380 = vpop.f32.mrf.mxu0
    %v4381 = vadd.f32 0.0, %v4380
    %v4382 = vpop.f32.mrf.mxu0
    %4383 = vdwg.mxu0
    %4384 = vmatpush.bf16.msra.mxu0 0
    %4385 = vmatpush.bf16.msra.mxu0 0
    %4386 = vmatpush.bf16.msra.mxu0 0
    %4387 = vmatpush.bf16.msra.mxu0 0
    %4388 = vmatpush.bf16.msra.mxu0 %v4200
    %4389 = vmatpush.bf16.msra.mxu0 %v4198
    %4390 = vmatpush.bf16.msra.mxu0 %v4196
    %4391 = vmatpush.bf16.msra.mxu0 %v4194
    %4392 = vmatmul.bf16.gmra.mxu0 %v4369
    %v4393 = vpop.f32.mrf.mxu0
    %v4394 = vadd.f32 0.0, %v4393
    %v4395 = vpop.f32.mrf.mxu0
    %4396 = vdwg.mxu0
    %v4397 = vadd.f32 %v4105, %v4381
    %v4398 = vadd.f32 %v4163, %v4394
    %v4399 = vxor.u32 %v4397, 2147483648
    %v4400 = vmul.f32 %v4399, 1.442695
    %v4401 = vpow.pop %v4400
    %v4402 = vadd.f32 %v4401, 1.0
    %v4403 = vrcp.pop %v4402
    %v4404 = vmul.f32 %v4402, %v4403
    %v4405 = vsub.f32 1.0, %v4404
    %v4406 = vmul.f32 %v4403, %v4405
    %v4407 = vadd.f32 %v4403, %v4406
    %vm4408 = vweird.f32 %v4402
    %vm4409 = vweird.f32 %v4403
    %vm4410 = vmor %vm4408, %vm4409
    %v4411 = vsel %vm4410, %v4403, %v4407
    %v4412 = vand.u32 2147483647, %v4402
    %vm4413 = vcmp.eq.f32.partialorder %v4412, 8.507059e+37
    %v4414 = vand.u32 %v4402, 2147483648
    %v4415 = vor.u32 1.1754944e-38, %v4414
    %v4416 = vsel %vm4413, %v4415, %v4411
    %v4417 = vmul.f32 1.0, %v4416
    %v4418 = vtanh.pop %v4398
    %v4419 = vxor.u32 %v4398, 2147483648
    %v4420 = vmul.f32 %v4419, 1.442695
    %v4421 = vpow.pop %v4420
    %v4422 = vadd.f32 %v4421, 1.0
    %v4423 = vrcp.pop %v4422
    %v4424 = vmul.f32 %v4422, %v4423
    %v4425 = vsub.f32 1.0, %v4424
    %v4426 = vmul.f32 %v4423, %v4425
    %v4427 = vadd.f32 %v4423, %v4426
    %vm4428 = vweird.f32 %v4422
    %vm4429 = vweird.f32 %v4423
    %vm4430 = vmor %vm4428, %vm4429
    %v4431 = vsel %vm4430, %v4423, %v4427
    %v4432 = vand.u32 2147483647, %v4422
    %vm4433 = vcmp.eq.f32.partialorder %v4432, 8.507059e+37
    %v4434 = vand.u32 %v4422, 2147483648
    %v4435 = vor.u32 1.1754944e-38, %v4434
    %v4436 = vsel %vm4433, %v4435, %v4431
    %v4437 = vmul.f32 1.0, %v4436
    %v4438 = vmul.f32 %v4417, %v4361
    %v4439 = vmul.f32 %v4417, %v4418
    %4441 = vrot.lane.b32.xlu0 %v4439, 64
    %v4442 = vpop.permute.xlu0 %4441
    %v4444 = vadd.f32 %v4438, %v4442
    %v4445 = vtanh.pop %v4444
    %v4446 = vmul.f32 %v4437, %v4445
    %v4447 = vpack.c.bf16 %v4446, %v4446
    %4449 = vrot.lane.b32.xlu0 %v4447, 64
    %v4450 = vpop.permute.xlu0 %4449
    %v4452 = vsel %vm4201, %v4450, 0
    %4454 = vmatpush.bf16.msra.mxu0 0
    %4455 = vmatpush.bf16.msra.mxu0 0
    %4456 = vmatpush.bf16.msra.mxu0 0
    %4457 = vmatpush.bf16.msra.mxu0 0
    %4458 = vmatpush.bf16.msra.mxu0 %v4199
    %4459 = vmatpush.bf16.msra.mxu0 %v4197
    %4460 = vmatpush.bf16.msra.mxu0 %v4195
    %4461 = vmatpush.bf16.msra.mxu0 %v4193
    %4462 = vmatmul.bf16.gmra.mxu0 %v4452
    %v4463 = vpop.f32.mrf.mxu0
    %v4464 = vadd.f32 0.0, %v4463
    %v4465 = vpop.f32.mrf.mxu0
    %4466 = vdwg.mxu0
    %4467 = vmatpush.bf16.msra.mxu0 0
    %4468 = vmatpush.bf16.msra.mxu0 0
    %4469 = vmatpush.bf16.msra.mxu0 0
    %4470 = vmatpush.bf16.msra.mxu0 0
    %4471 = vmatpush.bf16.msra.mxu0 %v4200
    %4472 = vmatpush.bf16.msra.mxu0 %v4198
    %4473 = vmatpush.bf16.msra.mxu0 %v4196
    %4474 = vmatpush.bf16.msra.mxu0 %v4194
    %4475 = vmatmul.bf16.gmra.mxu0 %v4452
    %v4476 = vpop.f32.mrf.mxu0
    %v4477 = vadd.f32 0.0, %v4476
    %v4478 = vpop.f32.mrf.mxu0
    %4479 = vdwg.mxu0
    %v4480 = vadd.f32 %v4107, %v4464
    %v4481 = vadd.f32 %v4165, %v4477
    %v4482 = vxor.u32 %v4480, 2147483648
    %v4483 = vmul.f32 %v4482, 1.442695
    %v4484 = vpow.pop %v4483
    %v4485 = vadd.f32 %v4484, 1.0
    %v4486 = vrcp.pop %v4485
    %v4487 = vmul.f32 %v4485, %v4486
    %v4488 = vsub.f32 1.0, %v4487
    %v4489 = vmul.f32 %v4486, %v4488
    %v4490 = vadd.f32 %v4486, %v4489
    %vm4491 = vweird.f32 %v4485
    %vm4492 = vweird.f32 %v4486
    %vm4493 = vmor %vm4491, %vm4492
    %v4494 = vsel %vm4493, %v4486, %v4490
    %v4495 = vand.u32 2147483647, %v4485
    %vm4496 = vcmp.eq.f32.partialorder %v4495, 8.507059e+37
    %v4497 = vand.u32 %v4485, 2147483648
    %v4498 = vor.u32 1.1754944e-38, %v4497
    %v4499 = vsel %vm4496, %v4498, %v4494
    %v4500 = vmul.f32 1.0, %v4499
    %v4501 = vtanh.pop %v4481
    %v4502 = vxor.u32 %v4481, 2147483648
    %v4503 = vmul.f32 %v4502, 1.442695
    %v4504 = vpow.pop %v4503
    %v4505 = vadd.f32 %v4504, 1.0
    %v4506 = vrcp.pop %v4505
    %v4507 = vmul.f32 %v4505, %v4506
    %v4508 = vsub.f32 1.0, %v4507
    %v4509 = vmul.f32 %v4506, %v4508
    %v4510 = vadd.f32 %v4506, %v4509
    %vm4511 = vweird.f32 %v4505
    %vm4512 = vweird.f32 %v4506
    %vm4513 = vmor %vm4511, %vm4512
    %v4514 = vsel %vm4513, %v4506, %v4510
    %v4515 = vand.u32 2147483647, %v4505
    %vm4516 = vcmp.eq.f32.partialorder %v4515, 8.507059e+37
    %v4517 = vand.u32 %v4505, 2147483648
    %v4518 = vor.u32 1.1754944e-38, %v4517
    %v4519 = vsel %vm4516, %v4518, %v4514
    %v4520 = vmul.f32 1.0, %v4519
    %v4521 = vmul.f32 %v4500, %v4444
    %v4522 = vmul.f32 %v4500, %v4501
    %4524 = vrot.lane.b32.xlu0 %v4522, 64
    %v4525 = vpop.permute.xlu0 %4524
    %v4527 = vadd.f32 %v4521, %v4525
    %v4528 = vtanh.pop %v4527
    %v4529 = vmul.f32 %v4520, %v4528
    %v4530 = vpack.c.bf16 %v4529, %v4529
    %4532 = vrot.lane.b32.xlu0 %v4530, 64
    %v4533 = vpop.permute.xlu0 %4532
    %v4535 = vsel %vm4201, %v4533, 0
    %4537 = vmatpush.bf16.msra.mxu0 0
    %4538 = vmatpush.bf16.msra.mxu0 0
    %4539 = vmatpush.bf16.msra.mxu0 0
    %4540 = vmatpush.bf16.msra.mxu0 0
    %4541 = vmatpush.bf16.msra.mxu0 %v4199
    %4542 = vmatpush.bf16.msra.mxu0 %v4197
    %4543 = vmatpush.bf16.msra.mxu0 %v4195
    %4544 = vmatpush.bf16.msra.mxu0 %v4193
    %4545 = vmatmul.bf16.gmra.mxu0 %v4535
    %v4546 = vpop.f32.mrf.mxu0
    %v4547 = vadd.f32 0.0, %v4546
    %v4548 = vpop.f32.mrf.mxu0
    %4549 = vdwg.mxu0
    %4550 = vmatpush.bf16.msra.mxu0 0
    %4551 = vmatpush.bf16.msra.mxu0 0
    %4552 = vmatpush.bf16.msra.mxu0 0
    %4553 = vmatpush.bf16.msra.mxu0 0
    %4554 = vmatpush.bf16.msra.mxu0 %v4200
    %4555 = vmatpush.bf16.msra.mxu0 %v4198
    %4556 = vmatpush.bf16.msra.mxu0 %v4196
    %4557 = vmatpush.bf16.msra.mxu0 %v4194
    %4558 = vmatmul.bf16.gmra.mxu0 %v4535
    %v4559 = vpop.f32.mrf.mxu0
    %v4560 = vadd.f32 0.0, %v4559
    %v4561 = vpop.f32.mrf.mxu0
    %4562 = vdwg.mxu0
    %v4563 = vadd.f32 %v4110, %v4547
    %v4564 = vadd.f32 %v4168, %v4560
    %v4565 = vxor.u32 %v4563, 2147483648
    %v4566 = vmul.f32 %v4565, 1.442695
    %v4567 = vpow.pop %v4566
    %v4568 = vadd.f32 %v4567, 1.0
    %v4569 = vrcp.pop %v4568
    %v4570 = vmul.f32 %v4568, %v4569
    %v4571 = vsub.f32 1.0, %v4570
    %v4572 = vmul.f32 %v4569, %v4571
    %v4573 = vadd.f32 %v4569, %v4572
    %vm4574 = vweird.f32 %v4568
    %vm4575 = vweird.f32 %v4569
    %vm4576 = vmor %vm4574, %vm4575
    %v4577 = vsel %vm4576, %v4569, %v4573
    %v4578 = vand.u32 2147483647, %v4568
    %vm4579 = vcmp.eq.f32.partialorder %v4578, 8.507059e+37
    %v4580 = vand.u32 %v4568, 2147483648
    %v4581 = vor.u32 1.1754944e-38, %v4580
    %v4582 = vsel %vm4579, %v4581, %v4577
    %v4583 = vmul.f32 1.0, %v4582
    %v4584 = vtanh.pop %v4564
    %v4585 = vxor.u32 %v4564, 2147483648
    %v4586 = vmul.f32 %v4585, 1.442695
    %v4587 = vpow.pop %v4586
    %v4588 = vadd.f32 %v4587, 1.0
    %v4589 = vrcp.pop %v4588
    %v4590 = vmul.f32 %v4588, %v4589
    %v4591 = vsub.f32 1.0, %v4590
    %v4592 = vmul.f32 %v4589, %v4591
    %v4593 = vadd.f32 %v4589, %v4592
    %vm4594 = vweird.f32 %v4588
    %vm4595 = vweird.f32 %v4589
    %vm4596 = vmor %vm4594, %vm4595
    %v4597 = vsel %vm4596, %v4589, %v4593
    %v4598 = vand.u32 2147483647, %v4588
    %vm4599 = vcmp.eq.f32.partialorder %v4598, 8.507059e+37
    %v4600 = vand.u32 %v4588, 2147483648
    %v4601 = vor.u32 1.1754944e-38, %v4600
    %v4602 = vsel %vm4599, %v4601, %v4597
    %v4603 = vmul.f32 1.0, %v4602
    %v4604 = vmul.f32 %v4583, %v4527
    %v4605 = vmul.f32 %v4583, %v4584
    %4607 = vrot.lane.b32.xlu0 %v4605, 64
    %v4608 = vpop.permute.xlu0 %4607
    %v4610 = vadd.f32 %v4604, %v4608
    %v4611 = vtanh.pop %v4610
    %v4612 = vmul.f32 %v4603, %v4611
    %v4613 = vpack.c.bf16 %v4612, %v4612
    %4615 = vrot.lane.b32.xlu0 %v4613, 64
    %v4616 = vpop.permute.xlu0 %4615
    %v4618 = vsel %vm4201, %v4616, 0
    %4620 = vmatpush.bf16.msra.mxu0 0
    %4621 = vmatpush.bf16.msra.mxu0 0
    %4622 = vmatpush.bf16.msra.mxu0 0
    %4623 = vmatpush.bf16.msra.mxu0 0
    %4624 = vmatpush.bf16.msra.mxu0 %v4199
    %4625 = vmatpush.bf16.msra.mxu0 %v4197
    %4626 = vmatpush.bf16.msra.mxu0 %v4195
    %4627 = vmatpush.bf16.msra.mxu0 %v4193
    %4628 = vmatmul.bf16.gmra.mxu0 %v4618
    %v4629 = vpop.f32.mrf.mxu0
    %v4630 = vadd.f32 0.0, %v4629
    %v4631 = vpop.f32.mrf.mxu0
    %4632 = vdwg.mxu0
    %4633 = vmatpush.bf16.msra.mxu0 0
    %4634 = vmatpush.bf16.msra.mxu0 0
    %4635 = vmatpush.bf16.msra.mxu0 0
    %4636 = vmatpush.bf16.msra.mxu0 0
    %4637 = vmatpush.bf16.msra.mxu0 %v4200
    %4638 = vmatpush.bf16.msra.mxu0 %v4198
    %4639 = vmatpush.bf16.msra.mxu0 %v4196
    %4640 = vmatpush.bf16.msra.mxu0 %v4194
    %4641 = vmatmul.bf16.gmra.mxu0 %v4618
    %v4642 = vpop.f32.mrf.mxu0
    %v4643 = vadd.f32 0.0, %v4642
    %v4644 = vpop.f32.mrf.mxu0
    %4645 = vdwg.mxu0
    %v4646 = vadd.f32 %v4112, %v4630
    %v4647 = vadd.f32 %v4170, %v4643
    %v4648 = vxor.u32 %v4646, 2147483648
    %v4649 = vmul.f32 %v4648, 1.442695
    %v4650 = vpow.pop %v4649
    %v4651 = vadd.f32 %v4650, 1.0
    %v4652 = vrcp.pop %v4651
    %v4653 = vmul.f32 %v4651, %v4652
    %v4654 = vsub.f32 1.0, %v4653
    %v4655 = vmul.f32 %v4652, %v4654
    %v4656 = vadd.f32 %v4652, %v4655
    %vm4657 = vweird.f32 %v4651
    %vm4658 = vweird.f32 %v4652
    %vm4659 = vmor %vm4657, %vm4658
    %v4660 = vsel %vm4659, %v4652, %v4656
    %v4661 = vand.u32 2147483647, %v4651
    %vm4662 = vcmp.eq.f32.partialorder %v4661, 8.507059e+37
    %v4663 = vand.u32 %v4651, 2147483648
    %v4664 = vor.u32 1.1754944e-38, %v4663
    %v4665 = vsel %vm4662, %v4664, %v4660
    %v4666 = vmul.f32 1.0, %v4665
    %v4667 = vtanh.pop %v4647
    %v4668 = vxor.u32 %v4647, 2147483648
    %v4669 = vmul.f32 %v4668, 1.442695
    %v4670 = vpow.pop %v4669
    %v4671 = vadd.f32 %v4670, 1.0
    %v4672 = vrcp.pop %v4671
    %v4673 = vmul.f32 %v4671, %v4672
    %v4674 = vsub.f32 1.0, %v4673
    %v4675 = vmul.f32 %v4672, %v4674
    %v4676 = vadd.f32 %v4672, %v4675
    %vm4677 = vweird.f32 %v4671
    %vm4678 = vweird.f32 %v4672
    %vm4679 = vmor %vm4677, %vm4678
    %v4680 = vsel %vm4679, %v4672, %v4676
    %v4681 = vand.u32 2147483647, %v4671
    %vm4682 = vcmp.eq.f32.partialorder %v4681, 8.507059e+37
    %v4683 = vand.u32 %v4671, 2147483648
    %v4684 = vor.u32 1.1754944e-38, %v4683
    %v4685 = vsel %vm4682, %v4684, %v4680
    %v4686 = vmul.f32 1.0, %v4685
    %v4687 = vmul.f32 %v4666, %v4610
    %v4688 = vmul.f32 %v4666, %v4667
    %4690 = vrot.lane.b32.xlu0 %v4688, 64
    %v4691 = vpop.permute.xlu0 %4690
    %v4693 = vadd.f32 %v4687, %v4691
    %v4694 = vtanh.pop %v4693
    %v4695 = vmul.f32 %v4686, %v4694
    %v4696 = vpack.c.bf16 %v4695, %v4695
    %4698 = vrot.lane.b32.xlu0 %v4696, 64
    %v4699 = vpop.permute.xlu0 %4698
    %v4701 = vsel %vm4201, %v4699, 0
    %4703 = vmatpush.bf16.msra.mxu0 0
    %4704 = vmatpush.bf16.msra.mxu0 0
    %4705 = vmatpush.bf16.msra.mxu0 0
    %4706 = vmatpush.bf16.msra.mxu0 0
    %4707 = vmatpush.bf16.msra.mxu0 %v4199
    %4708 = vmatpush.bf16.msra.mxu0 %v4197
    %4709 = vmatpush.bf16.msra.mxu0 %v4195
    %4710 = vmatpush.bf16.msra.mxu0 %v4193
    %4711 = vmatmul.bf16.gmra.mxu0 %v4701
    %v4712 = vpop.f32.mrf.mxu0
    %v4713 = vadd.f32 0.0, %v4712
    %v4714 = vpop.f32.mrf.mxu0
    %4715 = vdwg.mxu0
    %4716 = vmatpush.bf16.msra.mxu0 0
    %4717 = vmatpush.bf16.msra.mxu0 0
    %4718 = vmatpush.bf16.msra.mxu0 0
    %4719 = vmatpush.bf16.msra.mxu0 0
    %4720 = vmatpush.bf16.msra.mxu0 %v4200
    %4721 = vmatpush.bf16.msra.mxu0 %v4198
    %4722 = vmatpush.bf16.msra.mxu0 %v4196
    %4723 = vmatpush.bf16.msra.mxu0 %v4194
    %4724 = vmatmul.bf16.gmra.mxu0 %v4701
    %v4725 = vpop.f32.mrf.mxu0
    %v4726 = vadd.f32 0.0, %v4725
    %v4727 = vpop.f32.mrf.mxu0
    %4728 = vdwg.mxu0
    %v4729 = vadd.f32 %v4115, %v4713
    %v4730 = vadd.f32 %v4173, %v4726
    %v4731 = vxor.u32 %v4729, 2147483648
    %v4732 = vmul.f32 %v4731, 1.442695
    %v4733 = vpow.pop %v4732
    %v4734 = vadd.f32 %v4733, 1.0
    %v4735 = vrcp.pop %v4734
    %v4736 = vmul.f32 %v4734, %v4735
    %v4737 = vsub.f32 1.0, %v4736
    %v4738 = vmul.f32 %v4735, %v4737
    %v4739 = vadd.f32 %v4735, %v4738
    %vm4740 = vweird.f32 %v4734
    %vm4741 = vweird.f32 %v4735
    %vm4742 = vmor %vm4740, %vm4741
    %v4743 = vsel %vm4742, %v4735, %v4739
    %v4744 = vand.u32 2147483647, %v4734
    %vm4745 = vcmp.eq.f32.partialorder %v4744, 8.507059e+37
    %v4746 = vand.u32 %v4734, 2147483648
    %v4747 = vor.u32 1.1754944e-38, %v4746
    %v4748 = vsel %vm4745, %v4747, %v4743
    %v4749 = vmul.f32 1.0, %v4748
    %v4750 = vtanh.pop %v4730
    %v4751 = vxor.u32 %v4730, 2147483648
    %v4752 = vmul.f32 %v4751, 1.442695
    %v4753 = vpow.pop %v4752
    %v4754 = vadd.f32 %v4753, 1.0
    %v4755 = vrcp.pop %v4754
    %v4756 = vmul.f32 %v4754, %v4755
    %v4757 = vsub.f32 1.0, %v4756
    %v4758 = vmul.f32 %v4755, %v4757
    %v4759 = vadd.f32 %v4755, %v4758
    %vm4760 = vweird.f32 %v4754
    %vm4761 = vweird.f32 %v4755
    %vm4762 = vmor %vm4760, %vm4761
    %v4763 = vsel %vm4762, %v4755, %v4759
    %v4764 = vand.u32 2147483647, %v4754
    %vm4765 = vcmp.eq.f32.partialorder %v4764, 8.507059e+37
    %v4766 = vand.u32 %v4754, 2147483648
    %v4767 = vor.u32 1.1754944e-38, %v4766
    %v4768 = vsel %vm4765, %v4767, %v4763
    %v4769 = vmul.f32 1.0, %v4768
    %v4770 = vmul.f32 %v4749, %v4693
    %v4771 = vmul.f32 %v4749, %v4750
    %4773 = vrot.lane.b32.xlu0 %v4771, 64
    %v4774 = vpop.permute.xlu0 %4773
    %v4776 = vadd.f32 %v4770, %v4774
    %v4777 = vtanh.pop %v4776
    %v4778 = vmul.f32 %v4769, %v4777
    %v4779 = vpack.c.bf16 %v4778, %v4778
    %4781 = vrot.lane.b32.xlu0 %v4779, 64
    %v4782 = vpop.permute.xlu0 %4781
    %v4784 = vsel %vm4201, %v4782, 0
    %4786 = vmatpush.bf16.msra.mxu0 0
    %4787 = vmatpush.bf16.msra.mxu0 0
    %4788 = vmatpush.bf16.msra.mxu0 0
    %4789 = vmatpush.bf16.msra.mxu0 0
    %4790 = vmatpush.bf16.msra.mxu0 %v4199
    %4791 = vmatpush.bf16.msra.mxu0 %v4197
    %4792 = vmatpush.bf16.msra.mxu0 %v4195
    %4793 = vmatpush.bf16.msra.mxu0 %v4193
    %4794 = vmatmul.bf16.gmra.mxu0 %v4784
    %v4795 = vpop.f32.mrf.mxu0
    %v4796 = vadd.f32 0.0, %v4795
    %v4797 = vpop.f32.mrf.mxu0
    %4798 = vdwg.mxu0
    %4799 = vmatpush.bf16.msra.mxu0 0
    %4800 = vmatpush.bf16.msra.mxu0 0
    %4801 = vmatpush.bf16.msra.mxu0 0
    %4802 = vmatpush.bf16.msra.mxu0 0
    %4803 = vmatpush.bf16.msra.mxu0 %v4200
    %4804 = vmatpush.bf16.msra.mxu0 %v4198
    %4805 = vmatpush.bf16.msra.mxu0 %v4196
    %4806 = vmatpush.bf16.msra.mxu0 %v4194
    %4807 = vmatmul.bf16.gmra.mxu0 %v4784
    %v4808 = vpop.f32.mrf.mxu0
    %v4809 = vadd.f32 0.0, %v4808
    %v4810 = vpop.f32.mrf.mxu0
    %4811 = vdwg.mxu0
    %v4812 = vadd.f32 %v4117, %v4796
    %v4813 = vadd.f32 %v4175, %v4809
    %v4814 = vxor.u32 %v4812, 2147483648
    %v4815 = vmul.f32 %v4814, 1.442695
    %v4816 = vpow.pop %v4815
    %v4817 = vadd.f32 %v4816, 1.0
    %v4818 = vrcp.pop %v4817
    %v4819 = vmul.f32 %v4817, %v4818
    %v4820 = vsub.f32 1.0, %v4819
    %v4821 = vmul.f32 %v4818, %v4820
    %v4822 = vadd.f32 %v4818, %v4821
    %vm4823 = vweird.f32 %v4817
    %vm4824 = vweird.f32 %v4818
    %vm4825 = vmor %vm4823, %vm4824
    %v4826 = vsel %vm4825, %v4818, %v4822
    %v4827 = vand.u32 2147483647, %v4817
    %vm4828 = vcmp.eq.f32.partialorder %v4827, 8.507059e+37
    %v4829 = vand.u32 %v4817, 2147483648
    %v4830 = vor.u32 1.1754944e-38, %v4829
    %v4831 = vsel %vm4828, %v4830, %v4826
    %v4832 = vmul.f32 1.0, %v4831
    %v4833 = vtanh.pop %v4813
    %v4834 = vxor.u32 %v4813, 2147483648
    %v4835 = vmul.f32 %v4834, 1.442695
    %v4836 = vpow.pop %v4835
    %v4837 = vadd.f32 %v4836, 1.0
    %v4838 = vrcp.pop %v4837
    %v4839 = vmul.f32 %v4837, %v4838
    %v4840 = vsub.f32 1.0, %v4839
    %v4841 = vmul.f32 %v4838, %v4840
    %v4842 = vadd.f32 %v4838, %v4841
    %vm4843 = vweird.f32 %v4837
    %vm4844 = vweird.f32 %v4838
    %vm4845 = vmor %vm4843, %vm4844
    %v4846 = vsel %vm4845, %v4838, %v4842
    %v4847 = vand.u32 2147483647, %v4837
    %vm4848 = vcmp.eq.f32.partialorder %v4847, 8.507059e+37
    %v4849 = vand.u32 %v4837, 2147483648
    %v4850 = vor.u32 1.1754944e-38, %v4849
    %v4851 = vsel %vm4848, %v4850, %v4846
    %v4852 = vmul.f32 1.0, %v4851
    %v4853 = vmul.f32 %v4832, %v4776
    %v4854 = vmul.f32 %v4832, %v4833
    %4856 = vrot.lane.b32.xlu0 %v4854, 64
    %v4857 = vpop.permute.xlu0 %4856
    %v4859 = vadd.f32 %v4853, %v4857
    %v4860 = vtanh.pop %v4859
    %v4861 = vmul.f32 %v4852, %v4860
    %v4862 = vpack.c.bf16 %v4861, %v4861
    %v4863 = vld [vmem:[#allocation4] sm:$0xff]
    %v4864 = vld [vmem:[#allocation4 + $0x8] sm:$0xff]
    %v4865 = vld [vmem:[#allocation4 + $0x10] sm:$0xff]
    %v4866 = vld [vmem:[#allocation4 + $0x18] sm:$0xff]
    %v4867 = vld [vmem:[#allocation4 + $0x20] sm:$0xff]
    %v4868 = vld [vmem:[#allocation4 + $0x28] sm:$0xff]
    %v4869 = vld [vmem:[#allocation4 + $0x30] sm:$0xff]
    %v4870 = vld [vmem:[#allocation4 + $0x38] sm:$0xff]
    %v4871 = vld [vmem:[#allocation4 + $0x40] sm:$0xff]
    %v4872 = vld [vmem:[#allocation4 + $0x48] sm:$0xff]
    %v4873 = vld [vmem:[#allocation4 + $0x50] sm:$0xff]
    %v4874 = vld [vmem:[#allocation4 + $0x58] sm:$0xff]
    %v4875 = vld [vmem:[#allocation4 + $0x60] sm:$0xff]
    %v4876 = vld [vmem:[#allocation4 + $0x68] sm:$0xff]
    %v4877 = vld [vmem:[#allocation4 + $0x70] sm:$0xff]
    %v4878 = vld [vmem:[#allocation4 + $0x78] sm:$0xff]
    %v4879 = vpack.c.bf16 %v4865, %v4863
    %v4880 = vpack.c.bf16 %v4866, %v4864
    %v4881 = vpack.c.bf16 %v4869, %v4867
    %v4882 = vpack.c.bf16 %v4870, %v4868
    %v4883 = vpack.c.bf16 %v4873, %v4871
    %v4884 = vpack.c.bf16 %v4874, %v4872
    %v4885 = vpack.c.bf16 %v4877, %v4875
    %v4886 = vpack.c.bf16 %v4878, %v4876
    %v4887 = vld [vmem:[%s11] sm:$0x3]
    %v4889 = vperm.slane %v4887, 0
    %v4890 = vperm.slane %v4887, 1
    %4894 = vrot.lane.b32.xlu0 %v4862, 64
    %v4895 = vpop.permute.xlu0 %4894
    %v4897 = vsel %vm4201, %v4895, 0
    %4899 = vmatpush.bf16.msra.mxu0 0
    %4900 = vmatpush.bf16.msra.mxu0 0
    %4901 = vmatpush.bf16.msra.mxu0 0
    %4902 = vmatpush.bf16.msra.mxu0 0
    %4903 = vmatpush.bf16.msra.mxu0 %v4885
    %4904 = vmatpush.bf16.msra.mxu0 %v4883
    %4905 = vmatpush.bf16.msra.mxu0 %v4881
    %4906 = vmatpush.bf16.msra.mxu0 %v4879
    %4907 = vmatmul.bf16.gmra.mxu0 %v4897
    %v4908 = vpop.f32.mrf.mxu0
    %v4909 = vadd.f32 %v4889, %v4908
    %v4910 = vpop.f32.mrf.mxu0
    %4911 = vdwg.mxu0
    %4912 = vmatpush.bf16.msra.mxu0 0
    %4913 = vmatpush.bf16.msra.mxu0 0
    %4914 = vmatpush.bf16.msra.mxu0 0
    %4915 = vmatpush.bf16.msra.mxu0 0
    %4916 = vmatpush.bf16.msra.mxu0 %v4886
    %4917 = vmatpush.bf16.msra.mxu0 %v4884
    %4918 = vmatpush.bf16.msra.mxu0 %v4882
    %4919 = vmatpush.bf16.msra.mxu0 %v4880
    %4920 = vmatmul.bf16.gmra.mxu0 %v4897
    %v4921 = vpop.f32.mrf.mxu0
    %v4922 = vadd.f32 %v4890, %v4921
    %v4923 = vpop.f32.mrf.mxu0
    %4924 = vdwg.mxu0
    %4925 = vst [vmem:[%s12] sm:$0xff] %v4909
    %4926 = vst.msk [vmem:[%s12 + $0x8] sm:$0xff] %vm919, %v4922
    // Predicated region
    $region58: #{_lambda_.1} parent=1 // pred_check
      _
    $region59: #{_lambda_.1} parent=1 // pred_check_branch
      %4928 = sbr.rel (0) target = $region61
    $region60: #{_lambda_.1} parent=1 // pred_region
      _
    $region61: #{_lambda_.1} parent=1 // pred_fallthru
      _
    // Predicated region
    $region62: #{_lambda_.1} parent=1 // pred_check
      _
    $region63: #{_lambda_.1} parent=1 // pred_check_branch
      %4930 = sbr.rel (0) target = $region65
    $region64: #{_lambda_.1} parent=1 // pred_region
      _
    $region65: #{_lambda_.1} parent=1 // pred_fallthru
      _
    %4931 = vsyncpa [#allocation3], 1
    %4932 = vsyncpa [#allocation5], 1

</llo_original>
